<compile_context>
chip_gen: v7x
topology: tpu7x:2x2x1
jax: 0.10.0
libtpu: 0.0.40
codegen_flags: <defaults>
</compile_context>

<pallas_src>
import math

import jax
import jax.numpy as jnp
from jax.experimental import pallas as pl
from jax.experimental.pallas import tpu as pltpu

LN_EPS = 1e-5
_INV_SQRT2 = 1.0 / math.sqrt(2.0)
TM_CAP = 2048  # lanes per batch tile (multiple of 128)

# dot_general dimension numbers (2-D operands, no batch dims).
_DN_TT = (((1,), (1,)), ((), ()))   # contract both last dims:  A(m,k) . B(n,k)^T -> (m,n)
_DN_STD = (((1,), (0,)), ((), ()))  # standard matmul:          A(m,k) . B(k,n)   -> (m,n)


def _gelu_exact(h):
    # PyTorch nn.GELU() default is the exact erf form.
    return 0.5 * h * (1.0 + jax.lax.erf(h * _INV_SQRT2))


def _mm3(a, b, dn):
    """~f32-accurate matmul as 3 bf16 MXU passes with f32 accumulation.

    a = a_hi + a_lo, b = b_hi + b_lo (bf16 hi / bf16 residual); the lo*lo
    term (~2^-18 relative) is dropped.  This is the bf16x3 scheme and is
    cheaper than the default multi-pass f32 matmul on the bf16-native MXU.
    """
    a_hi = a.astype(jnp.bfloat16)
    a_lo = (a - a_hi.astype(jnp.float32)).astype(jnp.bfloat16)
    b_hi = b.astype(jnp.bfloat16)
    b_lo = (b - b_hi.astype(jnp.float32)).astype(jnp.bfloat16)

    def dot(u, v):
        return jax.lax.dot_general(u, v, dn, preferred_element_type=jnp.float32)

    return dot(a_hi, b_hi) + dot(a_lo, b_hi) + dot(a_hi, b_lo)


def ptc_map_velocity_kernel(x_ref, w1_ref, wh_ref, wf_ref, vec_ref, bf_ref, o_ref):
    # x_ref: (tm, 6) batch-major block; activations are carried feature-major
    # (K, tm) so the 128-wide lane axis holds the batch.
    def ln_gelu(z, layer):
        b = vec_ref[layer, 0, :, :]    # (K, 1) Linear bias
        g = vec_ref[layer, 1, :, :]    # (K, 1) LayerNorm weight
        be = vec_ref[layer, 2, :, :]   # (K, 1) LayerNorm bias
        z = z + b
        mu = jnp.mean(z, axis=0, keepdims=True)               # (1, tm)
        zc = z - mu
        var = jnp.mean(zc * zc, axis=0, keepdims=True)        # (1, tm)
        z = zc * jax.lax.rsqrt(var + LN_EPS) * g + be
        return _gelu_exact(z)

    # Layer 1: W1 (K,6) contracted against x (tm,6) over the feature dim —
    # no materialized transpose of the batch-major input block.
    h = _mm3(w1_ref[...], x_ref[...], _DN_TT)                 # (K, tm)
    h = ln_gelu(h, 0)
    for l in range(3):
        h = _mm3(wh_ref[l], h, _DN_STD)                       # (K, tm)
        h = ln_gelu(h, l + 1)
    out = _mm3(wf_ref[...], h, _DN_STD) + bf_ref[...]         # (ST, tm)
    # Batch-major store: small (ST, tm) -> (tm, ST) transpose on the XLU.
    o_ref[...] = out.T.astype(o_ref.dtype)


def _round_up(a, b):
    return ((a + b - 1) // b) * b


def _num_tensorcores_per_chip():
    """Best-effort TensorCore-per-chip count (>=2 on megacore parts)."""
    try:
        info = pltpu.get_tpu_info()
        for name in ("tensorcores_per_chip", "num_tensorcores", "num_cores",
                     "cores_per_chip"):
            v = getattr(info, name, None)
            if isinstance(v, int) and v > 0:
                return v
    except Exception:
        pass
    return 1


def ptc_map_velocity(x, params, *, tm=None):
    """x: (..., 6) float32. Returns (..., space*time)."""
    lead = x.shape[:-1]
    in_feat = params["w1"].shape[1]
    K = params["w1"].shape[0]
    ST = params["wf"].shape[0]

    x2 = x.reshape(-1, in_feat).astype(jnp.float32)
    N = x2.shape[0]

    cores = _num_tensorcores_per_chip()
    if tm is None:
        if cores >= 2:
            # Megacore: aim for several grid steps so both TCs get work.
            tm = min(TM_CAP, max(128, _round_up(pl.cdiv(N, 4), 128)))
        else:
            # Single TensorCore (v5e/v6e): one big tile, minimal padding.
            tm = min(TM_CAP, _round_up(N, 128))
    tm = max(128, _round_up(tm, 128))

    n_pad = _round_up(N, tm)
    steps = n_pad // tm
    if cores >= 2 and steps > 1 and steps % 2 == 1:
        # Even step count so the two TensorCores split the grid evenly.
        n_pad += tm
        steps += 1
    if n_pad != N:
        # Zero rows stay finite through LayerNorm because LN_EPS > 0.
        x2 = jnp.pad(x2, ((0, n_pad - N), (0, 0)))

    vecs = params["vecs"].reshape(4, 3, K, 1)
    bf = params["bf"].reshape(ST, 1)

    out = pl.pallas_call(
        ptc_map_velocity_kernel,
        out_shape=jax.ShapeDtypeStruct((n_pad, ST), jnp.float32),
        grid_spec=pltpu.PrefetchScalarGridSpec(
            num_scalar_prefetch=0,
            grid=(steps,),
            in_specs=[
                pl.BlockSpec((tm, in_feat), lambda i: (i, 0)),
                pl.BlockSpec((K, in_feat), lambda i: (0, 0)),
                pl.BlockSpec((3, K, K), lambda i: (0, 0, 0)),
                pl.BlockSpec((ST, K), lambda i: (0, 0)),
                pl.BlockSpec((4, 3, K, 1), lambda i: (0, 0, 0, 0)),
                pl.BlockSpec((ST, 1), lambda i: (0, 0)),
            ],
            out_specs=pl.BlockSpec((tm, ST), lambda i: (i, 0)),
        ),
        compiler_params=pltpu.CompilerParams(
            dimension_semantics=("parallel",),
            vmem_limit_bytes=32 * 1024 * 1024,
        ),
    )(x2, params["w1"], params["wh"], params["wf"], vecs, bf)

    return out[:N].reshape(*lead, ST)


def init_params(key, K, space, time):
    """Deterministic init matching the PyTorch module: kaiming_normal_ on
    Linear weights (fan_in, gain=sqrt(2)), Linear bias=0.01, LN weight=1, bias=0."""
    keys = jax.random.split(key, 5)

    def kaiming(k, fan_out, fan_in):
        std = math.sqrt(2.0 / fan_in)
        return jax.random.normal(k, (fan_out, fan_in), dtype=jnp.float32) * std

    ST = space * time
    w1 = kaiming(keys[0], K, 6)
    wh = jnp.stack([kaiming(keys[i], K, K) for i in (1, 2, 3)])   # (3, K, K)
    wf = kaiming(keys[4], ST, K)
    layer_vec = jnp.stack([
        jnp.full((K,), 0.01, dtype=jnp.float32),   # Linear bias
        jnp.ones((K,), dtype=jnp.float32),         # LayerNorm weight
        jnp.zeros((K,), dtype=jnp.float32),        # LayerNorm bias
    ])
    vecs = jnp.stack([layer_vec] * 4)              # (4, 3, K)
    bf = jnp.full((ST,), 0.01, dtype=jnp.float32)
    return {"w1": w1, "wh": wh, "wf": wf, "vecs": vecs, "bf": bf}


def reference_forward(x, params):
    """Pure-JAX f32 reference of the PyTorch forward (batch-major)."""
    h = x
    ws = [params["w1"], params["wh"][0], params["wh"][1], params["wh"][2]]
    for idx in range(4):
        b, g, be = params["vecs"][idx]
        h = h @ ws[idx].T + b
        mu = jnp.mean(h, axis=-1, keepdims=True)
        var = jnp.mean((h - mu) ** 2, axis=-1, keepdims=True)
        h = (h - mu) / jnp.sqrt(var + LN_EPS) * g + be
        h = 0.5 * h * (1.0 + jax.lax.erf(h / jnp.sqrt(2.0)))
    return h @ params["wf"].T + params["bf"]


if __name__ == "__main__":
    K, space, time = 32, 4, 2     # hidden K=32, output dim = space*time = 8
    N = 300                       # non-tile-multiple batch: exercises padding

    key = jax.random.PRNGKey(0)
    kx, kp = jax.random.split(key)
    x = jax.random.normal(kx, (N, 6), dtype=jnp.float32)
    params = init_params(kp, K, space, time)

    out = jax.block_until_ready(ptc_map_velocity(x, params))

    ref = reference_forward(x, params)
    assert out.shape == (N, space * time), out.shape
    # bf16x3 matmuls keep ~f32 accuracy; allow a small extra margin.
    assert jnp.allclose(out, ref, atol=5e-4, rtol=5e-4), "mismatch vs reference"

    print("KERNEL_OK")
</pallas_src>

<mosaic_0001>
module attributes {stable_mosaic.version = 11 : i64} {
  func.func @ptc_map_velocity_kernel(%arg0: i32, %arg1: memref<384x6xf32, #tpu.memory_space<vmem>>, %arg2: memref<32x6xf32, #tpu.memory_space<vmem>>, %arg3: memref<3x32x32xf32, #tpu.memory_space<vmem>>, %arg4: memref<8x32xf32, #tpu.memory_space<vmem>>, %arg5: memref<4x3x32x1xf32, #tpu.memory_space<vmem>>, %arg6: memref<8x1xf32, #tpu.memory_space<vmem>>, %arg7: memref<384x8xf32, #tpu.memory_space<vmem>>) attributes {dimension_semantics = [#tpu.dimension_semantics<parallel>], iteration_bounds = array<i64: 1>, scalar_prefetch = 0 : i64, scratch_operands = 0 : i64, tpu.core_type = #tpu.core_type<tc>, window_params = [{transform_indices = @transform_0, window_bounds = array<i64: 384, 6>}, {pipeline_mode = #tpu.pipeline_mode<synchronous>, transform_indices = @transform_1, window_bounds = array<i64: 32, 6>}, {pipeline_mode = #tpu.pipeline_mode<synchronous>, transform_indices = @transform_2, window_bounds = array<i64: 3, 32, 32>}, {pipeline_mode = #tpu.pipeline_mode<synchronous>, transform_indices = @transform_3, window_bounds = array<i64: 8, 32>}, {pipeline_mode = #tpu.pipeline_mode<synchronous>, transform_indices = @transform_4, window_bounds = array<i64: 4, 3, 32, 1>}, {pipeline_mode = #tpu.pipeline_mode<synchronous>, transform_indices = @transform_5, window_bounds = array<i64: 8, 1>}, {transform_indices = @transform_6, window_bounds = array<i64: 384, 8>}]} {
    %c0 = arith.constant 0 : index
    %c0_0 = arith.constant 0 : index
    %0 = vector.load %arg2[%c0, %c0_0] : memref<32x6xf32, #tpu.memory_space<vmem>>, vector<32x6xf32>
    %c0_1 = arith.constant 0 : index
    %c0_2 = arith.constant 0 : index
    %1 = vector.load %arg1[%c0_1, %c0_2] : memref<384x6xf32, #tpu.memory_space<vmem>>, vector<384x6xf32>
    %2 = arith.truncf %0 : vector<32x6xf32> to vector<32x6xbf16>
    %3 = arith.extf %2 : vector<32x6xbf16> to vector<32x6xf32>
    %4 = arith.subf %0, %3 : vector<32x6xf32>
    %5 = arith.truncf %4 : vector<32x6xf32> to vector<32x6xbf16>
    %6 = arith.truncf %1 : vector<384x6xf32> to vector<384x6xbf16>
    %7 = arith.extf %6 : vector<384x6xbf16> to vector<384x6xf32>
    %8 = arith.subf %1, %7 : vector<384x6xf32>
    %9 = arith.truncf %8 : vector<384x6xf32> to vector<384x6xbf16>
    %cst = arith.constant dense<0.000000e+00> : vector<32x384xf32>
    %10 = tpu.matmul %2, %6, %cst {dimension_numbers = #tpu.dot_dimension_numbers<[1], [1], [0], [0], [0, 0, 1, 0], [], []>} : vector<32x6xbf16>, vector<384x6xbf16>, vector<32x384xf32> -> vector<32x384xf32>
    %cst_3 = arith.constant dense<0.000000e+00> : vector<32x384xf32>
    %11 = tpu.matmul %5, %6, %cst_3 {dimension_numbers = #tpu.dot_dimension_numbers<[1], [1], [0], [0], [0, 0, 1, 0], [], []>} : vector<32x6xbf16>, vector<384x6xbf16>, vector<32x384xf32> -> vector<32x384xf32>
    %12 = arith.addf %10, %11 : vector<32x384xf32>
    %cst_4 = arith.constant dense<0.000000e+00> : vector<32x384xf32>
    %13 = tpu.matmul %2, %9, %cst_4 {dimension_numbers = #tpu.dot_dimension_numbers<[1], [1], [0], [0], [0, 0, 1, 0], [], []>} : vector<32x6xbf16>, vector<384x6xbf16>, vector<32x384xf32> -> vector<32x384xf32>
    %14 = arith.addf %12, %13 : vector<32x384xf32>
    %c0_5 = arith.constant 0 : index
    %c0_6 = arith.constant 0 : index
    %c0_7 = arith.constant 0 : index
    %c0_8 = arith.constant 0 : index
    %15 = vector.load %arg5[%c0_5, %c0_6, %c0_7, %c0_8] : memref<4x3x32x1xf32, #tpu.memory_space<vmem>>, vector<1x1x32x1xf32>
    %16 = vector.shape_cast %15 : vector<1x1x32x1xf32> to vector<32x1xf32>
    %c0_9 = arith.constant 0 : index
    %c1 = arith.constant 1 : index
    %c0_10 = arith.constant 0 : index
    %c0_11 = arith.constant 0 : index
    %17 = vector.load %arg5[%c0_9, %c1, %c0_10, %c0_11] : memref<4x3x32x1xf32, #tpu.memory_space<vmem>>, vector<1x1x32x1xf32>
    %18 = vector.shape_cast %17 : vector<1x1x32x1xf32> to vector<32x1xf32>
    %c0_12 = arith.constant 0 : index
    %c2 = arith.constant 2 : index
    %c0_13 = arith.constant 0 : index
    %c0_14 = arith.constant 0 : index
    %19 = vector.load %arg5[%c0_12, %c2, %c0_13, %c0_14] : memref<4x3x32x1xf32, #tpu.memory_space<vmem>>, vector<1x1x32x1xf32>
    %20 = vector.shape_cast %19 : vector<1x1x32x1xf32> to vector<32x1xf32>
    %21 = vector.broadcast %16 : vector<32x1xf32> to vector<32x384xf32>
    %22 = arith.addf %14, %21 : vector<32x384xf32>
    %cst_15 = arith.constant dense<0.000000e+00> : vector<384xf32>
    %23 = vector.multi_reduction <add>, %22, %cst_15 [0] : vector<32x384xf32> to vector<384xf32>
    %24 = vector.shape_cast %23 : vector<384xf32> to vector<1x384xf32>
    %cst_16 = arith.constant 3.200000e+01 : f32
    %25 = vector.broadcast %cst_16 : f32 to vector<1x384xf32>
    %26 = arith.divf %24, %25 : vector<1x384xf32>
    %27 = vector.broadcast %26 : vector<1x384xf32> to vector<32x384xf32>
    %28 = arith.subf %22, %27 : vector<32x384xf32>
    %29 = arith.mulf %28, %28 : vector<32x384xf32>
    %cst_17 = arith.constant dense<0.000000e+00> : vector<384xf32>
    %30 = vector.multi_reduction <add>, %29, %cst_17 [0] : vector<32x384xf32> to vector<384xf32>
    %31 = vector.shape_cast %30 : vector<384xf32> to vector<1x384xf32>
    %cst_18 = arith.constant 3.200000e+01 : f32
    %32 = vector.broadcast %cst_18 : f32 to vector<1x384xf32>
    %33 = arith.divf %31, %32 : vector<1x384xf32>
    %cst_19 = arith.constant 9.99999974E-6 : f32
    %34 = vector.broadcast %cst_19 : f32 to vector<1x384xf32>
    %35 = arith.addf %33, %34 : vector<1x384xf32>
    %36 = math.rsqrt %35 : vector<1x384xf32>
    %37 = vector.broadcast %36 : vector<1x384xf32> to vector<32x384xf32>
    %38 = arith.mulf %28, %37 : vector<32x384xf32>
    %39 = vector.broadcast %18 : vector<32x1xf32> to vector<32x384xf32>
    %40 = arith.mulf %38, %39 : vector<32x384xf32>
    %41 = vector.broadcast %20 : vector<32x1xf32> to vector<32x384xf32>
    %42 = arith.addf %40, %41 : vector<32x384xf32>
    %cst_20 = arith.constant 5.000000e-01 : f32
    %43 = vector.broadcast %cst_20 : f32 to vector<32x384xf32>
    %44 = arith.mulf %43, %42 : vector<32x384xf32>
    %cst_21 = arith.constant 0.707106769 : f32
    %45 = vector.broadcast %cst_21 : f32 to vector<32x384xf32>
    %46 = arith.mulf %42, %45 : vector<32x384xf32>
    %47 = math.erf %46 : vector<32x384xf32>
    %cst_22 = arith.constant 1.000000e+00 : f32
    %48 = vector.broadcast %cst_22 : f32 to vector<32x384xf32>
    %49 = arith.addf %48, %47 : vector<32x384xf32>
    %50 = arith.mulf %44, %49 : vector<32x384xf32>
    %c0_23 = arith.constant 0 : index
    %c0_24 = arith.constant 0 : index
    %c0_25 = arith.constant 0 : index
    %51 = vector.load %arg3[%c0_23, %c0_24, %c0_25] : memref<3x32x32xf32, #tpu.memory_space<vmem>>, vector<1x32x32xf32>
    %52 = vector.shape_cast %51 : vector<1x32x32xf32> to vector<32x32xf32>
    %53 = arith.truncf %52 : vector<32x32xf32> to vector<32x32xbf16>
    %54 = arith.extf %53 : vector<32x32xbf16> to vector<32x32xf32>
    %55 = arith.subf %52, %54 : vector<32x32xf32>
    %56 = arith.truncf %55 : vector<32x32xf32> to vector<32x32xbf16>
    %57 = arith.truncf %50 : vector<32x384xf32> to vector<32x384xbf16>
    %58 = arith.extf %57 : vector<32x384xbf16> to vector<32x384xf32>
    %59 = arith.subf %50, %58 : vector<32x384xf32>
    %60 = arith.truncf %59 : vector<32x384xf32> to vector<32x384xbf16>
    %cst_26 = arith.constant dense<0.000000e+00> : vector<32x384xf32>
    %61 = tpu.matmul %53, %57, %cst_26 {dimension_numbers = #tpu.dot_dimension_numbers<[1], [0], [0], [1], [0, 0, 1, 1], [], []>} : vector<32x32xbf16>, vector<32x384xbf16>, vector<32x384xf32> -> vector<32x384xf32>
    %cst_27 = arith.constant dense<0.000000e+00> : vector<32x384xf32>
    %62 = tpu.matmul %56, %57, %cst_27 {dimension_numbers = #tpu.dot_dimension_numbers<[1], [0], [0], [1], [0, 0, 1, 1], [], []>} : vector<32x32xbf16>, vector<32x384xbf16>, vector<32x384xf32> -> vector<32x384xf32>
    %63 = arith.addf %61, %62 : vector<32x384xf32>
    %cst_28 = arith.constant dense<0.000000e+00> : vector<32x384xf32>
    %64 = tpu.matmul %53, %60, %cst_28 {dimension_numbers = #tpu.dot_dimension_numbers<[1], [0], [0], [1], [0, 0, 1, 1], [], []>} : vector<32x32xbf16>, vector<32x384xbf16>, vector<32x384xf32> -> vector<32x384xf32>
    %65 = arith.addf %63, %64 : vector<32x384xf32>
    %c1_29 = arith.constant 1 : index
    %c0_30 = arith.constant 0 : index
    %c0_31 = arith.constant 0 : index
    %c0_32 = arith.constant 0 : index
    %66 = vector.load %arg5[%c1_29, %c0_30, %c0_31, %c0_32] : memref<4x3x32x1xf32, #tpu.memory_space<vmem>>, vector<1x1x32x1xf32>
    %67 = vector.shape_cast %66 : vector<1x1x32x1xf32> to vector<32x1xf32>
    %c1_33 = arith.constant 1 : index
    %c1_34 = arith.constant 1 : index
    %c0_35 = arith.constant 0 : index
    %c0_36 = arith.constant 0 : index
    %68 = vector.load %arg5[%c1_33, %c1_34, %c0_35, %c0_36] : memref<4x3x32x1xf32, #tpu.memory_space<vmem>>, vector<1x1x32x1xf32>
    %69 = vector.shape_cast %68 : vector<1x1x32x1xf32> to vector<32x1xf32>
    %c1_37 = arith.constant 1 : index
    %c2_38 = arith.constant 2 : index
    %c0_39 = arith.constant 0 : index
    %c0_40 = arith.constant 0 : index
    %70 = vector.load %arg5[%c1_37, %c2_38, %c0_39, %c0_40] : memref<4x3x32x1xf32, #tpu.memory_space<vmem>>, vector<1x1x32x1xf32>
    %71 = vector.shape_cast %70 : vector<1x1x32x1xf32> to vector<32x1xf32>
    %72 = vector.broadcast %67 : vector<32x1xf32> to vector<32x384xf32>
    %73 = arith.addf %65, %72 : vector<32x384xf32>
    %cst_41 = arith.constant dense<0.000000e+00> : vector<384xf32>
    %74 = vector.multi_reduction <add>, %73, %cst_41 [0] : vector<32x384xf32> to vector<384xf32>
    %75 = vector.shape_cast %74 : vector<384xf32> to vector<1x384xf32>
    %cst_42 = arith.constant 3.200000e+01 : f32
    %76 = vector.broadcast %cst_42 : f32 to vector<1x384xf32>
    %77 = arith.divf %75, %76 : vector<1x384xf32>
    %78 = vector.broadcast %77 : vector<1x384xf32> to vector<32x384xf32>
    %79 = arith.subf %73, %78 : vector<32x384xf32>
    %80 = arith.mulf %79, %79 : vector<32x384xf32>
    %cst_43 = arith.constant dense<0.000000e+00> : vector<384xf32>
    %81 = vector.multi_reduction <add>, %80, %cst_43 [0] : vector<32x384xf32> to vector<384xf32>
    %82 = vector.shape_cast %81 : vector<384xf32> to vector<1x384xf32>
    %cst_44 = arith.constant 3.200000e+01 : f32
    %83 = vector.broadcast %cst_44 : f32 to vector<1x384xf32>
    %84 = arith.divf %82, %83 : vector<1x384xf32>
    %cst_45 = arith.constant 9.99999974E-6 : f32
    %85 = vector.broadcast %cst_45 : f32 to vector<1x384xf32>
    %86 = arith.addf %84, %85 : vector<1x384xf32>
    %87 = math.rsqrt %86 : vector<1x384xf32>
    %88 = vector.broadcast %87 : vector<1x384xf32> to vector<32x384xf32>
    %89 = arith.mulf %79, %88 : vector<32x384xf32>
    %90 = vector.broadcast %69 : vector<32x1xf32> to vector<32x384xf32>
    %91 = arith.mulf %89, %90 : vector<32x384xf32>
    %92 = vector.broadcast %71 : vector<32x1xf32> to vector<32x384xf32>
    %93 = arith.addf %91, %92 : vector<32x384xf32>
    %cst_46 = arith.constant 5.000000e-01 : f32
    %94 = vector.broadcast %cst_46 : f32 to vector<32x384xf32>
    %95 = arith.mulf %94, %93 : vector<32x384xf32>
    %cst_47 = arith.constant 0.707106769 : f32
    %96 = vector.broadcast %cst_47 : f32 to vector<32x384xf32>
    %97 = arith.mulf %93, %96 : vector<32x384xf32>
    %98 = math.erf %97 : vector<32x384xf32>
    %cst_48 = arith.constant 1.000000e+00 : f32
    %99 = vector.broadcast %cst_48 : f32 to vector<32x384xf32>
    %100 = arith.addf %99, %98 : vector<32x384xf32>
    %101 = arith.mulf %95, %100 : vector<32x384xf32>
    %c1_49 = arith.constant 1 : index
    %c0_50 = arith.constant 0 : index
    %c0_51 = arith.constant 0 : index
    %102 = vector.load %arg3[%c1_49, %c0_50, %c0_51] : memref<3x32x32xf32, #tpu.memory_space<vmem>>, vector<1x32x32xf32>
    %103 = vector.shape_cast %102 : vector<1x32x32xf32> to vector<32x32xf32>
    %104 = arith.truncf %103 : vector<32x32xf32> to vector<32x32xbf16>
    %105 = arith.extf %104 : vector<32x32xbf16> to vector<32x32xf32>
    %106 = arith.subf %103, %105 : vector<32x32xf32>
    %107 = arith.truncf %106 : vector<32x32xf32> to vector<32x32xbf16>
    %108 = arith.truncf %101 : vector<32x384xf32> to vector<32x384xbf16>
    %109 = arith.extf %108 : vector<32x384xbf16> to vector<32x384xf32>
    %110 = arith.subf %101, %109 : vector<32x384xf32>
    %111 = arith.truncf %110 : vector<32x384xf32> to vector<32x384xbf16>
    %cst_52 = arith.constant dense<0.000000e+00> : vector<32x384xf32>
    %112 = tpu.matmul %104, %108, %cst_52 {dimension_numbers = #tpu.dot_dimension_numbers<[1], [0], [0], [1], [0, 0, 1, 1], [], []>} : vector<32x32xbf16>, vector<32x384xbf16>, vector<32x384xf32> -> vector<32x384xf32>
    %cst_53 = arith.constant dense<0.000000e+00> : vector<32x384xf32>
    %113 = tpu.matmul %107, %108, %cst_53 {dimension_numbers = #tpu.dot_dimension_numbers<[1], [0], [0], [1], [0, 0, 1, 1], [], []>} : vector<32x32xbf16>, vector<32x384xbf16>, vector<32x384xf32> -> vector<32x384xf32>
    %114 = arith.addf %112, %113 : vector<32x384xf32>
    %cst_54 = arith.constant dense<0.000000e+00> : vector<32x384xf32>
    %115 = tpu.matmul %104, %111, %cst_54 {dimension_numbers = #tpu.dot_dimension_numbers<[1], [0], [0], [1], [0, 0, 1, 1], [], []>} : vector<32x32xbf16>, vector<32x384xbf16>, vector<32x384xf32> -> vector<32x384xf32>
    %116 = arith.addf %114, %115 : vector<32x384xf32>
    %c2_55 = arith.constant 2 : index
    %c0_56 = arith.constant 0 : index
    %c0_57 = arith.constant 0 : index
    %c0_58 = arith.constant 0 : index
    %117 = vector.load %arg5[%c2_55, %c0_56, %c0_57, %c0_58] : memref<4x3x32x1xf32, #tpu.memory_space<vmem>>, vector<1x1x32x1xf32>
    %118 = vector.shape_cast %117 : vector<1x1x32x1xf32> to vector<32x1xf32>
    %c2_59 = arith.constant 2 : index
    %c1_60 = arith.constant 1 : index
    %c0_61 = arith.constant 0 : index
    %c0_62 = arith.constant 0 : index
    %119 = vector.load %arg5[%c2_59, %c1_60, %c0_61, %c0_62] : memref<4x3x32x1xf32, #tpu.memory_space<vmem>>, vector<1x1x32x1xf32>
    %120 = vector.shape_cast %119 : vector<1x1x32x1xf32> to vector<32x1xf32>
    %c2_63 = arith.constant 2 : index
    %c2_64 = arith.constant 2 : index
    %c0_65 = arith.constant 0 : index
    %c0_66 = arith.constant 0 : index
    %121 = vector.load %arg5[%c2_63, %c2_64, %c0_65, %c0_66] : memref<4x3x32x1xf32, #tpu.memory_space<vmem>>, vector<1x1x32x1xf32>
    %122 = vector.shape_cast %121 : vector<1x1x32x1xf32> to vector<32x1xf32>
    %123 = vector.broadcast %118 : vector<32x1xf32> to vector<32x384xf32>
    %124 = arith.addf %116, %123 : vector<32x384xf32>
    %cst_67 = arith.constant dense<0.000000e+00> : vector<384xf32>
    %125 = vector.multi_reduction <add>, %124, %cst_67 [0] : vector<32x384xf32> to vector<384xf32>
    %126 = vector.shape_cast %125 : vector<384xf32> to vector<1x384xf32>
    %cst_68 = arith.constant 3.200000e+01 : f32
    %127 = vector.broadcast %cst_68 : f32 to vector<1x384xf32>
    %128 = arith.divf %126, %127 : vector<1x384xf32>
    %129 = vector.broadcast %128 : vector<1x384xf32> to vector<32x384xf32>
    %130 = arith.subf %124, %129 : vector<32x384xf32>
    %131 = arith.mulf %130, %130 : vector<32x384xf32>
    %cst_69 = arith.constant dense<0.000000e+00> : vector<384xf32>
    %132 = vector.multi_reduction <add>, %131, %cst_69 [0] : vector<32x384xf32> to vector<384xf32>
    %133 = vector.shape_cast %132 : vector<384xf32> to vector<1x384xf32>
    %cst_70 = arith.constant 3.200000e+01 : f32
    %134 = vector.broadcast %cst_70 : f32 to vector<1x384xf32>
    %135 = arith.divf %133, %134 : vector<1x384xf32>
    %cst_71 = arith.constant 9.99999974E-6 : f32
    %136 = vector.broadcast %cst_71 : f32 to vector<1x384xf32>
    %137 = arith.addf %135, %136 : vector<1x384xf32>
    %138 = math.rsqrt %137 : vector<1x384xf32>
    %139 = vector.broadcast %138 : vector<1x384xf32> to vector<32x384xf32>
    %140 = arith.mulf %130, %139 : vector<32x384xf32>
    %141 = vector.broadcast %120 : vector<32x1xf32> to vector<32x384xf32>
    %142 = arith.mulf %140, %141 : vector<32x384xf32>
    %143 = vector.broadcast %122 : vector<32x1xf32> to vector<32x384xf32>
    %144 = arith.addf %142, %143 : vector<32x384xf32>
    %cst_72 = arith.constant 5.000000e-01 : f32
    %145 = vector.broadcast %cst_72 : f32 to vector<32x384xf32>
    %146 = arith.mulf %145, %144 : vector<32x384xf32>
    %cst_73 = arith.constant 0.707106769 : f32
    %147 = vector.broadcast %cst_73 : f32 to vector<32x384xf32>
    %148 = arith.mulf %144, %147 : vector<32x384xf32>
    %149 = math.erf %148 : vector<32x384xf32>
    %cst_74 = arith.constant 1.000000e+00 : f32
    %150 = vector.broadcast %cst_74 : f32 to vector<32x384xf32>
    %151 = arith.addf %150, %149 : vector<32x384xf32>
    %152 = arith.mulf %146, %151 : vector<32x384xf32>
    %c2_75 = arith.constant 2 : index
    %c0_76 = arith.constant 0 : index
    %c0_77 = arith.constant 0 : index
    %153 = vector.load %arg3[%c2_75, %c0_76, %c0_77] : memref<3x32x32xf32, #tpu.memory_space<vmem>>, vector<1x32x32xf32>
    %154 = vector.shape_cast %153 : vector<1x32x32xf32> to vector<32x32xf32>
    %155 = arith.truncf %154 : vector<32x32xf32> to vector<32x32xbf16>
    %156 = arith.extf %155 : vector<32x32xbf16> to vector<32x32xf32>
    %157 = arith.subf %154, %156 : vector<32x32xf32>
    %158 = arith.truncf %157 : vector<32x32xf32> to vector<32x32xbf16>
    %159 = arith.truncf %152 : vector<32x384xf32> to vector<32x384xbf16>
    %160 = arith.extf %159 : vector<32x384xbf16> to vector<32x384xf32>
    %161 = arith.subf %152, %160 : vector<32x384xf32>
    %162 = arith.truncf %161 : vector<32x384xf32> to vector<32x384xbf16>
    %cst_78 = arith.constant dense<0.000000e+00> : vector<32x384xf32>
    %163 = tpu.matmul %155, %159, %cst_78 {dimension_numbers = #tpu.dot_dimension_numbers<[1], [0], [0], [1], [0, 0, 1, 1], [], []>} : vector<32x32xbf16>, vector<32x384xbf16>, vector<32x384xf32> -> vector<32x384xf32>
    %cst_79 = arith.constant dense<0.000000e+00> : vector<32x384xf32>
    %164 = tpu.matmul %158, %159, %cst_79 {dimension_numbers = #tpu.dot_dimension_numbers<[1], [0], [0], [1], [0, 0, 1, 1], [], []>} : vector<32x32xbf16>, vector<32x384xbf16>, vector<32x384xf32> -> vector<32x384xf32>
    %165 = arith.addf %163, %164 : vector<32x384xf32>
    %cst_80 = arith.constant dense<0.000000e+00> : vector<32x384xf32>
    %166 = tpu.matmul %155, %162, %cst_80 {dimension_numbers = #tpu.dot_dimension_numbers<[1], [0], [0], [1], [0, 0, 1, 1], [], []>} : vector<32x32xbf16>, vector<32x384xbf16>, vector<32x384xf32> -> vector<32x384xf32>
    %167 = arith.addf %165, %166 : vector<32x384xf32>
    %c3 = arith.constant 3 : index
    %c0_81 = arith.constant 0 : index
    %c0_82 = arith.constant 0 : index
    %c0_83 = arith.constant 0 : index
    %168 = vector.load %arg5[%c3, %c0_81, %c0_82, %c0_83] : memref<4x3x32x1xf32, #tpu.memory_space<vmem>>, vector<1x1x32x1xf32>
    %169 = vector.shape_cast %168 : vector<1x1x32x1xf32> to vector<32x1xf32>
    %c3_84 = arith.constant 3 : index
    %c1_85 = arith.constant 1 : index
    %c0_86 = arith.constant 0 : index
    %c0_87 = arith.constant 0 : index
    %170 = vector.load %arg5[%c3_84, %c1_85, %c0_86, %c0_87] : memref<4x3x32x1xf32, #tpu.memory_space<vmem>>, vector<1x1x32x1xf32>
    %171 = vector.shape_cast %170 : vector<1x1x32x1xf32> to vector<32x1xf32>
    %c3_88 = arith.constant 3 : index
    %c2_89 = arith.constant 2 : index
    %c0_90 = arith.constant 0 : index
    %c0_91 = arith.constant 0 : index
    %172 = vector.load %arg5[%c3_88, %c2_89, %c0_90, %c0_91] : memref<4x3x32x1xf32, #tpu.memory_space<vmem>>, vector<1x1x32x1xf32>
    %173 = vector.shape_cast %172 : vector<1x1x32x1xf32> to vector<32x1xf32>
    %174 = vector.broadcast %169 : vector<32x1xf32> to vector<32x384xf32>
    %175 = arith.addf %167, %174 : vector<32x384xf32>
    %cst_92 = arith.constant dense<0.000000e+00> : vector<384xf32>
    %176 = vector.multi_reduction <add>, %175, %cst_92 [0] : vector<32x384xf32> to vector<384xf32>
    %177 = vector.shape_cast %176 : vector<384xf32> to vector<1x384xf32>
    %cst_93 = arith.constant 3.200000e+01 : f32
    %178 = vector.broadcast %cst_93 : f32 to vector<1x384xf32>
    %179 = arith.divf %177, %178 : vector<1x384xf32>
    %180 = vector.broadcast %179 : vector<1x384xf32> to vector<32x384xf32>
    %181 = arith.subf %175, %180 : vector<32x384xf32>
    %182 = arith.mulf %181, %181 : vector<32x384xf32>
    %cst_94 = arith.constant dense<0.000000e+00> : vector<384xf32>
    %183 = vector.multi_reduction <add>, %182, %cst_94 [0] : vector<32x384xf32> to vector<384xf32>
    %184 = vector.shape_cast %183 : vector<384xf32> to vector<1x384xf32>
    %cst_95 = arith.constant 3.200000e+01 : f32
    %185 = vector.broadcast %cst_95 : f32 to vector<1x384xf32>
    %186 = arith.divf %184, %185 : vector<1x384xf32>
    %cst_96 = arith.constant 9.99999974E-6 : f32
    %187 = vector.broadcast %cst_96 : f32 to vector<1x384xf32>
    %188 = arith.addf %186, %187 : vector<1x384xf32>
    %189 = math.rsqrt %188 : vector<1x384xf32>
    %190 = vector.broadcast %189 : vector<1x384xf32> to vector<32x384xf32>
    %191 = arith.mulf %181, %190 : vector<32x384xf32>
    %192 = vector.broadcast %171 : vector<32x1xf32> to vector<32x384xf32>
    %193 = arith.mulf %191, %192 : vector<32x384xf32>
    %194 = vector.broadcast %173 : vector<32x1xf32> to vector<32x384xf32>
    %195 = arith.addf %193, %194 : vector<32x384xf32>
    %cst_97 = arith.constant 5.000000e-01 : f32
    %196 = vector.broadcast %cst_97 : f32 to vector<32x384xf32>
    %197 = arith.mulf %196, %195 : vector<32x384xf32>
    %cst_98 = arith.constant 0.707106769 : f32
    %198 = vector.broadcast %cst_98 : f32 to vector<32x384xf32>
    %199 = arith.mulf %195, %198 : vector<32x384xf32>
    %200 = math.erf %199 : vector<32x384xf32>
    %cst_99 = arith.constant 1.000000e+00 : f32
    %201 = vector.broadcast %cst_99 : f32 to vector<32x384xf32>
    %202 = arith.addf %201, %200 : vector<32x384xf32>
    %203 = arith.mulf %197, %202 : vector<32x384xf32>
    %c0_100 = arith.constant 0 : index
    %c0_101 = arith.constant 0 : index
    %204 = vector.load %arg4[%c0_100, %c0_101] : memref<8x32xf32, #tpu.memory_space<vmem>>, vector<8x32xf32>
    %205 = arith.truncf %204 : vector<8x32xf32> to vector<8x32xbf16>
    %206 = arith.extf %205 : vector<8x32xbf16> to vector<8x32xf32>
    %207 = arith.subf %204, %206 : vector<8x32xf32>
    %208 = arith.truncf %207 : vector<8x32xf32> to vector<8x32xbf16>
    %209 = arith.truncf %203 : vector<32x384xf32> to vector<32x384xbf16>
    %210 = arith.extf %209 : vector<32x384xbf16> to vector<32x384xf32>
    %211 = arith.subf %203, %210 : vector<32x384xf32>
    %212 = arith.truncf %211 : vector<32x384xf32> to vector<32x384xbf16>
    %cst_102 = arith.constant dense<0.000000e+00> : vector<8x384xf32>
    %213 = tpu.matmul %205, %209, %cst_102 {dimension_numbers = #tpu.dot_dimension_numbers<[1], [0], [0], [1], [0, 0, 1, 1], [], []>} : vector<8x32xbf16>, vector<32x384xbf16>, vector<8x384xf32> -> vector<8x384xf32>
    %cst_103 = arith.constant dense<0.000000e+00> : vector<8x384xf32>
    %214 = tpu.matmul %208, %209, %cst_103 {dimension_numbers = #tpu.dot_dimension_numbers<[1], [0], [0], [1], [0, 0, 1, 1], [], []>} : vector<8x32xbf16>, vector<32x384xbf16>, vector<8x384xf32> -> vector<8x384xf32>
    %215 = arith.addf %213, %214 : vector<8x384xf32>
    %cst_104 = arith.constant dense<0.000000e+00> : vector<8x384xf32>
    %216 = tpu.matmul %205, %212, %cst_104 {dimension_numbers = #tpu.dot_dimension_numbers<[1], [0], [0], [1], [0, 0, 1, 1], [], []>} : vector<8x32xbf16>, vector<32x384xbf16>, vector<8x384xf32> -> vector<8x384xf32>
    %217 = arith.addf %215, %216 : vector<8x384xf32>
    %c0_105 = arith.constant 0 : index
    %c0_106 = arith.constant 0 : index
    %218 = vector.load %arg6[%c0_105, %c0_106] : memref<8x1xf32, #tpu.memory_space<vmem>>, vector<8x1xf32>
    %219 = vector.broadcast %218 : vector<8x1xf32> to vector<8x384xf32>
    %220 = arith.addf %217, %219 : vector<8x384xf32>
    %221 = tpu.transpose %220, [1, 0] : vector<8x384xf32> -> vector<384x8xf32>
    %c0_107 = arith.constant 0 : index
    %c0_108 = arith.constant 0 : index
    %222 = vector.load %arg7[%c0_107, %c0_108] : memref<384x8xf32, #tpu.memory_space<vmem>>, vector<384x8xf32>
    tpu.vector_store %arg7[%c0_107, %c0_108], %221 {strides = array<i32>} : memref<384x8xf32, #tpu.memory_space<vmem>>, vector<384x8xf32>,
    return
  }
  func.func @transform_0(%arg0: i32) -> (i32, i32) {
    %c0_i32 = arith.constant 0 : i32
    %c0_i32_0 = arith.constant 0 : i32
    return %arg0, %c0_i32 : i32, i32
  }
  func.func @transform_1(%arg0: i32) -> (i32, i32) {
    %c0_i32 = arith.constant 0 : i32
    %c0_i32_0 = arith.constant 0 : i32
    %c0_i32_1 = arith.constant 0 : i32
    return %c0_i32, %c0_i32_0 : i32, i32
  }
  func.func @transform_2(%arg0: i32) -> (i32, i32, i32) {
    %c0_i32 = arith.constant 0 : i32
    %c0_i32_0 = arith.constant 0 : i32
    %c0_i32_1 = arith.constant 0 : i32
    %c0_i32_2 = arith.constant 0 : i32
    return %c0_i32, %c0_i32_0, %c0_i32_1 : i32, i32, i32
  }
  func.func @transform_3(%arg0: i32) -> (i32, i32) {
    %c0_i32 = arith.constant 0 : i32
    %c0_i32_0 = arith.constant 0 : i32
    %c0_i32_1 = arith.constant 0 : i32
    return %c0_i32, %c0_i32_0 : i32, i32
  }
  func.func @transform_4(%arg0: i32) -> (i32, i32, i32, i32) {
    %c0_i32 = arith.constant 0 : i32
    %c0_i32_0 = arith.constant 0 : i32
    %c0_i32_1 = arith.constant 0 : i32
    %c0_i32_2 = arith.constant 0 : i32
    %c0_i32_3 = arith.constant 0 : i32
    return %c0_i32, %c0_i32_0, %c0_i32_1, %c0_i32_2 : i32, i32, i32, i32
  }
  func.func @transform_5(%arg0: i32) -> (i32, i32) {
    %c0_i32 = arith.constant 0 : i32
    %c0_i32_0 = arith.constant 0 : i32
    %c0_i32_1 = arith.constant 0 : i32
    return %c0_i32, %c0_i32_0 : i32, i32
  }
  func.func @transform_6(%arg0: i32) -> (i32, i32) {
    %c0_i32 = arith.constant 0 : i32
    %c0_i32_0 = arith.constant 0 : i32
    return %arg0, %c0_i32 : i32, i32
  }
}

</mosaic_0001>

<llo_original>
// kernel: tpu_custom_call.1
$region0: #{tpu_custom_call.1}
  #allocation0 [shape = 'u32[]', space=smem, size = 0x4, offset = 0x4, fixed_abs, tag = 'smem constant byte address 0x4 - core index']
  #allocation1 [shape = 'u32[144,128]{1,0:T(1,128)}', space=vmem, size = 0x12000, scoped, tag = 'internal scratch']
  %s0 = inlined_call_operand.vmem [shape: f32[384,6], index: 0, kind: input, shape index: {}]
  %s1 = inlined_call_operand.vmem [shape: f32[32,6], index: 1, kind: input, shape index: {}]
  %s2 = inlined_call_operand.vmem [shape: f32[3,32,32], index: 2, kind: input, shape index: {}]
  %s3 = inlined_call_operand.vmem [shape: f32[8,32], index: 3, kind: input, shape index: {}]
  %s4 = inlined_call_operand.vmem [shape: f32[4,3,32,1], index: 4, kind: input, shape index: {}]
  %s5 = inlined_call_operand.vmem [shape: f32[8,1], index: 5, kind: input, shape index: {}]
  %s6 = inlined_call_operand.vmem [shape: f32[384,8], index: 6, kind: output, shape index: {}]
  %s7 = sld [smem:[#allocation0]]
  $region34: #{tpu_custom_call.1} parent=0
    _
  %s9 = ssub.s32 1, %s7
  %s10 = scalar_select 0, %s9, %s7
  // Predicated region
  $region2: #{tpu_custom_call.1} parent=0 // pred_check
    _
  $region3: #{tpu_custom_call.1} parent=0 // pred_check_branch
    %12 = sbr.rel (0) target = $region5
  $region4: #{tpu_custom_call.1} parent=0 // pred_region
    _
  $region5: #{tpu_custom_call.1} parent=0 // pred_fallthru
    _
  // Predicated region
  $region6: #{tpu_custom_call.1} parent=0 // pred_check
    _
  $region7: #{tpu_custom_call.1} parent=0 // pred_check_branch
    %14 = sbr.rel (0) target = $region9
  $region8: #{tpu_custom_call.1} parent=0 // pred_region
    _
  $region9: #{tpu_custom_call.1} parent=0 // pred_fallthru
    _
  // Predicated region
  $region10: #{tpu_custom_call.1} parent=0 // pred_check
    _
  $region11: #{tpu_custom_call.1} parent=0 // pred_check_branch
    %16 = sbr.rel (0) target = $region13
  $region12: #{tpu_custom_call.1} parent=0 // pred_region
    _
  $region13: #{tpu_custom_call.1} parent=0 // pred_fallthru
    _
  // Predicated region
  $region14: #{tpu_custom_call.1} parent=0 // pred_check
    _
  $region15: #{tpu_custom_call.1} parent=0 // pred_check_branch
    %18 = sbr.rel (0) target = $region17
  $region16: #{tpu_custom_call.1} parent=0 // pred_region
    _
  $region17: #{tpu_custom_call.1} parent=0 // pred_fallthru
    _
  // Predicated region
  $region18: #{tpu_custom_call.1} parent=0 // pred_check
    _
  $region19: #{tpu_custom_call.1} parent=0 // pred_check_branch
    %20 = sbr.rel (0) target = $region21
  $region20: #{tpu_custom_call.1} parent=0 // pred_region
    _
  $region21: #{tpu_custom_call.1} parent=0 // pred_fallthru
    _
  // Predicated region
  $region22: #{tpu_custom_call.1} parent=0 // pred_check
    _
  $region23: #{tpu_custom_call.1} parent=0 // pred_check_branch
    %22 = sbr.rel (0) target = $region25
  $region24: #{tpu_custom_call.1} parent=0 // pred_region
    _
  $region25: #{tpu_custom_call.1} parent=0 // pred_fallthru
    _
  %v24 = vld [vmem:[%s1] sm:$0xff]
  %v25 = vld [vmem:[%s1 + $0x8] sm:$0xff]
  %v26 = vld [vmem:[%s1 + $0x10] sm:$0xff]
  %v27 = vld [vmem:[%s1 + $0x18] sm:$0xff]
  %v28 = vld [vmem:[%s0] sm:$0xff]
  %v29 = vld [vmem:[%s0 + $0x8] sm:$0xff]
  %v30 = vld [vmem:[%s0 + $0x10] sm:$0xff]
  %v31 = vld [vmem:[%s0 + $0x18] sm:$0xff]
  %v32 = vld [vmem:[%s0 + $0x20] sm:$0xff]
  %v33 = vld [vmem:[%s0 + $0x28] sm:$0xff]
  %v34 = vld [vmem:[%s0 + $0x30] sm:$0xff]
  %v35 = vld [vmem:[%s0 + $0x38] sm:$0xff]
  %v36 = vld [vmem:[%s0 + $0x40] sm:$0xff]
  %v37 = vld [vmem:[%s0 + $0x48] sm:$0xff]
  %v38 = vld [vmem:[%s0 + $0x50] sm:$0xff]
  %v39 = vld [vmem:[%s0 + $0x58] sm:$0xff]
  %v40 = vld [vmem:[%s0 + $0x60] sm:$0xff]
  %v41 = vld [vmem:[%s0 + $0x68] sm:$0xff]
  %v42 = vld [vmem:[%s0 + $0x70] sm:$0xff]
  %v43 = vld [vmem:[%s0 + $0x78] sm:$0xff]
  %v44 = vld [vmem:[%s0 + $0x80] sm:$0xff]
  %v45 = vld [vmem:[%s0 + $0x88] sm:$0xff]
  %v46 = vld [vmem:[%s0 + $0x90] sm:$0xff]
  %v47 = vld [vmem:[%s0 + $0x98] sm:$0xff]
  %v48 = vld [vmem:[%s0 + $0xa0] sm:$0xff]
  %v49 = vld [vmem:[%s0 + $0xa8] sm:$0xff]
  %v50 = vld [vmem:[%s0 + $0xb0] sm:$0xff]
  %v51 = vld [vmem:[%s0 + $0xb8] sm:$0xff]
  %v52 = vld [vmem:[%s0 + $0xc0] sm:$0xff]
  %v53 = vld [vmem:[%s0 + $0xc8] sm:$0xff]
  %v54 = vld [vmem:[%s0 + $0xd0] sm:$0xff]
  %v55 = vld [vmem:[%s0 + $0xd8] sm:$0xff]
  %v56 = vld [vmem:[%s0 + $0xe0] sm:$0xff]
  %v57 = vld [vmem:[%s0 + $0xe8] sm:$0xff]
  %v58 = vld [vmem:[%s0 + $0xf0] sm:$0xff]
  %v59 = vld [vmem:[%s0 + $0xf8] sm:$0xff]
  %v60 = vld [vmem:[%s0 + $0x100] sm:$0xff]
  %v61 = vld [vmem:[%s0 + $0x108] sm:$0xff]
  %v62 = vld [vmem:[%s0 + $0x110] sm:$0xff]
  %v63 = vld [vmem:[%s0 + $0x118] sm:$0xff]
  %v64 = vld [vmem:[%s0 + $0x120] sm:$0xff]
  %v65 = vld [vmem:[%s0 + $0x128] sm:$0xff]
  %v66 = vld [vmem:[%s0 + $0x130] sm:$0xff]
  %v67 = vld [vmem:[%s0 + $0x138] sm:$0xff]
  %v68 = vld [vmem:[%s0 + $0x140] sm:$0xff]
  %v69 = vld [vmem:[%s0 + $0x148] sm:$0xff]
  %v70 = vld [vmem:[%s0 + $0x150] sm:$0xff]
  %v71 = vld [vmem:[%s0 + $0x158] sm:$0xff]
  %v72 = vld [vmem:[%s0 + $0x160] sm:$0xff]
  %v73 = vld [vmem:[%s0 + $0x168] sm:$0xff]
  %v74 = vld [vmem:[%s0 + $0x170] sm:$0xff]
  %v75 = vld [vmem:[%s0 + $0x178] sm:$0xff]
  %v76 = vpack.c.bf16 %v25, %v24
  %v77 = vpack.c.bf16 %v27, %v26
  %v78 = vunpack.c.l.bf16 %v76
  %v79 = vunpack.c.h.bf16 %v76
  %v80 = vunpack.c.l.bf16 %v77
  %v81 = vunpack.c.h.bf16 %v77
  %v82 = vsub.f32 %v24, %v78
  %v83 = vsub.f32 %v25, %v79
  %v84 = vsub.f32 %v26, %v80
  %v85 = vsub.f32 %v27, %v81
  %v86 = vpack.c.bf16 %v83, %v82
  %v87 = vpack.c.bf16 %v85, %v84
  %v88 = vpack.c.bf16 %v29, %v28
  %v89 = vpack.c.bf16 %v31, %v30
  %v90 = vpack.c.bf16 %v33, %v32
  %v91 = vpack.c.bf16 %v35, %v34
  %v92 = vpack.c.bf16 %v37, %v36
  %v93 = vpack.c.bf16 %v39, %v38
  %v94 = vpack.c.bf16 %v41, %v40
  %v95 = vpack.c.bf16 %v43, %v42
  %v96 = vpack.c.bf16 %v45, %v44
  %v97 = vpack.c.bf16 %v47, %v46
  %v98 = vpack.c.bf16 %v49, %v48
  %v99 = vpack.c.bf16 %v51, %v50
  %v100 = vpack.c.bf16 %v53, %v52
  %v101 = vpack.c.bf16 %v55, %v54
  %v102 = vpack.c.bf16 %v57, %v56
  %v103 = vpack.c.bf16 %v59, %v58
  %v104 = vpack.c.bf16 %v61, %v60
  %v105 = vpack.c.bf16 %v63, %v62
  %v106 = vpack.c.bf16 %v65, %v64
  %v107 = vpack.c.bf16 %v67, %v66
  %v108 = vpack.c.bf16 %v69, %v68
  %v109 = vpack.c.bf16 %v71, %v70
  %v110 = vpack.c.bf16 %v73, %v72
  %v111 = vpack.c.bf16 %v75, %v74
  %v112 = vunpack.c.l.bf16 %v88
  %v113 = vunpack.c.h.bf16 %v88
  %v114 = vunpack.c.l.bf16 %v89
  %v115 = vunpack.c.h.bf16 %v89
  %v116 = vunpack.c.l.bf16 %v90
  %v117 = vunpack.c.h.bf16 %v90
  %v118 = vunpack.c.l.bf16 %v91
  %v119 = vunpack.c.h.bf16 %v91
  %v120 = vunpack.c.l.bf16 %v92
  %v121 = vunpack.c.h.bf16 %v92
  %v122 = vunpack.c.l.bf16 %v93
  %v123 = vunpack.c.h.bf16 %v93
  %v124 = vunpack.c.l.bf16 %v94
  %v125 = vunpack.c.h.bf16 %v94
  %v126 = vunpack.c.l.bf16 %v95
  %v127 = vunpack.c.h.bf16 %v95
  %v128 = vunpack.c.l.bf16 %v96
  %v129 = vunpack.c.h.bf16 %v96
  %v130 = vunpack.c.l.bf16 %v97
  %v131 = vunpack.c.h.bf16 %v97
  %v132 = vunpack.c.l.bf16 %v98
  %v133 = vunpack.c.h.bf16 %v98
  %v134 = vunpack.c.l.bf16 %v99
  %v135 = vunpack.c.h.bf16 %v99
  %v136 = vunpack.c.l.bf16 %v100
  %v137 = vunpack.c.h.bf16 %v100
  %v138 = vunpack.c.l.bf16 %v101
  %v139 = vunpack.c.h.bf16 %v101
  %v140 = vunpack.c.l.bf16 %v102
  %v141 = vunpack.c.h.bf16 %v102
  %v142 = vunpack.c.l.bf16 %v103
  %v143 = vunpack.c.h.bf16 %v103
  %v144 = vunpack.c.l.bf16 %v104
  %v145 = vunpack.c.h.bf16 %v104
  %v146 = vunpack.c.l.bf16 %v105
  %v147 = vunpack.c.h.bf16 %v105
  %v148 = vunpack.c.l.bf16 %v106
  %v149 = vunpack.c.h.bf16 %v106
  %v150 = vunpack.c.l.bf16 %v107
  %v151 = vunpack.c.h.bf16 %v107
  %v152 = vunpack.c.l.bf16 %v108
  %v153 = vunpack.c.h.bf16 %v108
  %v154 = vunpack.c.l.bf16 %v109
  %v155 = vunpack.c.h.bf16 %v109
  %v156 = vunpack.c.l.bf16 %v110
  %v157 = vunpack.c.h.bf16 %v110
  %v158 = vunpack.c.l.bf16 %v111
  %v159 = vunpack.c.h.bf16 %v111
  %v160 = vsub.f32 %v28, %v112
  %v161 = vsub.f32 %v29, %v113
  %v162 = vsub.f32 %v30, %v114
  %v163 = vsub.f32 %v31, %v115
  %v164 = vsub.f32 %v32, %v116
  %v165 = vsub.f32 %v33, %v117
  %v166 = vsub.f32 %v34, %v118
  %v167 = vsub.f32 %v35, %v119
  %v168 = vsub.f32 %v36, %v120
  %v169 = vsub.f32 %v37, %v121
  %v170 = vsub.f32 %v38, %v122
  %v171 = vsub.f32 %v39, %v123
  %v172 = vsub.f32 %v40, %v124
  %v173 = vsub.f32 %v41, %v125
  %v174 = vsub.f32 %v42, %v126
  %v175 = vsub.f32 %v43, %v127
  %v176 = vsub.f32 %v44, %v128
  %v177 = vsub.f32 %v45, %v129
  %v178 = vsub.f32 %v46, %v130
  %v179 = vsub.f32 %v47, %v131
  %v180 = vsub.f32 %v48, %v132
  %v181 = vsub.f32 %v49, %v133
  %v182 = vsub.f32 %v50, %v134
  %v183 = vsub.f32 %v51, %v135
  %v184 = vsub.f32 %v52, %v136
  %v185 = vsub.f32 %v53, %v137
  %v186 = vsub.f32 %v54, %v138
  %v187 = vsub.f32 %v55, %v139
  %v188 = vsub.f32 %v56, %v140
  %v189 = vsub.f32 %v57, %v141
  %v190 = vsub.f32 %v58, %v142
  %v191 = vsub.f32 %v59, %v143
  %v192 = vsub.f32 %v60, %v144
  %v193 = vsub.f32 %v61, %v145
  %v194 = vsub.f32 %v62, %v146
  %v195 = vsub.f32 %v63, %v147
  %v196 = vsub.f32 %v64, %v148
  %v197 = vsub.f32 %v65, %v149
  %v198 = vsub.f32 %v66, %v150
  %v199 = vsub.f32 %v67, %v151
  %v200 = vsub.f32 %v68, %v152
  %v201 = vsub.f32 %v69, %v153
  %v202 = vsub.f32 %v70, %v154
  %v203 = vsub.f32 %v71, %v155
  %v204 = vsub.f32 %v72, %v156
  %v205 = vsub.f32 %v73, %v157
  %v206 = vsub.f32 %v74, %v158
  %v207 = vsub.f32 %v75, %v159
  %v208 = vpack.c.bf16 %v161, %v160
  %v209 = vpack.c.bf16 %v163, %v162
  %v210 = vpack.c.bf16 %v165, %v164
  %v211 = vpack.c.bf16 %v167, %v166
  %v212 = vpack.c.bf16 %v169, %v168
  %v213 = vpack.c.bf16 %v171, %v170
  %v214 = vpack.c.bf16 %v173, %v172
  %v215 = vpack.c.bf16 %v175, %v174
  %v216 = vpack.c.bf16 %v177, %v176
  %v217 = vpack.c.bf16 %v179, %v178
  %v218 = vpack.c.bf16 %v181, %v180
  %v219 = vpack.c.bf16 %v183, %v182
  %v220 = vpack.c.bf16 %v185, %v184
  %v221 = vpack.c.bf16 %v187, %v186
  %v222 = vpack.c.bf16 %v189, %v188
  %v223 = vpack.c.bf16 %v191, %v190
  %v224 = vpack.c.bf16 %v193, %v192
  %v225 = vpack.c.bf16 %v195, %v194
  %v226 = vpack.c.bf16 %v197, %v196
  %v227 = vpack.c.bf16 %v199, %v198
  %v228 = vpack.c.bf16 %v201, %v200
  %v229 = vpack.c.bf16 %v203, %v202
  %v230 = vpack.c.bf16 %v205, %v204
  %v231 = vpack.c.bf16 %v207, %v206
  %vm232 = vcmask 48128
  %v234 = vsel %vm232, %v86, 0
  %v237 = vsel %vm232, %v87, 0
  %v240 = vsel %vm232, %v88, 0
  %v243 = vsel %vm232, %v89, 0
  %v246 = vsel %vm232, %v90, 0
  %v249 = vsel %vm232, %v91, 0
  %v252 = vsel %vm232, %v92, 0
  %v255 = vsel %vm232, %v93, 0
  %v258 = vsel %vm232, %v94, 0
  %v261 = vsel %vm232, %v95, 0
  %v264 = vsel %vm232, %v96, 0
  %v267 = vsel %vm232, %v97, 0
  %v270 = vsel %vm232, %v98, 0
  %v273 = vsel %vm232, %v99, 0
  %v276 = vsel %vm232, %v100, 0
  %v279 = vsel %vm232, %v101, 0
  %v282 = vsel %vm232, %v102, 0
  %v285 = vsel %vm232, %v103, 0
  %v288 = vsel %vm232, %v104, 0
  %v291 = vsel %vm232, %v105, 0
  %v294 = vsel %vm232, %v106, 0
  %v297 = vsel %vm232, %v107, 0
  %v300 = vsel %vm232, %v108, 0
  %v303 = vsel %vm232, %v109, 0
  %v306 = vsel %vm232, %v110, 0
  %v309 = vsel %vm232, %v111, 0
  %311 = vmatprep.subr.bf16.mxu0 0
  %312 = vmatpush1.bf16.xpose.msra.mxu0 %v240
  %313 = vmatprep.subr.bf16.mxu0 0
  %314 = vmatpush1.bf16.xpose.msra.mxu0 %v243
  %315 = vmatprep.subr.bf16.mxu0 0
  %316 = vmatpush1.bf16.xpose.msra.mxu0 %v246
  %317 = vmatprep.subr.bf16.mxu0 0
  %318 = vmatpush1.bf16.xpose.msra.mxu0 %v249
  %319 = vmatprep.subr.bf16.mxu0 0
  %320 = vmatpush1.bf16.xpose.msra.mxu0 %v252
  %321 = vmatprep.subr.bf16.mxu0 0
  %322 = vmatpush1.bf16.xpose.msra.mxu0 %v255
  %323 = vmatprep.subr.bf16.mxu0 0
  %324 = vmatpush1.bf16.xpose.msra.mxu0 %v258
  %325 = vmatprep.subr.bf16.mxu0 0
  %326 = vmatpush1.bf16.xpose.msra.mxu0 %v261
  %327 = vmatprep.subr.bf16.mxu0 0
  %328 = vmatpush1.bf16.xpose.msra.mxu0 %v264
  %329 = vmatprep.subr.bf16.mxu0 0
  %330 = vmatpush1.bf16.xpose.msra.mxu0 %v267
  %331 = vmatprep.subr.bf16.mxu0 0
  %332 = vmatpush1.bf16.xpose.msra.mxu0 %v270
  %333 = vmatprep.subr.bf16.mxu0 0
  %334 = vmatpush1.bf16.xpose.msra.mxu0 %v273
  %335 = vmatprep.subr.bf16.mxu0 0
  %336 = vmatpush1.bf16.xpose.msra.mxu0 %v276
  %337 = vmatprep.subr.bf16.mxu0 0
  %338 = vmatpush1.bf16.xpose.msra.mxu0 %v279
  %339 = vmatprep.subr.bf16.mxu0 0
  %340 = vmatpush1.bf16.xpose.msra.mxu0 %v282
  %341 = vmatprep.subr.bf16.mxu0 0
  %342 = vmatpush1.bf16.xpose.msra.mxu0 %v285
  %343 = vmatprep.mubr.bf16.mxu0 0
  %344 = vmatmul.mubr.bf16.gmra.mrb[0].mxu0 %v234
  %v345 = vpop.f32.mrb[0].mxu0
  %v346 = vadd.f32 0.0, %v345
  %v347 = vpop.f32.mrb[0].mxu0
  %v348 = vadd.f32 0.0, %v347
  %v349 = vpop.f32.mrb[0].mxu0
  %v350 = vadd.f32 0.0, %v349
  %v351 = vpop.f32.mrb[0].mxu0
  %v352 = vadd.f32 0.0, %v351
  %353 = vmatprep.mubr.bf16.mxu0 0
  %354 = vmatmul.mubr.bf16.gmra.mrb[0].mxu0 %v237
  %v355 = vpop.f32.mrb[0].mxu0
  %v356 = vadd.f32 0.0, %v355
  %v357 = vpop.f32.mrb[0].mxu0
  %v358 = vadd.f32 0.0, %v357
  %v359 = vpop.f32.mrb[0].mxu0
  %v360 = vadd.f32 0.0, %v359
  %v361 = vpop.f32.mrb[0].mxu0
  %v362 = vadd.f32 0.0, %v361
  %363 = vdwg.mxu0
  %364 = vmatprep.subr.bf16.mxu0 0
  %365 = vmatpush1.bf16.xpose.msra.mxu0 %v288
  %366 = vmatprep.subr.bf16.mxu0 0
  %367 = vmatpush1.bf16.xpose.msra.mxu0 %v291
  %368 = vmatprep.subr.bf16.mxu0 0
  %369 = vmatpush1.bf16.xpose.msra.mxu0 %v294
  %370 = vmatprep.subr.bf16.mxu0 0
  %371 = vmatpush1.bf16.xpose.msra.mxu0 %v297
  %372 = vmatprep.subr.bf16.mxu0 0
  %373 = vmatpush1.bf16.xpose.msra.mxu0 %v300
  %374 = vmatprep.subr.bf16.mxu0 0
  %375 = vmatpush1.bf16.xpose.msra.mxu0 %v303
  %376 = vmatprep.subr.bf16.mxu0 0
  %377 = vmatpush1.bf16.xpose.msra.mxu0 %v306
  %378 = vmatprep.subr.bf16.mxu0 0
  %379 = vmatpush1.bf16.xpose.msra.mxu0 %v309
  %380 = vmatprep.subr.bf16.mxu0 0
  %381 = vmatpush1.bf16.xpose.msra.mxu0 0
  %382 = vmatprep.subr.bf16.mxu0 0
  %383 = vmatpush1.bf16.xpose.msra.mxu0 0
  %384 = vmatprep.subr.bf16.mxu0 0
  %385 = vmatpush1.bf16.xpose.msra.mxu0 0
  %386 = vmatprep.subr.bf16.mxu0 0
  %387 = vmatpush1.bf16.xpose.msra.mxu0 0
  %388 = vmatprep.subr.bf16.mxu0 0
  %389 = vmatpush1.bf16.xpose.msra.mxu0 0
  %390 = vmatprep.subr.bf16.mxu0 0
  %391 = vmatpush1.bf16.xpose.msra.mxu0 0
  %392 = vmatprep.subr.bf16.mxu0 0
  %393 = vmatpush1.bf16.xpose.msra.mxu0 0
  %394 = vmatprep.subr.bf16.mxu0 0
  %395 = vmatpush1.bf16.xpose.msra.mxu0 0
  %396 = vmatprep.mubr.bf16.mxu0 0
  %397 = vmatmul.mubr.bf16.gmra.mrb[0].mxu0 %v234
  %v398 = vpop.f32.mrb[0].mxu0
  %v399 = vadd.f32 0.0, %v398
  %v400 = vpop.f32.mrb[0].mxu0
  %v401 = vpop.f32.mrb[0].mxu0
  %v402 = vadd.f32 0.0, %v401
  %v403 = vpop.f32.mrb[0].mxu0
  %404 = vmatprep.mubr.bf16.mxu0 0
  %405 = vmatmul.mubr.bf16.gmra.mrb[0].mxu0 %v237
  %v406 = vpop.f32.mrb[0].mxu0
  %v407 = vadd.f32 0.0, %v406
  %v408 = vpop.f32.mrb[0].mxu0
  %v409 = vpop.f32.mrb[0].mxu0
  %v410 = vadd.f32 0.0, %v409
  %v411 = vpop.f32.mrb[0].mxu0
  %412 = vdwg.mxu0
  %v414 = vsel %vm232, %v76, 0
  %v417 = vsel %vm232, %v77, 0
  %419 = vmatprep.subr.bf16.mxu0 0
  %420 = vmatpush1.bf16.xpose.msra.mxu0 %v240
  %421 = vmatprep.subr.bf16.mxu0 0
  %422 = vmatpush1.bf16.xpose.msra.mxu0 %v243
  %423 = vmatprep.subr.bf16.mxu0 0
  %424 = vmatpush1.bf16.xpose.msra.mxu0 %v246
  %425 = vmatprep.subr.bf16.mxu0 0
  %426 = vmatpush1.bf16.xpose.msra.mxu0 %v249
  %427 = vmatprep.subr.bf16.mxu0 0
  %428 = vmatpush1.bf16.xpose.msra.mxu0 %v252
  %429 = vmatprep.subr.bf16.mxu0 0
  %430 = vmatpush1.bf16.xpose.msra.mxu0 %v255
  %431 = vmatprep.subr.bf16.mxu0 0
  %432 = vmatpush1.bf16.xpose.msra.mxu0 %v258
  %433 = vmatprep.subr.bf16.mxu0 0
  %434 = vmatpush1.bf16.xpose.msra.mxu0 %v261
  %435 = vmatprep.subr.bf16.mxu0 0
  %436 = vmatpush1.bf16.xpose.msra.mxu0 %v264
  %437 = vmatprep.subr.bf16.mxu0 0
  %438 = vmatpush1.bf16.xpose.msra.mxu0 %v267
  %439 = vmatprep.subr.bf16.mxu0 0
  %440 = vmatpush1.bf16.xpose.msra.mxu0 %v270
  %441 = vmatprep.subr.bf16.mxu0 0
  %442 = vmatpush1.bf16.xpose.msra.mxu0 %v273
  %443 = vmatprep.subr.bf16.mxu0 0
  %444 = vmatpush1.bf16.xpose.msra.mxu0 %v276
  %445 = vmatprep.subr.bf16.mxu0 0
  %446 = vmatpush1.bf16.xpose.msra.mxu0 %v279
  %447 = vmatprep.subr.bf16.mxu0 0
  %448 = vmatpush1.bf16.xpose.msra.mxu0 %v282
  %449 = vmatprep.subr.bf16.mxu0 0
  %450 = vmatpush1.bf16.xpose.msra.mxu0 %v285
  %451 = vmatprep.mubr.bf16.mxu0 0
  %452 = vmatmul.mubr.bf16.gmra.mrb[0].mxu0 %v414
  %v453 = vpop.f32.mrb[0].mxu0
  %v454 = vadd.f32 %v346, %v453
  %v455 = vpop.f32.mrb[0].mxu0
  %v456 = vadd.f32 %v348, %v455
  %v457 = vpop.f32.mrb[0].mxu0
  %v458 = vadd.f32 %v350, %v457
  %v459 = vpop.f32.mrb[0].mxu0
  %v460 = vadd.f32 %v352, %v459
  %461 = vmatprep.mubr.bf16.mxu0 0
  %462 = vmatmul.mubr.bf16.gmra.mrb[0].mxu0 %v417
  %v463 = vpop.f32.mrb[0].mxu0
  %v464 = vadd.f32 %v356, %v463
  %v465 = vpop.f32.mrb[0].mxu0
  %v466 = vadd.f32 %v358, %v465
  %v467 = vpop.f32.mrb[0].mxu0
  %v468 = vadd.f32 %v360, %v467
  %v469 = vpop.f32.mrb[0].mxu0
  %v470 = vadd.f32 %v362, %v469
  %471 = vdwg.mxu0
  %472 = vmatprep.subr.bf16.mxu0 0
  %473 = vmatpush1.bf16.xpose.msra.mxu0 %v288
  %474 = vmatprep.subr.bf16.mxu0 0
  %475 = vmatpush1.bf16.xpose.msra.mxu0 %v291
  %476 = vmatprep.subr.bf16.mxu0 0
  %477 = vmatpush1.bf16.xpose.msra.mxu0 %v294
  %478 = vmatprep.subr.bf16.mxu0 0
  %479 = vmatpush1.bf16.xpose.msra.mxu0 %v297
  %480 = vmatprep.subr.bf16.mxu0 0
  %481 = vmatpush1.bf16.xpose.msra.mxu0 %v300
  %482 = vmatprep.subr.bf16.mxu0 0
  %483 = vmatpush1.bf16.xpose.msra.mxu0 %v303
  %484 = vmatprep.subr.bf16.mxu0 0
  %485 = vmatpush1.bf16.xpose.msra.mxu0 %v306
  %486 = vmatprep.subr.bf16.mxu0 0
  %487 = vmatpush1.bf16.xpose.msra.mxu0 %v309
  %488 = vmatprep.subr.bf16.mxu0 0
  %489 = vmatpush1.bf16.xpose.msra.mxu0 0
  %490 = vmatprep.subr.bf16.mxu0 0
  %491 = vmatpush1.bf16.xpose.msra.mxu0 0
  %492 = vmatprep.subr.bf16.mxu0 0
  %493 = vmatpush1.bf16.xpose.msra.mxu0 0
  %494 = vmatprep.subr.bf16.mxu0 0
  %495 = vmatpush1.bf16.xpose.msra.mxu0 0
  %496 = vmatprep.subr.bf16.mxu0 0
  %497 = vmatpush1.bf16.xpose.msra.mxu0 0
  %498 = vmatprep.subr.bf16.mxu0 0
  %499 = vmatpush1.bf16.xpose.msra.mxu0 0
  %500 = vmatprep.subr.bf16.mxu0 0
  %501 = vmatpush1.bf16.xpose.msra.mxu0 0
  %502 = vmatprep.subr.bf16.mxu0 0
  %503 = vmatpush1.bf16.xpose.msra.mxu0 0
  %504 = vmatprep.mubr.bf16.mxu0 0
  %505 = vmatmul.mubr.bf16.gmra.mrb[0].mxu0 %v414
  %v506 = vpop.f32.mrb[0].mxu0
  %v507 = vadd.f32 %v399, %v506
  %v508 = vpop.f32.mrb[0].mxu0
  %v509 = vpop.f32.mrb[0].mxu0
  %v510 = vadd.f32 %v402, %v509
  %v511 = vpop.f32.mrb[0].mxu0
  %512 = vmatprep.mubr.bf16.mxu0 0
  %513 = vmatmul.mubr.bf16.gmra.mrb[0].mxu0 %v417
  %v514 = vpop.f32.mrb[0].mxu0
  %v515 = vadd.f32 %v407, %v514
  %v516 = vpop.f32.mrb[0].mxu0
  %v517 = vpop.f32.mrb[0].mxu0
  %v518 = vadd.f32 %v410, %v517
  %v519 = vpop.f32.mrb[0].mxu0
  %520 = vdwg.mxu0
  %v522 = vsel %vm232, %v208, 0
  %v525 = vsel %vm232, %v209, 0
  %v528 = vsel %vm232, %v210, 0
  %v531 = vsel %vm232, %v211, 0
  %v534 = vsel %vm232, %v212, 0
  %v537 = vsel %vm232, %v213, 0
  %v540 = vsel %vm232, %v214, 0
  %v543 = vsel %vm232, %v215, 0
  %v546 = vsel %vm232, %v216, 0
  %v549 = vsel %vm232, %v217, 0
  %v552 = vsel %vm232, %v218, 0
  %v555 = vsel %vm232, %v219, 0
  %v558 = vsel %vm232, %v220, 0
  %v561 = vsel %vm232, %v221, 0
  %v564 = vsel %vm232, %v222, 0
  %v567 = vsel %vm232, %v223, 0
  %v570 = vsel %vm232, %v224, 0
  %v573 = vsel %vm232, %v225, 0
  %v576 = vsel %vm232, %v226, 0
  %v579 = vsel %vm232, %v227, 0
  %v582 = vsel %vm232, %v228, 0
  %v585 = vsel %vm232, %v229, 0
  %v588 = vsel %vm232, %v230, 0
  %v591 = vsel %vm232, %v231, 0
  %593 = vmatprep.subr.bf16.mxu0 0
  %594 = vmatpush1.bf16.xpose.msra.mxu0 %v522
  %595 = vmatprep.subr.bf16.mxu0 0
  %596 = vmatpush1.bf16.xpose.msra.mxu0 %v525
  %597 = vmatprep.subr.bf16.mxu0 0
  %598 = vmatpush1.bf16.xpose.msra.mxu0 %v528
  %599 = vmatprep.subr.bf16.mxu0 0
  %600 = vmatpush1.bf16.xpose.msra.mxu0 %v531
  %601 = vmatprep.subr.bf16.mxu0 0
  %602 = vmatpush1.bf16.xpose.msra.mxu0 %v534
  %603 = vmatprep.subr.bf16.mxu0 0
  %604 = vmatpush1.bf16.xpose.msra.mxu0 %v537
  %605 = vmatprep.subr.bf16.mxu0 0
  %606 = vmatpush1.bf16.xpose.msra.mxu0 %v540
  %607 = vmatprep.subr.bf16.mxu0 0
  %608 = vmatpush1.bf16.xpose.msra.mxu0 %v543
  %609 = vmatprep.subr.bf16.mxu0 0
  %610 = vmatpush1.bf16.xpose.msra.mxu0 %v546
  %611 = vmatprep.subr.bf16.mxu0 0
  %612 = vmatpush1.bf16.xpose.msra.mxu0 %v549
  %613 = vmatprep.subr.bf16.mxu0 0
  %614 = vmatpush1.bf16.xpose.msra.mxu0 %v552
  %615 = vmatprep.subr.bf16.mxu0 0
  %616 = vmatpush1.bf16.xpose.msra.mxu0 %v555
  %617 = vmatprep.subr.bf16.mxu0 0
  %618 = vmatpush1.bf16.xpose.msra.mxu0 %v558
  %619 = vmatprep.subr.bf16.mxu0 0
  %620 = vmatpush1.bf16.xpose.msra.mxu0 %v561
  %621 = vmatprep.subr.bf16.mxu0 0
  %622 = vmatpush1.bf16.xpose.msra.mxu0 %v564
  %623 = vmatprep.subr.bf16.mxu0 0
  %624 = vmatpush1.bf16.xpose.msra.mxu0 %v567
  %625 = vmatprep.mubr.bf16.mxu0 0
  %626 = vmatmul.mubr.bf16.gmra.mrb[0].mxu0 %v414
  %v627 = vpop.f32.mrb[0].mxu0
  %v628 = vadd.f32 0.0, %v627
  %v629 = vpop.f32.mrb[0].mxu0
  %v630 = vadd.f32 0.0, %v629
  %v631 = vpop.f32.mrb[0].mxu0
  %v632 = vadd.f32 0.0, %v631
  %v633 = vpop.f32.mrb[0].mxu0
  %v634 = vadd.f32 0.0, %v633
  %635 = vmatprep.mubr.bf16.mxu0 0
  %636 = vmatmul.mubr.bf16.gmra.mrb[0].mxu0 %v417
  %v637 = vpop.f32.mrb[0].mxu0
  %v638 = vadd.f32 0.0, %v637
  %v639 = vpop.f32.mrb[0].mxu0
  %v640 = vadd.f32 0.0, %v639
  %v641 = vpop.f32.mrb[0].mxu0
  %v642 = vadd.f32 0.0, %v641
  %v643 = vpop.f32.mrb[0].mxu0
  %v644 = vadd.f32 0.0, %v643
  %645 = vdwg.mxu0
  %646 = vmatprep.subr.bf16.mxu0 0
  %647 = vmatpush1.bf16.xpose.msra.mxu0 %v570
  %648 = vmatprep.subr.bf16.mxu0 0
  %649 = vmatpush1.bf16.xpose.msra.mxu0 %v573
  %650 = vmatprep.subr.bf16.mxu0 0
  %651 = vmatpush1.bf16.xpose.msra.mxu0 %v576
  %652 = vmatprep.subr.bf16.mxu0 0
  %653 = vmatpush1.bf16.xpose.msra.mxu0 %v579
  %654 = vmatprep.subr.bf16.mxu0 0
  %655 = vmatpush1.bf16.xpose.msra.mxu0 %v582
  %656 = vmatprep.subr.bf16.mxu0 0
  %657 = vmatpush1.bf16.xpose.msra.mxu0 %v585
  %658 = vmatprep.subr.bf16.mxu0 0
  %659 = vmatpush1.bf16.xpose.msra.mxu0 %v588
  %660 = vmatprep.subr.bf16.mxu0 0
  %661 = vmatpush1.bf16.xpose.msra.mxu0 %v591
  %662 = vmatprep.subr.bf16.mxu0 0
  %663 = vmatpush1.bf16.xpose.msra.mxu0 0
  %664 = vmatprep.subr.bf16.mxu0 0
  %665 = vmatpush1.bf16.xpose.msra.mxu0 0
  %666 = vmatprep.subr.bf16.mxu0 0
  %667 = vmatpush1.bf16.xpose.msra.mxu0 0
  %668 = vmatprep.subr.bf16.mxu0 0
  %669 = vmatpush1.bf16.xpose.msra.mxu0 0
  %670 = vmatprep.subr.bf16.mxu0 0
  %671 = vmatpush1.bf16.xpose.msra.mxu0 0
  %672 = vmatprep.subr.bf16.mxu0 0
  %673 = vmatpush1.bf16.xpose.msra.mxu0 0
  %674 = vmatprep.subr.bf16.mxu0 0
  %675 = vmatpush1.bf16.xpose.msra.mxu0 0
  %676 = vmatprep.subr.bf16.mxu0 0
  %677 = vmatpush1.bf16.xpose.msra.mxu0 0
  %678 = vmatprep.mubr.bf16.mxu0 0
  %679 = vmatmul.mubr.bf16.gmra.mrb[0].mxu0 %v414
  %v680 = vpop.f32.mrb[0].mxu0
  %v681 = vadd.f32 0.0, %v680
  %v682 = vpop.f32.mrb[0].mxu0
  %v683 = vpop.f32.mrb[0].mxu0
  %v684 = vadd.f32 0.0, %v683
  %v685 = vpop.f32.mrb[0].mxu0
  %686 = vmatprep.mubr.bf16.mxu0 0
  %687 = vmatmul.mubr.bf16.gmra.mrb[0].mxu0 %v417
  %v688 = vpop.f32.mrb[0].mxu0
  %v689 = vadd.f32 0.0, %v688
  %v690 = vpop.f32.mrb[0].mxu0
  %v691 = vpop.f32.mrb[0].mxu0
  %v692 = vadd.f32 0.0, %v691
  %v693 = vpop.f32.mrb[0].mxu0
  %694 = vdwg.mxu0
  %v695 = vadd.f32 %v454, %v628
  %v696 = vadd.f32 %v456, %v630
  %v697 = vadd.f32 %v507, %v681
  %v698 = vadd.f32 %v458, %v632
  %v699 = vadd.f32 %v460, %v634
  %v700 = vadd.f32 %v510, %v684
  %v701 = vadd.f32 %v464, %v638
  %v702 = vadd.f32 %v466, %v640
  %v703 = vadd.f32 %v515, %v689
  %v704 = vadd.f32 %v468, %v642
  %v705 = vadd.f32 %v470, %v644
  %v706 = vadd.f32 %v518, %v692
  %v707 = vld [vmem:[%s4] sm:$0xff]
  %v708 = vld [vmem:[%s4 + $0x8] sm:$0xff]
  %v709 = vld [vmem:[%s4 + $0x10] sm:$0xff]
  %v710 = vld [vmem:[%s4 + $0x18] sm:$0xff]
  %s711 = scalar_lea.vmem %s4, 32
  %v712 = vld [vmem:[%s711] sm:$0xff]
  %v713 = vld [vmem:[%s711 + $0x8] sm:$0xff]
  %v714 = vld [vmem:[%s711 + $0x10] sm:$0xff]
  %v715 = vld [vmem:[%s711 + $0x18] sm:$0xff]
  %s716 = scalar_lea.vmem %s4, 64
  %v717 = vld [vmem:[%s716] sm:$0xff]
  %v718 = vld [vmem:[%s716 + $0x8] sm:$0xff]
  %v719 = vld [vmem:[%s716 + $0x10] sm:$0xff]
  %v720 = vld [vmem:[%s716 + $0x18] sm:$0xff]
  %722 = vset.pattern.permute.xlu0 0
  %723 = vperm.xlu0 %722, %v707
  %v724 = vpop.permute.xlu0 %723
  %727 = vset.pattern.permute.xlu0 0
  %728 = vperm.xlu0 %727, %v708
  %v729 = vpop.permute.xlu0 %728
  %732 = vset.pattern.permute.xlu0 0
  %733 = vperm.xlu0 %732, %v709
  %v734 = vpop.permute.xlu0 %733
  %737 = vset.pattern.permute.xlu0 0
  %738 = vperm.xlu0 %737, %v710
  %v739 = vpop.permute.xlu0 %738
  %v741 = vadd.f32 %v695, %v724
  %v742 = vadd.f32 %v696, %v724
  %v743 = vadd.f32 %v697, %v724
  %v744 = vadd.f32 %v698, %v729
  %v745 = vadd.f32 %v699, %v729
  %v746 = vadd.f32 %v700, %v729
  %v747 = vadd.f32 %v701, %v734
  %v748 = vadd.f32 %v702, %v734
  %v749 = vadd.f32 %v703, %v734
  %v750 = vadd.f32 %v704, %v739
  %v751 = vadd.f32 %v705, %v739
  %v752 = vadd.f32 %v706, %v739
  %v753 = vadd.f32 %v741, %v744
  %v754 = vadd.f32 %v753, %v747
  %v755 = vadd.f32 %v754, %v750
  %v756 = vrot.slane %v755, 4
  %v757 = vadd.f32 %v755, %v756
  %v758 = vrot.slane %v757, 2
  %v759 = vadd.f32 %v757, %v758
  %v760 = vrot.slane %v759, 1
  %v761 = vadd.f32 %v759, %v760
  %v762 = vadd.f32 %v742, %v745
  %v763 = vadd.f32 %v762, %v748
  %v764 = vadd.f32 %v763, %v751
  %v765 = vrot.slane %v764, 4
  %v766 = vadd.f32 %v764, %v765
  %v767 = vrot.slane %v766, 2
  %v768 = vadd.f32 %v766, %v767
  %v769 = vrot.slane %v768, 1
  %v770 = vadd.f32 %v768, %v769
  %v771 = vadd.f32 %v743, %v746
  %v772 = vadd.f32 %v771, %v749
  %v773 = vadd.f32 %v772, %v752
  %v774 = vrot.slane %v773, 4
  %v775 = vadd.f32 %v773, %v774
  %v776 = vrot.slane %v775, 2
  %v777 = vadd.f32 %v775, %v776
  %v778 = vrot.slane %v777, 1
  %v779 = vadd.f32 %v777, %v778
  %v780 = vrcp.pop 32.0
  %v781 = vmul.f32 %v761, %v780
  %v782 = vmul.f32 %v770, %v780
  %v783 = vmul.f32 %v779, %v780
  %v784 = vsub.f32 %v741, %v781
  %v785 = vsub.f32 %v742, %v782
  %v786 = vsub.f32 %v743, %v783
  %v787 = vsub.f32 %v744, %v781
  %v788 = vsub.f32 %v745, %v782
  %v789 = vsub.f32 %v746, %v783
  %v790 = vsub.f32 %v747, %v781
  %v791 = vsub.f32 %v748, %v782
  %v792 = vsub.f32 %v749, %v783
  %v793 = vsub.f32 %v750, %v781
  %v794 = vsub.f32 %v751, %v782
  %v795 = vsub.f32 %v752, %v783
  %v796 = vmul.f32 %v784, %v784
  %v797 = vmul.f32 %v785, %v785
  %v798 = vmul.f32 %v786, %v786
  %v799 = vmul.f32 %v787, %v787
  %v800 = vmul.f32 %v788, %v788
  %v801 = vmul.f32 %v789, %v789
  %v802 = vmul.f32 %v790, %v790
  %v803 = vmul.f32 %v791, %v791
  %v804 = vmul.f32 %v792, %v792
  %v805 = vmul.f32 %v793, %v793
  %v806 = vmul.f32 %v794, %v794
  %v807 = vmul.f32 %v795, %v795
  %v808 = vadd.f32 %v796, %v799
  %v809 = vadd.f32 %v808, %v802
  %v810 = vadd.f32 %v809, %v805
  %v811 = vrot.slane %v810, 4
  %v812 = vadd.f32 %v810, %v811
  %v813 = vrot.slane %v812, 2
  %v814 = vadd.f32 %v812, %v813
  %v815 = vrot.slane %v814, 1
  %v816 = vadd.f32 %v814, %v815
  %v817 = vadd.f32 %v797, %v800
  %v818 = vadd.f32 %v817, %v803
  %v819 = vadd.f32 %v818, %v806
  %v820 = vrot.slane %v819, 4
  %v821 = vadd.f32 %v819, %v820
  %v822 = vrot.slane %v821, 2
  %v823 = vadd.f32 %v821, %v822
  %v824 = vrot.slane %v823, 1
  %v825 = vadd.f32 %v823, %v824
  %v826 = vadd.f32 %v798, %v801
  %v827 = vadd.f32 %v826, %v804
  %v828 = vadd.f32 %v827, %v807
  %v829 = vrot.slane %v828, 4
  %v830 = vadd.f32 %v828, %v829
  %v831 = vrot.slane %v830, 2
  %v832 = vadd.f32 %v830, %v831
  %v833 = vrot.slane %v832, 1
  %v834 = vadd.f32 %v832, %v833
  %v835 = vmul.f32 %v816, %v780
  %v836 = vmul.f32 %v825, %v780
  %v837 = vmul.f32 %v834, %v780
  %v838 = vadd.f32 %v835, 1e-05
  %v839 = vadd.f32 %v836, 1e-05
  %v840 = vadd.f32 %v837, 1e-05
  %v841 = vrsqrt.pop %v838
  %v842 = vrsqrt.pop %v839
  %v843 = vrsqrt.pop %v840
  %v844 = vmul.f32 %v784, %v841
  %v845 = vmul.f32 %v785, %v842
  %v846 = vmul.f32 %v786, %v843
  %v847 = vmul.f32 %v787, %v841
  %v848 = vmul.f32 %v788, %v842
  %v849 = vmul.f32 %v789, %v843
  %v850 = vmul.f32 %v790, %v841
  %v851 = vmul.f32 %v791, %v842
  %v852 = vmul.f32 %v792, %v843
  %v853 = vmul.f32 %v793, %v841
  %v854 = vmul.f32 %v794, %v842
  %v855 = vmul.f32 %v795, %v843
  %857 = vset.pattern.permute.xlu0 0
  %858 = vperm.xlu0 %857, %v712
  %v859 = vpop.permute.xlu0 %858
  %862 = vset.pattern.permute.xlu0 0
  %863 = vperm.xlu0 %862, %v713
  %v864 = vpop.permute.xlu0 %863
  %867 = vset.pattern.permute.xlu0 0
  %868 = vperm.xlu0 %867, %v714
  %v869 = vpop.permute.xlu0 %868
  %872 = vset.pattern.permute.xlu0 0
  %873 = vperm.xlu0 %872, %v715
  %v874 = vpop.permute.xlu0 %873
  %v876 = vmul.f32 %v844, %v859
  %v877 = vmul.f32 %v845, %v859
  %v878 = vmul.f32 %v846, %v859
  %v879 = vmul.f32 %v847, %v864
  %v880 = vmul.f32 %v848, %v864
  %v881 = vmul.f32 %v849, %v864
  %v882 = vmul.f32 %v850, %v869
  %v883 = vmul.f32 %v851, %v869
  %v884 = vmul.f32 %v852, %v869
  %v885 = vmul.f32 %v853, %v874
  %v886 = vmul.f32 %v854, %v874
  %v887 = vmul.f32 %v855, %v874
  %889 = vset.pattern.permute.xlu0 0
  %890 = vperm.xlu0 %889, %v717
  %v891 = vpop.permute.xlu0 %890
  %894 = vset.pattern.permute.xlu0 0
  %895 = vperm.xlu0 %894, %v718
  %v896 = vpop.permute.xlu0 %895
  %899 = vset.pattern.permute.xlu0 0
  %900 = vperm.xlu0 %899, %v719
  %v901 = vpop.permute.xlu0 %900
  %904 = vset.pattern.permute.xlu0 0
  %905 = vperm.xlu0 %904, %v720
  %v906 = vpop.permute.xlu0 %905
  %v908 = vadd.f32 %v876, %v891
  %v909 = vadd.f32 %v877, %v891
  %v910 = vadd.f32 %v878, %v891
  %v911 = vadd.f32 %v879, %v896
  %v912 = vadd.f32 %v880, %v896
  %v913 = vadd.f32 %v881, %v896
  %v914 = vadd.f32 %v882, %v901
  %v915 = vadd.f32 %v883, %v901
  %v916 = vadd.f32 %v884, %v901
  %v917 = vadd.f32 %v885, %v906
  %v918 = vadd.f32 %v886, %v906
  %v919 = vadd.f32 %v887, %v906
  %v920 = vmul.f32 %v908, 0.5
  %v921 = vmul.f32 %v909, 0.5
  %v922 = vmul.f32 %v910, 0.5
  %v923 = vmul.f32 %v911, 0.5
  %v924 = vmul.f32 %v912, 0.5
  %v925 = vmul.f32 %v913, 0.5
  %v926 = vmul.f32 %v914, 0.5
  %v927 = vmul.f32 %v915, 0.5
  %v928 = vmul.f32 %v916, 0.5
  %v929 = vmul.f32 %v917, 0.5
  %v930 = vmul.f32 %v918, 0.5
  %v931 = vmul.f32 %v919, 0.5
  %v932 = vmul.f32 %v908, 0.70710677
  %v933 = vmul.f32 %v909, 0.70710677
  %v934 = vmul.f32 %v910, 0.70710677
  %v935 = vmul.f32 %v911, 0.70710677
  %v936 = vmul.f32 %v912, 0.70710677
  %v937 = vmul.f32 %v913, 0.70710677
  %v938 = vmul.f32 %v914, 0.70710677
  %v939 = vmul.f32 %v915, 0.70710677
  %v940 = vmul.f32 %v916, 0.70710677
  %v941 = vmul.f32 %v917, 0.70710677
  %v942 = vmul.f32 %v918, 0.70710677
  %v943 = vmul.f32 %v919, 0.70710677
  %v944 = verf.f32.pop %v932
  %v945 = verf.f32.pop %v933
  %v946 = verf.f32.pop %v934
  %v947 = verf.f32.pop %v935
  %v948 = verf.f32.pop %v936
  %v949 = verf.f32.pop %v937
  %v950 = verf.f32.pop %v938
  %v951 = verf.f32.pop %v939
  %v952 = verf.f32.pop %v940
  %v953 = verf.f32.pop %v941
  %v954 = verf.f32.pop %v942
  %v955 = verf.f32.pop %v943
  %v956 = vadd.f32 %v944, 1.0
  %v957 = vadd.f32 %v945, 1.0
  %v958 = vadd.f32 %v946, 1.0
  %v959 = vadd.f32 %v947, 1.0
  %v960 = vadd.f32 %v948, 1.0
  %v961 = vadd.f32 %v949, 1.0
  %v962 = vadd.f32 %v950, 1.0
  %v963 = vadd.f32 %v951, 1.0
  %v964 = vadd.f32 %v952, 1.0
  %v965 = vadd.f32 %v953, 1.0
  %v966 = vadd.f32 %v954, 1.0
  %v967 = vadd.f32 %v955, 1.0
  %v968 = vmul.f32 %v920, %v956
  %v969 = vmul.f32 %v921, %v957
  %v970 = vmul.f32 %v922, %v958
  %v971 = vmul.f32 %v923, %v959
  %v972 = vmul.f32 %v924, %v960
  %v973 = vmul.f32 %v925, %v961
  %v974 = vmul.f32 %v926, %v962
  %v975 = vmul.f32 %v927, %v963
  %v976 = vmul.f32 %v928, %v964
  %v977 = vmul.f32 %v929, %v965
  %v978 = vmul.f32 %v930, %v966
  %v979 = vmul.f32 %v931, %v967
  %v980 = vld [vmem:[%s2] sm:$0xff]
  %v981 = vld [vmem:[%s2 + $0x8] sm:$0xff]
  %v982 = vld [vmem:[%s2 + $0x10] sm:$0xff]
  %v983 = vld [vmem:[%s2 + $0x18] sm:$0xff]
  %v984 = vpack.c.bf16 %v981, %v980
  %v985 = vpack.c.bf16 %v983, %v982
  %v986 = vunpack.c.l.bf16 %v984
  %v987 = vunpack.c.h.bf16 %v984
  %v988 = vunpack.c.l.bf16 %v985
  %v989 = vunpack.c.h.bf16 %v985
  %v990 = vsub.f32 %v980, %v986
  %v991 = vsub.f32 %v981, %v987
  %v992 = vsub.f32 %v982, %v988
  %v993 = vsub.f32 %v983, %v989
  %v994 = vpack.c.bf16 %v991, %v990
  %v995 = vpack.c.bf16 %v993, %v992
  %v996 = vpack.c.bf16 %v971, %v968
  %v997 = vpack.c.bf16 %v972, %v969
  %v998 = vpack.c.bf16 %v973, %v970
  %v999 = vpack.c.bf16 %v977, %v974
  %v1000 = vpack.c.bf16 %v978, %v975
  %v1001 = vpack.c.bf16 %v979, %v976
  %v1002 = vunpack.c.l.bf16 %v996
  %v1003 = vunpack.c.l.bf16 %v997
  %v1004 = vunpack.c.l.bf16 %v998
  %v1005 = vunpack.c.h.bf16 %v996
  %v1006 = vunpack.c.h.bf16 %v997
  %v1007 = vunpack.c.h.bf16 %v998
  %v1008 = vunpack.c.l.bf16 %v999
  %v1009 = vunpack.c.l.bf16 %v1000
  %v1010 = vunpack.c.l.bf16 %v1001
  %v1011 = vunpack.c.h.bf16 %v999
  %v1012 = vunpack.c.h.bf16 %v1000
  %v1013 = vunpack.c.h.bf16 %v1001
  %v1014 = vsub.f32 %v968, %v1002
  %v1015 = vsub.f32 %v969, %v1003
  %v1016 = vsub.f32 %v970, %v1004
  %v1017 = vsub.f32 %v971, %v1005
  %v1018 = vsub.f32 %v972, %v1006
  %v1019 = vsub.f32 %v973, %v1007
  %v1020 = vsub.f32 %v974, %v1008
  %v1021 = vsub.f32 %v975, %v1009
  %v1022 = vsub.f32 %v976, %v1010
  %v1023 = vsub.f32 %v977, %v1011
  %v1024 = vsub.f32 %v978, %v1012
  %v1025 = vsub.f32 %v979, %v1013
  %v1026 = vpack.c.bf16 %v1017, %v1014
  %v1027 = vpack.c.bf16 %v1018, %v1015
  %v1028 = vpack.c.bf16 %v1019, %v1016
  %v1029 = vpack.c.bf16 %v1023, %v1020
  %v1030 = vpack.c.bf16 %v1024, %v1021
  %v1031 = vpack.c.bf16 %v1025, %v1022
  %vm1032 = vcmask 261120
  %v1034 = vsel %vm1032, %v994, 0
  %v1037 = vsel %vm1032, %v995, 0
  %1039 = vmatprep.subr.bf16.mxu0 %v997
  %1040 = vmatpush1.bf16.msra.mxu0 %v996
  %1041 = vmatprep.subr.bf16.mxu0 %v1000
  %1042 = vmatpush1.bf16.msra.mxu0 %v999
  %1043 = vmatprep.subr.bf16.mxu0 0
  %1044 = vmatpush1.bf16.msra.mxu0 0
  %1045 = vmatprep.subr.bf16.mxu0 0
  %1046 = vmatpush1.bf16.msra.mxu0 0
  %1047 = vmatprep.subr.bf16.mxu0 0
  %1048 = vmatpush1.bf16.msra.mxu0 0
  %1049 = vmatprep.subr.bf16.mxu0 0
  %1050 = vmatpush1.bf16.msra.mxu0 0
  %1051 = vmatprep.subr.bf16.mxu0 0
  %1052 = vmatpush1.bf16.msra.mxu0 0
  %1053 = vmatprep.subr.bf16.mxu0 0
  %1054 = vmatpush1.bf16.msra.mxu0 0
  %1055 = vmatprep.subr.bf16.mxu0 0
  %1056 = vmatpush1.bf16.msra.mxu0 0
  %1057 = vmatprep.subr.bf16.mxu0 0
  %1058 = vmatpush1.bf16.msra.mxu0 0
  %1059 = vmatprep.subr.bf16.mxu0 0
  %1060 = vmatpush1.bf16.msra.mxu0 0
  %1061 = vmatprep.subr.bf16.mxu0 0
  %1062 = vmatpush1.bf16.msra.mxu0 0
  %1063 = vmatprep.subr.bf16.mxu0 0
  %1064 = vmatpush1.bf16.msra.mxu0 0
  %1065 = vmatprep.subr.bf16.mxu0 0
  %1066 = vmatpush1.bf16.msra.mxu0 0
  %1067 = vmatprep.subr.bf16.mxu0 0
  %1068 = vmatpush1.bf16.msra.mxu0 0
  %1069 = vmatprep.subr.bf16.mxu0 0
  %1070 = vmatpush1.bf16.msra.mxu0 0
  %1071 = vmatprep.mubr.bf16.mxu0 0
  %1072 = vmatmul.mubr.bf16.gmra.mrb[0].mxu0 %v1034
  %v1073 = vpop.f32.mrb[0].mxu0
  %v1074 = vadd.f32 0.0, %v1073
  %v1075 = vpop.f32.mrb[0].mxu0
  %v1076 = vadd.f32 0.0, %v1075
  %v1077 = vpop.f32.mrb[0].mxu0
  %v1078 = vadd.f32 0.0, %v1077
  %v1079 = vpop.f32.mrb[0].mxu0
  %v1080 = vadd.f32 0.0, %v1079
  %1081 = vmatprep.mubr.bf16.mxu0 0
  %1082 = vmatmul.mubr.bf16.gmra.mrb[0].mxu0 %v1037
  %v1083 = vpop.f32.mrb[0].mxu0
  %v1084 = vadd.f32 0.0, %v1083
  %v1085 = vpop.f32.mrb[0].mxu0
  %v1086 = vadd.f32 0.0, %v1085
  %v1087 = vpop.f32.mrb[0].mxu0
  %v1088 = vadd.f32 0.0, %v1087
  %v1089 = vpop.f32.mrb[0].mxu0
  %v1090 = vadd.f32 0.0, %v1089
  %1091 = vdwg.mxu0
  %1092 = vmatprep.subr.bf16.mxu0 0
  %1093 = vmatpush1.bf16.msra.mxu0 %v998
  %1094 = vmatprep.subr.bf16.mxu0 0
  %1095 = vmatpush1.bf16.msra.mxu0 %v1001
  %1096 = vmatprep.subr.bf16.mxu0 0
  %1097 = vmatpush1.bf16.msra.mxu0 0
  %1098 = vmatprep.subr.bf16.mxu0 0
  %1099 = vmatpush1.bf16.msra.mxu0 0
  %1100 = vmatprep.subr.bf16.mxu0 0
  %1101 = vmatpush1.bf16.msra.mxu0 0
  %1102 = vmatprep.subr.bf16.mxu0 0
  %1103 = vmatpush1.bf16.msra.mxu0 0
  %1104 = vmatprep.subr.bf16.mxu0 0
  %1105 = vmatpush1.bf16.msra.mxu0 0
  %1106 = vmatprep.subr.bf16.mxu0 0
  %1107 = vmatpush1.bf16.msra.mxu0 0
  %1108 = vmatprep.subr.bf16.mxu0 0
  %1109 = vmatpush1.bf16.msra.mxu0 0
  %1110 = vmatprep.subr.bf16.mxu0 0
  %1111 = vmatpush1.bf16.msra.mxu0 0
  %1112 = vmatprep.subr.bf16.mxu0 0
  %1113 = vmatpush1.bf16.msra.mxu0 0
  %1114 = vmatprep.subr.bf16.mxu0 0
  %1115 = vmatpush1.bf16.msra.mxu0 0
  %1116 = vmatprep.subr.bf16.mxu0 0
  %1117 = vmatpush1.bf16.msra.mxu0 0
  %1118 = vmatprep.subr.bf16.mxu0 0
  %1119 = vmatpush1.bf16.msra.mxu0 0
  %1120 = vmatprep.subr.bf16.mxu0 0
  %1121 = vmatpush1.bf16.msra.mxu0 0
  %1122 = vmatprep.subr.bf16.mxu0 0
  %1123 = vmatpush1.bf16.msra.mxu0 0
  %1124 = vmatprep.mubr.bf16.mxu0 0
  %1125 = vmatmul.mubr.bf16.gmra.mrb[0].mxu0 %v1034
  %v1126 = vpop.f32.mrb[0].mxu0
  %v1127 = vadd.f32 0.0, %v1126
  %v1128 = vpop.f32.mrb[0].mxu0
  %v1129 = vpop.f32.mrb[0].mxu0
  %v1130 = vadd.f32 0.0, %v1129
  %v1131 = vpop.f32.mrb[0].mxu0
  %1132 = vmatprep.mubr.bf16.mxu0 0
  %1133 = vmatmul.mubr.bf16.gmra.mrb[0].mxu0 %v1037
  %v1134 = vpop.f32.mrb[0].mxu0
  %v1135 = vadd.f32 0.0, %v1134
  %v1136 = vpop.f32.mrb[0].mxu0
  %v1137 = vpop.f32.mrb[0].mxu0
  %v1138 = vadd.f32 0.0, %v1137
  %v1139 = vpop.f32.mrb[0].mxu0
  %1140 = vdwg.mxu0
  %v1142 = vsel %vm1032, %v984, 0
  %v1145 = vsel %vm1032, %v985, 0
  %1147 = vmatprep.subr.bf16.mxu0 %v997
  %1148 = vmatpush1.bf16.msra.mxu0 %v996
  %1149 = vmatprep.subr.bf16.mxu0 %v1000
  %1150 = vmatpush1.bf16.msra.mxu0 %v999
  %1151 = vmatprep.subr.bf16.mxu0 0
  %1152 = vmatpush1.bf16.msra.mxu0 0
  %1153 = vmatprep.subr.bf16.mxu0 0
  %1154 = vmatpush1.bf16.msra.mxu0 0
  %1155 = vmatprep.subr.bf16.mxu0 0
  %1156 = vmatpush1.bf16.msra.mxu0 0
  %1157 = vmatprep.subr.bf16.mxu0 0
  %1158 = vmatpush1.bf16.msra.mxu0 0
  %1159 = vmatprep.subr.bf16.mxu0 0
  %1160 = vmatpush1.bf16.msra.mxu0 0
  %1161 = vmatprep.subr.bf16.mxu0 0
  %1162 = vmatpush1.bf16.msra.mxu0 0
  %1163 = vmatprep.subr.bf16.mxu0 0
  %1164 = vmatpush1.bf16.msra.mxu0 0
  %1165 = vmatprep.subr.bf16.mxu0 0
  %1166 = vmatpush1.bf16.msra.mxu0 0
  %1167 = vmatprep.subr.bf16.mxu0 0
  %1168 = vmatpush1.bf16.msra.mxu0 0
  %1169 = vmatprep.subr.bf16.mxu0 0
  %1170 = vmatpush1.bf16.msra.mxu0 0
  %1171 = vmatprep.subr.bf16.mxu0 0
  %1172 = vmatpush1.bf16.msra.mxu0 0
  %1173 = vmatprep.subr.bf16.mxu0 0
  %1174 = vmatpush1.bf16.msra.mxu0 0
  %1175 = vmatprep.subr.bf16.mxu0 0
  %1176 = vmatpush1.bf16.msra.mxu0 0
  %1177 = vmatprep.subr.bf16.mxu0 0
  %1178 = vmatpush1.bf16.msra.mxu0 0
  %1179 = vmatprep.mubr.bf16.mxu0 0
  %1180 = vmatmul.mubr.bf16.gmra.mrb[0].mxu0 %v1142
  %v1181 = vpop.f32.mrb[0].mxu0
  %v1182 = vadd.f32 %v1074, %v1181
  %v1183 = vpop.f32.mrb[0].mxu0
  %v1184 = vadd.f32 %v1076, %v1183
  %v1185 = vpop.f32.mrb[0].mxu0
  %v1186 = vadd.f32 %v1078, %v1185
  %v1187 = vpop.f32.mrb[0].mxu0
  %v1188 = vadd.f32 %v1080, %v1187
  %1189 = vmatprep.mubr.bf16.mxu0 0
  %1190 = vmatmul.mubr.bf16.gmra.mrb[0].mxu0 %v1145
  %v1191 = vpop.f32.mrb[0].mxu0
  %v1192 = vadd.f32 %v1084, %v1191
  %v1193 = vpop.f32.mrb[0].mxu0
  %v1194 = vadd.f32 %v1086, %v1193
  %v1195 = vpop.f32.mrb[0].mxu0
  %v1196 = vadd.f32 %v1088, %v1195
  %v1197 = vpop.f32.mrb[0].mxu0
  %v1198 = vadd.f32 %v1090, %v1197
  %1199 = vdwg.mxu0
  %1200 = vmatprep.subr.bf16.mxu0 0
  %1201 = vmatpush1.bf16.msra.mxu0 %v998
  %1202 = vmatprep.subr.bf16.mxu0 0
  %1203 = vmatpush1.bf16.msra.mxu0 %v1001
  %1204 = vmatprep.subr.bf16.mxu0 0
  %1205 = vmatpush1.bf16.msra.mxu0 0
  %1206 = vmatprep.subr.bf16.mxu0 0
  %1207 = vmatpush1.bf16.msra.mxu0 0
  %1208 = vmatprep.subr.bf16.mxu0 0
  %1209 = vmatpush1.bf16.msra.mxu0 0
  %1210 = vmatprep.subr.bf16.mxu0 0
  %1211 = vmatpush1.bf16.msra.mxu0 0
  %1212 = vmatprep.subr.bf16.mxu0 0
  %1213 = vmatpush1.bf16.msra.mxu0 0
  %1214 = vmatprep.subr.bf16.mxu0 0
  %1215 = vmatpush1.bf16.msra.mxu0 0
  %1216 = vmatprep.subr.bf16.mxu0 0
  %1217 = vmatpush1.bf16.msra.mxu0 0
  %1218 = vmatprep.subr.bf16.mxu0 0
  %1219 = vmatpush1.bf16.msra.mxu0 0
  %1220 = vmatprep.subr.bf16.mxu0 0
  %1221 = vmatpush1.bf16.msra.mxu0 0
  %1222 = vmatprep.subr.bf16.mxu0 0
  %1223 = vmatpush1.bf16.msra.mxu0 0
  %1224 = vmatprep.subr.bf16.mxu0 0
  %1225 = vmatpush1.bf16.msra.mxu0 0
  %1226 = vmatprep.subr.bf16.mxu0 0
  %1227 = vmatpush1.bf16.msra.mxu0 0
  %1228 = vmatprep.subr.bf16.mxu0 0
  %1229 = vmatpush1.bf16.msra.mxu0 0
  %1230 = vmatprep.subr.bf16.mxu0 0
  %1231 = vmatpush1.bf16.msra.mxu0 0
  %1232 = vmatprep.mubr.bf16.mxu0 0
  %1233 = vmatmul.mubr.bf16.gmra.mrb[0].mxu0 %v1142
  %v1234 = vpop.f32.mrb[0].mxu0
  %v1235 = vadd.f32 %v1127, %v1234
  %v1236 = vpop.f32.mrb[0].mxu0
  %v1237 = vpop.f32.mrb[0].mxu0
  %v1238 = vadd.f32 %v1130, %v1237
  %v1239 = vpop.f32.mrb[0].mxu0
  %1240 = vmatprep.mubr.bf16.mxu0 0
  %1241 = vmatmul.mubr.bf16.gmra.mrb[0].mxu0 %v1145
  %v1242 = vpop.f32.mrb[0].mxu0
  %v1243 = vadd.f32 %v1135, %v1242
  %v1244 = vpop.f32.mrb[0].mxu0
  %v1245 = vpop.f32.mrb[0].mxu0
  %v1246 = vadd.f32 %v1138, %v1245
  %v1247 = vpop.f32.mrb[0].mxu0
  %1248 = vdwg.mxu0
  %1249 = vmatprep.subr.bf16.mxu0 %v1027
  %1250 = vmatpush1.bf16.msra.mxu0 %v1026
  %1251 = vmatprep.subr.bf16.mxu0 %v1030
  %1252 = vmatpush1.bf16.msra.mxu0 %v1029
  %1253 = vmatprep.subr.bf16.mxu0 0
  %1254 = vmatpush1.bf16.msra.mxu0 0
  %1255 = vmatprep.subr.bf16.mxu0 0
  %1256 = vmatpush1.bf16.msra.mxu0 0
  %1257 = vmatprep.subr.bf16.mxu0 0
  %1258 = vmatpush1.bf16.msra.mxu0 0
  %1259 = vmatprep.subr.bf16.mxu0 0
  %1260 = vmatpush1.bf16.msra.mxu0 0
  %1261 = vmatprep.subr.bf16.mxu0 0
  %1262 = vmatpush1.bf16.msra.mxu0 0
  %1263 = vmatprep.subr.bf16.mxu0 0
  %1264 = vmatpush1.bf16.msra.mxu0 0
  %1265 = vmatprep.subr.bf16.mxu0 0
  %1266 = vmatpush1.bf16.msra.mxu0 0
  %1267 = vmatprep.subr.bf16.mxu0 0
  %1268 = vmatpush1.bf16.msra.mxu0 0
  %1269 = vmatprep.subr.bf16.mxu0 0
  %1270 = vmatpush1.bf16.msra.mxu0 0
  %1271 = vmatprep.subr.bf16.mxu0 0
  %1272 = vmatpush1.bf16.msra.mxu0 0
  %1273 = vmatprep.subr.bf16.mxu0 0
  %1274 = vmatpush1.bf16.msra.mxu0 0
  %1275 = vmatprep.subr.bf16.mxu0 0
  %1276 = vmatpush1.bf16.msra.mxu0 0
  %1277 = vmatprep.subr.bf16.mxu0 0
  %1278 = vmatpush1.bf16.msra.mxu0 0
  %1279 = vmatprep.subr.bf16.mxu0 0
  %1280 = vmatpush1.bf16.msra.mxu0 0
  %1281 = vmatprep.mubr.bf16.mxu0 0
  %1282 = vmatmul.mubr.bf16.gmra.mrb[0].mxu0 %v1142
  %v1283 = vpop.f32.mrb[0].mxu0
  %v1284 = vadd.f32 0.0, %v1283
  %v1285 = vpop.f32.mrb[0].mxu0
  %v1286 = vadd.f32 0.0, %v1285
  %v1287 = vpop.f32.mrb[0].mxu0
  %v1288 = vadd.f32 0.0, %v1287
  %v1289 = vpop.f32.mrb[0].mxu0
  %v1290 = vadd.f32 0.0, %v1289
  %1291 = vmatprep.mubr.bf16.mxu0 0
  %1292 = vmatmul.mubr.bf16.gmra.mrb[0].mxu0 %v1145
  %v1293 = vpop.f32.mrb[0].mxu0
  %v1294 = vadd.f32 0.0, %v1293
  %v1295 = vpop.f32.mrb[0].mxu0
  %v1296 = vadd.f32 0.0, %v1295
  %v1297 = vpop.f32.mrb[0].mxu0
  %v1298 = vadd.f32 0.0, %v1297
  %v1299 = vpop.f32.mrb[0].mxu0
  %v1300 = vadd.f32 0.0, %v1299
  %1301 = vdwg.mxu0
  %1302 = vmatprep.subr.bf16.mxu0 0
  %1303 = vmatpush1.bf16.msra.mxu0 %v1028
  %1304 = vmatprep.subr.bf16.mxu0 0
  %1305 = vmatpush1.bf16.msra.mxu0 %v1031
  %1306 = vmatprep.subr.bf16.mxu0 0
  %1307 = vmatpush1.bf16.msra.mxu0 0
  %1308 = vmatprep.subr.bf16.mxu0 0
  %1309 = vmatpush1.bf16.msra.mxu0 0
  %1310 = vmatprep.subr.bf16.mxu0 0
  %1311 = vmatpush1.bf16.msra.mxu0 0
  %1312 = vmatprep.subr.bf16.mxu0 0
  %1313 = vmatpush1.bf16.msra.mxu0 0
  %1314 = vmatprep.subr.bf16.mxu0 0
  %1315 = vmatpush1.bf16.msra.mxu0 0
  %1316 = vmatprep.subr.bf16.mxu0 0
  %1317 = vmatpush1.bf16.msra.mxu0 0
  %1318 = vmatprep.subr.bf16.mxu0 0
  %1319 = vmatpush1.bf16.msra.mxu0 0
  %1320 = vmatprep.subr.bf16.mxu0 0
  %1321 = vmatpush1.bf16.msra.mxu0 0
  %1322 = vmatprep.subr.bf16.mxu0 0
  %1323 = vmatpush1.bf16.msra.mxu0 0
  %1324 = vmatprep.subr.bf16.mxu0 0
  %1325 = vmatpush1.bf16.msra.mxu0 0
  %1326 = vmatprep.subr.bf16.mxu0 0
  %1327 = vmatpush1.bf16.msra.mxu0 0
  %1328 = vmatprep.subr.bf16.mxu0 0
  %1329 = vmatpush1.bf16.msra.mxu0 0
  %1330 = vmatprep.subr.bf16.mxu0 0
  %1331 = vmatpush1.bf16.msra.mxu0 0
  %1332 = vmatprep.subr.bf16.mxu0 0
  %1333 = vmatpush1.bf16.msra.mxu0 0
  %1334 = vmatprep.mubr.bf16.mxu0 0
  %1335 = vmatmul.mubr.bf16.gmra.mrb[0].mxu0 %v1142
  %v1336 = vpop.f32.mrb[0].mxu0
  %v1337 = vadd.f32 0.0, %v1336
  %v1338 = vpop.f32.mrb[0].mxu0
  %v1339 = vpop.f32.mrb[0].mxu0
  %v1340 = vadd.f32 0.0, %v1339
  %v1341 = vpop.f32.mrb[0].mxu0
  %1342 = vmatprep.mubr.bf16.mxu0 0
  %1343 = vmatmul.mubr.bf16.gmra.mrb[0].mxu0 %v1145
  %v1344 = vpop.f32.mrb[0].mxu0
  %v1345 = vadd.f32 0.0, %v1344
  %v1346 = vpop.f32.mrb[0].mxu0
  %v1347 = vpop.f32.mrb[0].mxu0
  %v1348 = vadd.f32 0.0, %v1347
  %v1349 = vpop.f32.mrb[0].mxu0
  %1350 = vdwg.mxu0
  %v1351 = vadd.f32 %v1182, %v1284
  %v1352 = vadd.f32 %v1184, %v1286
  %v1353 = vadd.f32 %v1235, %v1337
  %v1354 = vadd.f32 %v1186, %v1288
  %v1355 = vadd.f32 %v1188, %v1290
  %v1356 = vadd.f32 %v1238, %v1340
  %v1357 = vadd.f32 %v1192, %v1294
  %v1358 = vadd.f32 %v1194, %v1296
  %v1359 = vadd.f32 %v1243, %v1345
  %v1360 = vadd.f32 %v1196, %v1298
  %v1361 = vadd.f32 %v1198, %v1300
  %v1362 = vadd.f32 %v1246, %v1348
  %s1363 = scalar_lea.vmem %s4, 96
  %v1364 = vld [vmem:[%s1363] sm:$0xff]
  %v1365 = vld [vmem:[%s1363 + $0x8] sm:$0xff]
  %v1366 = vld [vmem:[%s1363 + $0x10] sm:$0xff]
  %v1367 = vld [vmem:[%s1363 + $0x18] sm:$0xff]
  %s1368 = scalar_lea.vmem %s4, 128
  %v1369 = vld [vmem:[%s1368] sm:$0xff]
  %v1370 = vld [vmem:[%s1368 + $0x8] sm:$0xff]
  %v1371 = vld [vmem:[%s1368 + $0x10] sm:$0xff]
  %v1372 = vld [vmem:[%s1368 + $0x18] sm:$0xff]
  %s1373 = scalar_lea.vmem %s4, 160
  %v1374 = vld [vmem:[%s1373] sm:$0xff]
  %v1375 = vld [vmem:[%s1373 + $0x8] sm:$0xff]
  %v1376 = vld [vmem:[%s1373 + $0x10] sm:$0xff]
  %v1377 = vld [vmem:[%s1373 + $0x18] sm:$0xff]
  %1379 = vset.pattern.permute.xlu0 0
  %1380 = vperm.xlu0 %1379, %v1364
  %v1381 = vpop.permute.xlu0 %1380
  %1384 = vset.pattern.permute.xlu0 0
  %1385 = vperm.xlu0 %1384, %v1365
  %v1386 = vpop.permute.xlu0 %1385
  %1389 = vset.pattern.permute.xlu0 0
  %1390 = vperm.xlu0 %1389, %v1366
  %v1391 = vpop.permute.xlu0 %1390
  %1394 = vset.pattern.permute.xlu0 0
  %1395 = vperm.xlu0 %1394, %v1367
  %v1396 = vpop.permute.xlu0 %1395
  %v1398 = vadd.f32 %v1351, %v1381
  %v1399 = vadd.f32 %v1352, %v1381
  %v1400 = vadd.f32 %v1353, %v1381
  %v1401 = vadd.f32 %v1354, %v1386
  %v1402 = vadd.f32 %v1355, %v1386
  %v1403 = vadd.f32 %v1356, %v1386
  %v1404 = vadd.f32 %v1357, %v1391
  %v1405 = vadd.f32 %v1358, %v1391
  %v1406 = vadd.f32 %v1359, %v1391
  %v1407 = vadd.f32 %v1360, %v1396
  %v1408 = vadd.f32 %v1361, %v1396
  %v1409 = vadd.f32 %v1362, %v1396
  %v1410 = vadd.f32 %v1398, %v1401
  %v1411 = vadd.f32 %v1410, %v1404
  %v1412 = vadd.f32 %v1411, %v1407
  %v1413 = vrot.slane %v1412, 4
  %v1414 = vadd.f32 %v1412, %v1413
  %v1415 = vrot.slane %v1414, 2
  %v1416 = vadd.f32 %v1414, %v1415
  %v1417 = vrot.slane %v1416, 1
  %v1418 = vadd.f32 %v1416, %v1417
  %v1419 = vadd.f32 %v1399, %v1402
  %v1420 = vadd.f32 %v1419, %v1405
  %v1421 = vadd.f32 %v1420, %v1408
  %v1422 = vrot.slane %v1421, 4
  %v1423 = vadd.f32 %v1421, %v1422
  %v1424 = vrot.slane %v1423, 2
  %v1425 = vadd.f32 %v1423, %v1424
  %v1426 = vrot.slane %v1425, 1
  %v1427 = vadd.f32 %v1425, %v1426
  %v1428 = vadd.f32 %v1400, %v1403
  %v1429 = vadd.f32 %v1428, %v1406
  %v1430 = vadd.f32 %v1429, %v1409
  %v1431 = vrot.slane %v1430, 4
  %v1432 = vadd.f32 %v1430, %v1431
  %v1433 = vrot.slane %v1432, 2
  %v1434 = vadd.f32 %v1432, %v1433
  %v1435 = vrot.slane %v1434, 1
  %v1436 = vadd.f32 %v1434, %v1435
  %v1437 = vmul.f32 %v1418, %v780
  %v1438 = vmul.f32 %v1427, %v780
  %v1439 = vmul.f32 %v1436, %v780
  %v1440 = vsub.f32 %v1398, %v1437
  %v1441 = vsub.f32 %v1399, %v1438
  %v1442 = vsub.f32 %v1400, %v1439
  %v1443 = vsub.f32 %v1401, %v1437
  %v1444 = vsub.f32 %v1402, %v1438
  %v1445 = vsub.f32 %v1403, %v1439
  %v1446 = vsub.f32 %v1404, %v1437
  %v1447 = vsub.f32 %v1405, %v1438
  %v1448 = vsub.f32 %v1406, %v1439
  %v1449 = vsub.f32 %v1407, %v1437
  %v1450 = vsub.f32 %v1408, %v1438
  %v1451 = vsub.f32 %v1409, %v1439
  %v1452 = vmul.f32 %v1440, %v1440
  %v1453 = vmul.f32 %v1441, %v1441
  %v1454 = vmul.f32 %v1442, %v1442
  %v1455 = vmul.f32 %v1443, %v1443
  %v1456 = vmul.f32 %v1444, %v1444
  %v1457 = vmul.f32 %v1445, %v1445
  %v1458 = vmul.f32 %v1446, %v1446
  %v1459 = vmul.f32 %v1447, %v1447
  %v1460 = vmul.f32 %v1448, %v1448
  %v1461 = vmul.f32 %v1449, %v1449
  %v1462 = vmul.f32 %v1450, %v1450
  %v1463 = vmul.f32 %v1451, %v1451
  %v1464 = vadd.f32 %v1452, %v1455
  %v1465 = vadd.f32 %v1464, %v1458
  %v1466 = vadd.f32 %v1465, %v1461
  %v1467 = vrot.slane %v1466, 4
  %v1468 = vadd.f32 %v1466, %v1467
  %v1469 = vrot.slane %v1468, 2
  %v1470 = vadd.f32 %v1468, %v1469
  %v1471 = vrot.slane %v1470, 1
  %v1472 = vadd.f32 %v1470, %v1471
  %v1473 = vadd.f32 %v1453, %v1456
  %v1474 = vadd.f32 %v1473, %v1459
  %v1475 = vadd.f32 %v1474, %v1462
  %v1476 = vrot.slane %v1475, 4
  %v1477 = vadd.f32 %v1475, %v1476
  %v1478 = vrot.slane %v1477, 2
  %v1479 = vadd.f32 %v1477, %v1478
  %v1480 = vrot.slane %v1479, 1
  %v1481 = vadd.f32 %v1479, %v1480
  %v1482 = vadd.f32 %v1454, %v1457
  %v1483 = vadd.f32 %v1482, %v1460
  %v1484 = vadd.f32 %v1483, %v1463
  %v1485 = vrot.slane %v1484, 4
  %v1486 = vadd.f32 %v1484, %v1485
  %v1487 = vrot.slane %v1486, 2
  %v1488 = vadd.f32 %v1486, %v1487
  %v1489 = vrot.slane %v1488, 1
  %v1490 = vadd.f32 %v1488, %v1489
  %v1491 = vmul.f32 %v1472, %v780
  %v1492 = vmul.f32 %v1481, %v780
  %v1493 = vmul.f32 %v1490, %v780
  %v1494 = vadd.f32 %v1491, 1e-05
  %v1495 = vadd.f32 %v1492, 1e-05
  %v1496 = vadd.f32 %v1493, 1e-05
  %v1497 = vrsqrt.pop %v1494
  %v1498 = vrsqrt.pop %v1495
  %v1499 = vrsqrt.pop %v1496
  %v1500 = vmul.f32 %v1440, %v1497
  %v1501 = vmul.f32 %v1441, %v1498
  %v1502 = vmul.f32 %v1442, %v1499
  %v1503 = vmul.f32 %v1443, %v1497
  %v1504 = vmul.f32 %v1444, %v1498
  %v1505 = vmul.f32 %v1445, %v1499
  %v1506 = vmul.f32 %v1446, %v1497
  %v1507 = vmul.f32 %v1447, %v1498
  %v1508 = vmul.f32 %v1448, %v1499
  %v1509 = vmul.f32 %v1449, %v1497
  %v1510 = vmul.f32 %v1450, %v1498
  %v1511 = vmul.f32 %v1451, %v1499
  %1513 = vset.pattern.permute.xlu0 0
  %1514 = vperm.xlu0 %1513, %v1369
  %v1515 = vpop.permute.xlu0 %1514
  %1518 = vset.pattern.permute.xlu0 0
  %1519 = vperm.xlu0 %1518, %v1370
  %v1520 = vpop.permute.xlu0 %1519
  %1523 = vset.pattern.permute.xlu0 0
  %1524 = vperm.xlu0 %1523, %v1371
  %v1525 = vpop.permute.xlu0 %1524
  %1528 = vset.pattern.permute.xlu0 0
  %1529 = vperm.xlu0 %1528, %v1372
  %v1530 = vpop.permute.xlu0 %1529
  %v1532 = vmul.f32 %v1500, %v1515
  %v1533 = vmul.f32 %v1501, %v1515
  %v1534 = vmul.f32 %v1502, %v1515
  %v1535 = vmul.f32 %v1503, %v1520
  %v1536 = vmul.f32 %v1504, %v1520
  %v1537 = vmul.f32 %v1505, %v1520
  %v1538 = vmul.f32 %v1506, %v1525
  %v1539 = vmul.f32 %v1507, %v1525
  %v1540 = vmul.f32 %v1508, %v1525
  %v1541 = vmul.f32 %v1509, %v1530
  %v1542 = vmul.f32 %v1510, %v1530
  %v1543 = vmul.f32 %v1511, %v1530
  %1545 = vset.pattern.permute.xlu0 0
  %1546 = vperm.xlu0 %1545, %v1374
  %v1547 = vpop.permute.xlu0 %1546
  %1550 = vset.pattern.permute.xlu0 0
  %1551 = vperm.xlu0 %1550, %v1375
  %v1552 = vpop.permute.xlu0 %1551
  %1555 = vset.pattern.permute.xlu0 0
  %1556 = vperm.xlu0 %1555, %v1376
  %v1557 = vpop.permute.xlu0 %1556
  %1560 = vset.pattern.permute.xlu0 0
  %1561 = vperm.xlu0 %1560, %v1377
  %v1562 = vpop.permute.xlu0 %1561
  %v1564 = vadd.f32 %v1532, %v1547
  %v1565 = vadd.f32 %v1533, %v1547
  %v1566 = vadd.f32 %v1534, %v1547
  %v1567 = vadd.f32 %v1535, %v1552
  %v1568 = vadd.f32 %v1536, %v1552
  %v1569 = vadd.f32 %v1537, %v1552
  %v1570 = vadd.f32 %v1538, %v1557
  %v1571 = vadd.f32 %v1539, %v1557
  %v1572 = vadd.f32 %v1540, %v1557
  %v1573 = vadd.f32 %v1541, %v1562
  %v1574 = vadd.f32 %v1542, %v1562
  %v1575 = vadd.f32 %v1543, %v1562
  %v1576 = vmul.f32 %v1564, 0.5
  %v1577 = vmul.f32 %v1565, 0.5
  %v1578 = vmul.f32 %v1566, 0.5
  %v1579 = vmul.f32 %v1567, 0.5
  %v1580 = vmul.f32 %v1568, 0.5
  %v1581 = vmul.f32 %v1569, 0.5
  %v1582 = vmul.f32 %v1570, 0.5
  %v1583 = vmul.f32 %v1571, 0.5
  %v1584 = vmul.f32 %v1572, 0.5
  %v1585 = vmul.f32 %v1573, 0.5
  %v1586 = vmul.f32 %v1574, 0.5
  %v1587 = vmul.f32 %v1575, 0.5
  %v1588 = vmul.f32 %v1564, 0.70710677
  %v1589 = vmul.f32 %v1565, 0.70710677
  %v1590 = vmul.f32 %v1566, 0.70710677
  %v1591 = vmul.f32 %v1567, 0.70710677
  %v1592 = vmul.f32 %v1568, 0.70710677
  %v1593 = vmul.f32 %v1569, 0.70710677
  %v1594 = vmul.f32 %v1570, 0.70710677
  %v1595 = vmul.f32 %v1571, 0.70710677
  %v1596 = vmul.f32 %v1572, 0.70710677
  %v1597 = vmul.f32 %v1573, 0.70710677
  %v1598 = vmul.f32 %v1574, 0.70710677
  %v1599 = vmul.f32 %v1575, 0.70710677
  %v1600 = verf.f32.pop %v1588
  %v1601 = verf.f32.pop %v1589
  %v1602 = verf.f32.pop %v1590
  %v1603 = verf.f32.pop %v1591
  %v1604 = verf.f32.pop %v1592
  %v1605 = verf.f32.pop %v1593
  %v1606 = verf.f32.pop %v1594
  %v1607 = verf.f32.pop %v1595
  %v1608 = verf.f32.pop %v1596
  %v1609 = verf.f32.pop %v1597
  %v1610 = verf.f32.pop %v1598
  %v1611 = verf.f32.pop %v1599
  %v1612 = vadd.f32 %v1600, 1.0
  %v1613 = vadd.f32 %v1601, 1.0
  %v1614 = vadd.f32 %v1602, 1.0
  %v1615 = vadd.f32 %v1603, 1.0
  %v1616 = vadd.f32 %v1604, 1.0
  %v1617 = vadd.f32 %v1605, 1.0
  %v1618 = vadd.f32 %v1606, 1.0
  %v1619 = vadd.f32 %v1607, 1.0
  %v1620 = vadd.f32 %v1608, 1.0
  %v1621 = vadd.f32 %v1609, 1.0
  %v1622 = vadd.f32 %v1610, 1.0
  %v1623 = vadd.f32 %v1611, 1.0
  %v1624 = vmul.f32 %v1576, %v1612
  %v1625 = vmul.f32 %v1577, %v1613
  %v1626 = vmul.f32 %v1578, %v1614
  %v1627 = vmul.f32 %v1579, %v1615
  %v1628 = vmul.f32 %v1580, %v1616
  %v1629 = vmul.f32 %v1581, %v1617
  %v1630 = vmul.f32 %v1582, %v1618
  %v1631 = vmul.f32 %v1583, %v1619
  %v1632 = vmul.f32 %v1584, %v1620
  %v1633 = vmul.f32 %v1585, %v1621
  %v1634 = vmul.f32 %v1586, %v1622
  %v1635 = vmul.f32 %v1587, %v1623
  %s1636 = scalar_lea.vmem %s2, 32
  %v1637 = vld [vmem:[%s1636] sm:$0xff]
  %v1638 = vld [vmem:[%s1636 + $0x8] sm:$0xff]
  %v1639 = vld [vmem:[%s1636 + $0x10] sm:$0xff]
  %v1640 = vld [vmem:[%s1636 + $0x18] sm:$0xff]
  %v1641 = vpack.c.bf16 %v1638, %v1637
  %v1642 = vpack.c.bf16 %v1640, %v1639
  %v1643 = vunpack.c.l.bf16 %v1641
  %v1644 = vunpack.c.h.bf16 %v1641
  %v1645 = vunpack.c.l.bf16 %v1642
  %v1646 = vunpack.c.h.bf16 %v1642
  %v1647 = vsub.f32 %v1637, %v1643
  %v1648 = vsub.f32 %v1638, %v1644
  %v1649 = vsub.f32 %v1639, %v1645
  %v1650 = vsub.f32 %v1640, %v1646
  %v1651 = vpack.c.bf16 %v1648, %v1647
  %v1652 = vpack.c.bf16 %v1650, %v1649
  %v1653 = vpack.c.bf16 %v1627, %v1624
  %v1654 = vpack.c.bf16 %v1628, %v1625
  %v1655 = vpack.c.bf16 %v1629, %v1626
  %v1656 = vpack.c.bf16 %v1633, %v1630
  %v1657 = vpack.c.bf16 %v1634, %v1631
  %v1658 = vpack.c.bf16 %v1635, %v1632
  %v1659 = vunpack.c.l.bf16 %v1653
  %v1660 = vunpack.c.l.bf16 %v1654
  %v1661 = vunpack.c.l.bf16 %v1655
  %v1662 = vunpack.c.h.bf16 %v1653
  %v1663 = vunpack.c.h.bf16 %v1654
  %v1664 = vunpack.c.h.bf16 %v1655
  %v1665 = vunpack.c.l.bf16 %v1656
  %v1666 = vunpack.c.l.bf16 %v1657
  %v1667 = vunpack.c.l.bf16 %v1658
  %v1668 = vunpack.c.h.bf16 %v1656
  %v1669 = vunpack.c.h.bf16 %v1657
  %v1670 = vunpack.c.h.bf16 %v1658
  %v1671 = vsub.f32 %v1624, %v1659
  %v1672 = vsub.f32 %v1625, %v1660
  %v1673 = vsub.f32 %v1626, %v1661
  %v1674 = vsub.f32 %v1627, %v1662
  %v1675 = vsub.f32 %v1628, %v1663
  %v1676 = vsub.f32 %v1629, %v1664
  %v1677 = vsub.f32 %v1630, %v1665
  %v1678 = vsub.f32 %v1631, %v1666
  %v1679 = vsub.f32 %v1632, %v1667
  %v1680 = vsub.f32 %v1633, %v1668
  %v1681 = vsub.f32 %v1634, %v1669
  %v1682 = vsub.f32 %v1635, %v1670
  %v1683 = vpack.c.bf16 %v1674, %v1671
  %v1684 = vpack.c.bf16 %v1675, %v1672
  %v1685 = vpack.c.bf16 %v1676, %v1673
  %v1686 = vpack.c.bf16 %v1680, %v1677
  %v1687 = vpack.c.bf16 %v1681, %v1678
  %v1688 = vpack.c.bf16 %v1682, %v1679
  %v1690 = vsel %vm1032, %v1651, 0
  %v1693 = vsel %vm1032, %v1652, 0
  %1695 = vmatprep.subr.bf16.mxu0 %v1654
  %1696 = vmatpush1.bf16.msra.mxu0 %v1653
  %1697 = vmatprep.subr.bf16.mxu0 %v1657
  %1698 = vmatpush1.bf16.msra.mxu0 %v1656
  %1699 = vmatprep.subr.bf16.mxu0 0
  %1700 = vmatpush1.bf16.msra.mxu0 0
  %1701 = vmatprep.subr.bf16.mxu0 0
  %1702 = vmatpush1.bf16.msra.mxu0 0
  %1703 = vmatprep.subr.bf16.mxu0 0
  %1704 = vmatpush1.bf16.msra.mxu0 0
  %1705 = vmatprep.subr.bf16.mxu0 0
  %1706 = vmatpush1.bf16.msra.mxu0 0
  %1707 = vmatprep.subr.bf16.mxu0 0
  %1708 = vmatpush1.bf16.msra.mxu0 0
  %1709 = vmatprep.subr.bf16.mxu0 0
  %1710 = vmatpush1.bf16.msra.mxu0 0
  %1711 = vmatprep.subr.bf16.mxu0 0
  %1712 = vmatpush1.bf16.msra.mxu0 0
  %1713 = vmatprep.subr.bf16.mxu0 0
  %1714 = vmatpush1.bf16.msra.mxu0 0
  %1715 = vmatprep.subr.bf16.mxu0 0
  %1716 = vmatpush1.bf16.msra.mxu0 0
  %1717 = vmatprep.subr.bf16.mxu0 0
  %1718 = vmatpush1.bf16.msra.mxu0 0
  %1719 = vmatprep.subr.bf16.mxu0 0
  %1720 = vmatpush1.bf16.msra.mxu0 0
  %1721 = vmatprep.subr.bf16.mxu0 0
  %1722 = vmatpush1.bf16.msra.mxu0 0
  %1723 = vmatprep.subr.bf16.mxu0 0
  %1724 = vmatpush1.bf16.msra.mxu0 0
  %1725 = vmatprep.subr.bf16.mxu0 0
  %1726 = vmatpush1.bf16.msra.mxu0 0
  %1727 = vmatprep.mubr.bf16.mxu0 0
  %1728 = vmatmul.mubr.bf16.gmra.mrb[0].mxu0 %v1690
  %v1729 = vpop.f32.mrb[0].mxu0
  %v1730 = vadd.f32 0.0, %v1729
  %v1731 = vpop.f32.mrb[0].mxu0
  %v1732 = vadd.f32 0.0, %v1731
  %v1733 = vpop.f32.mrb[0].mxu0
  %v1734 = vadd.f32 0.0, %v1733
  %v1735 = vpop.f32.mrb[0].mxu0
  %v1736 = vadd.f32 0.0, %v1735
  %1737 = vmatprep.mubr.bf16.mxu0 0
  %1738 = vmatmul.mubr.bf16.gmra.mrb[0].mxu0 %v1693
  %v1739 = vpop.f32.mrb[0].mxu0
  %v1740 = vadd.f32 0.0, %v1739
  %v1741 = vpop.f32.mrb[0].mxu0
  %v1742 = vadd.f32 0.0, %v1741
  %v1743 = vpop.f32.mrb[0].mxu0
  %v1744 = vadd.f32 0.0, %v1743
  %v1745 = vpop.f32.mrb[0].mxu0
  %v1746 = vadd.f32 0.0, %v1745
  %1747 = vdwg.mxu0
  %1748 = vmatprep.subr.bf16.mxu0 0
  %1749 = vmatpush1.bf16.msra.mxu0 %v1655
  %1750 = vmatprep.subr.bf16.mxu0 0
  %1751 = vmatpush1.bf16.msra.mxu0 %v1658
  %1752 = vmatprep.subr.bf16.mxu0 0
  %1753 = vmatpush1.bf16.msra.mxu0 0
  %1754 = vmatprep.subr.bf16.mxu0 0
  %1755 = vmatpush1.bf16.msra.mxu0 0
  %1756 = vmatprep.subr.bf16.mxu0 0
  %1757 = vmatpush1.bf16.msra.mxu0 0
  %1758 = vmatprep.subr.bf16.mxu0 0
  %1759 = vmatpush1.bf16.msra.mxu0 0
  %1760 = vmatprep.subr.bf16.mxu0 0
  %1761 = vmatpush1.bf16.msra.mxu0 0
  %1762 = vmatprep.subr.bf16.mxu0 0
  %1763 = vmatpush1.bf16.msra.mxu0 0
  %1764 = vmatprep.subr.bf16.mxu0 0
  %1765 = vmatpush1.bf16.msra.mxu0 0
  %1766 = vmatprep.subr.bf16.mxu0 0
  %1767 = vmatpush1.bf16.msra.mxu0 0
  %1768 = vmatprep.subr.bf16.mxu0 0
  %1769 = vmatpush1.bf16.msra.mxu0 0
  %1770 = vmatprep.subr.bf16.mxu0 0
  %1771 = vmatpush1.bf16.msra.mxu0 0
  %1772 = vmatprep.subr.bf16.mxu0 0
  %1773 = vmatpush1.bf16.msra.mxu0 0
  %1774 = vmatprep.subr.bf16.mxu0 0
  %1775 = vmatpush1.bf16.msra.mxu0 0
  %1776 = vmatprep.subr.bf16.mxu0 0
  %1777 = vmatpush1.bf16.msra.mxu0 0
  %1778 = vmatprep.subr.bf16.mxu0 0
  %1779 = vmatpush1.bf16.msra.mxu0 0
  %1780 = vmatprep.mubr.bf16.mxu0 0
  %1781 = vmatmul.mubr.bf16.gmra.mrb[0].mxu0 %v1690
  %v1782 = vpop.f32.mrb[0].mxu0
  %v1783 = vadd.f32 0.0, %v1782
  %v1784 = vpop.f32.mrb[0].mxu0
  %v1785 = vpop.f32.mrb[0].mxu0
  %v1786 = vadd.f32 0.0, %v1785
  %v1787 = vpop.f32.mrb[0].mxu0
  %1788 = vmatprep.mubr.bf16.mxu0 0
  %1789 = vmatmul.mubr.bf16.gmra.mrb[0].mxu0 %v1693
  %v1790 = vpop.f32.mrb[0].mxu0
  %v1791 = vadd.f32 0.0, %v1790
  %v1792 = vpop.f32.mrb[0].mxu0
  %v1793 = vpop.f32.mrb[0].mxu0
  %v1794 = vadd.f32 0.0, %v1793
  %v1795 = vpop.f32.mrb[0].mxu0
  %1796 = vdwg.mxu0
  %v1798 = vsel %vm1032, %v1641, 0
  %v1801 = vsel %vm1032, %v1642, 0
  %1803 = vmatprep.subr.bf16.mxu0 %v1654
  %1804 = vmatpush1.bf16.msra.mxu0 %v1653
  %1805 = vmatprep.subr.bf16.mxu0 %v1657
  %1806 = vmatpush1.bf16.msra.mxu0 %v1656
  %1807 = vmatprep.subr.bf16.mxu0 0
  %1808 = vmatpush1.bf16.msra.mxu0 0
  %1809 = vmatprep.subr.bf16.mxu0 0
  %1810 = vmatpush1.bf16.msra.mxu0 0
  %1811 = vmatprep.subr.bf16.mxu0 0
  %1812 = vmatpush1.bf16.msra.mxu0 0
  %1813 = vmatprep.subr.bf16.mxu0 0
  %1814 = vmatpush1.bf16.msra.mxu0 0
  %1815 = vmatprep.subr.bf16.mxu0 0
  %1816 = vmatpush1.bf16.msra.mxu0 0
  %1817 = vmatprep.subr.bf16.mxu0 0
  %1818 = vmatpush1.bf16.msra.mxu0 0
  %1819 = vmatprep.subr.bf16.mxu0 0
  %1820 = vmatpush1.bf16.msra.mxu0 0
  %1821 = vmatprep.subr.bf16.mxu0 0
  %1822 = vmatpush1.bf16.msra.mxu0 0
  %1823 = vmatprep.subr.bf16.mxu0 0
  %1824 = vmatpush1.bf16.msra.mxu0 0
  %1825 = vmatprep.subr.bf16.mxu0 0
  %1826 = vmatpush1.bf16.msra.mxu0 0
  %1827 = vmatprep.subr.bf16.mxu0 0
  %1828 = vmatpush1.bf16.msra.mxu0 0
  %1829 = vmatprep.subr.bf16.mxu0 0
  %1830 = vmatpush1.bf16.msra.mxu0 0
  %1831 = vmatprep.subr.bf16.mxu0 0
  %1832 = vmatpush1.bf16.msra.mxu0 0
  %1833 = vmatprep.subr.bf16.mxu0 0
  %1834 = vmatpush1.bf16.msra.mxu0 0
  %1835 = vmatprep.mubr.bf16.mxu0 0
  %1836 = vmatmul.mubr.bf16.gmra.mrb[0].mxu0 %v1798
  %v1837 = vpop.f32.mrb[0].mxu0
  %v1838 = vadd.f32 %v1730, %v1837
  %v1839 = vpop.f32.mrb[0].mxu0
  %v1840 = vadd.f32 %v1732, %v1839
  %v1841 = vpop.f32.mrb[0].mxu0
  %v1842 = vadd.f32 %v1734, %v1841
  %v1843 = vpop.f32.mrb[0].mxu0
  %v1844 = vadd.f32 %v1736, %v1843
  %1845 = vmatprep.mubr.bf16.mxu0 0
  %1846 = vmatmul.mubr.bf16.gmra.mrb[0].mxu0 %v1801
  %v1847 = vpop.f32.mrb[0].mxu0
  %v1848 = vadd.f32 %v1740, %v1847
  %v1849 = vpop.f32.mrb[0].mxu0
  %v1850 = vadd.f32 %v1742, %v1849
  %v1851 = vpop.f32.mrb[0].mxu0
  %v1852 = vadd.f32 %v1744, %v1851
  %v1853 = vpop.f32.mrb[0].mxu0
  %v1854 = vadd.f32 %v1746, %v1853
  %1855 = vdwg.mxu0
  %1856 = vmatprep.subr.bf16.mxu0 0
  %1857 = vmatpush1.bf16.msra.mxu0 %v1655
  %1858 = vmatprep.subr.bf16.mxu0 0
  %1859 = vmatpush1.bf16.msra.mxu0 %v1658
  %1860 = vmatprep.subr.bf16.mxu0 0
  %1861 = vmatpush1.bf16.msra.mxu0 0
  %1862 = vmatprep.subr.bf16.mxu0 0
  %1863 = vmatpush1.bf16.msra.mxu0 0
  %1864 = vmatprep.subr.bf16.mxu0 0
  %1865 = vmatpush1.bf16.msra.mxu0 0
  %1866 = vmatprep.subr.bf16.mxu0 0
  %1867 = vmatpush1.bf16.msra.mxu0 0
  %1868 = vmatprep.subr.bf16.mxu0 0
  %1869 = vmatpush1.bf16.msra.mxu0 0
  %1870 = vmatprep.subr.bf16.mxu0 0
  %1871 = vmatpush1.bf16.msra.mxu0 0
  %1872 = vmatprep.subr.bf16.mxu0 0
  %1873 = vmatpush1.bf16.msra.mxu0 0
  %1874 = vmatprep.subr.bf16.mxu0 0
  %1875 = vmatpush1.bf16.msra.mxu0 0
  %1876 = vmatprep.subr.bf16.mxu0 0
  %1877 = vmatpush1.bf16.msra.mxu0 0
  %1878 = vmatprep.subr.bf16.mxu0 0
  %1879 = vmatpush1.bf16.msra.mxu0 0
  %1880 = vmatprep.subr.bf16.mxu0 0
  %1881 = vmatpush1.bf16.msra.mxu0 0
  %1882 = vmatprep.subr.bf16.mxu0 0
  %1883 = vmatpush1.bf16.msra.mxu0 0
  %1884 = vmatprep.subr.bf16.mxu0 0
  %1885 = vmatpush1.bf16.msra.mxu0 0
  %1886 = vmatprep.subr.bf16.mxu0 0
  %1887 = vmatpush1.bf16.msra.mxu0 0
  %1888 = vmatprep.mubr.bf16.mxu0 0
  %1889 = vmatmul.mubr.bf16.gmra.mrb[0].mxu0 %v1798
  %v1890 = vpop.f32.mrb[0].mxu0
  %v1891 = vadd.f32 %v1783, %v1890
  %v1892 = vpop.f32.mrb[0].mxu0
  %v1893 = vpop.f32.mrb[0].mxu0
  %v1894 = vadd.f32 %v1786, %v1893
  %v1895 = vpop.f32.mrb[0].mxu0
  %1896 = vmatprep.mubr.bf16.mxu0 0
  %1897 = vmatmul.mubr.bf16.gmra.mrb[0].mxu0 %v1801
  %v1898 = vpop.f32.mrb[0].mxu0
  %v1899 = vadd.f32 %v1791, %v1898
  %v1900 = vpop.f32.mrb[0].mxu0
  %v1901 = vpop.f32.mrb[0].mxu0
  %v1902 = vadd.f32 %v1794, %v1901
  %v1903 = vpop.f32.mrb[0].mxu0
  %1904 = vdwg.mxu0
  %1905 = vmatprep.subr.bf16.mxu0 %v1684
  %1906 = vmatpush1.bf16.msra.mxu0 %v1683
  %1907 = vmatprep.subr.bf16.mxu0 %v1687
  %1908 = vmatpush1.bf16.msra.mxu0 %v1686
  %1909 = vmatprep.subr.bf16.mxu0 0
  %1910 = vmatpush1.bf16.msra.mxu0 0
  %1911 = vmatprep.subr.bf16.mxu0 0
  %1912 = vmatpush1.bf16.msra.mxu0 0
  %1913 = vmatprep.subr.bf16.mxu0 0
  %1914 = vmatpush1.bf16.msra.mxu0 0
  %1915 = vmatprep.subr.bf16.mxu0 0
  %1916 = vmatpush1.bf16.msra.mxu0 0
  %1917 = vmatprep.subr.bf16.mxu0 0
  %1918 = vmatpush1.bf16.msra.mxu0 0
  %1919 = vmatprep.subr.bf16.mxu0 0
  %1920 = vmatpush1.bf16.msra.mxu0 0
  %1921 = vmatprep.subr.bf16.mxu0 0
  %1922 = vmatpush1.bf16.msra.mxu0 0
  %1923 = vmatprep.subr.bf16.mxu0 0
  %1924 = vmatpush1.bf16.msra.mxu0 0
  %1925 = vmatprep.subr.bf16.mxu0 0
  %1926 = vmatpush1.bf16.msra.mxu0 0
  %1927 = vmatprep.subr.bf16.mxu0 0
  %1928 = vmatpush1.bf16.msra.mxu0 0
  %1929 = vmatprep.subr.bf16.mxu0 0
  %1930 = vmatpush1.bf16.msra.mxu0 0
  %1931 = vmatprep.subr.bf16.mxu0 0
  %1932 = vmatpush1.bf16.msra.mxu0 0
  %1933 = vmatprep.subr.bf16.mxu0 0
  %1934 = vmatpush1.bf16.msra.mxu0 0
  %1935 = vmatprep.subr.bf16.mxu0 0
  %1936 = vmatpush1.bf16.msra.mxu0 0
  %1937 = vmatprep.mubr.bf16.mxu0 0
  %1938 = vmatmul.mubr.bf16.gmra.mrb[0].mxu0 %v1798
  %v1939 = vpop.f32.mrb[0].mxu0
  %v1940 = vadd.f32 0.0, %v1939
  %v1941 = vpop.f32.mrb[0].mxu0
  %v1942 = vadd.f32 0.0, %v1941
  %v1943 = vpop.f32.mrb[0].mxu0
  %v1944 = vadd.f32 0.0, %v1943
  %v1945 = vpop.f32.mrb[0].mxu0
  %v1946 = vadd.f32 0.0, %v1945
  %1947 = vmatprep.mubr.bf16.mxu0 0
  %1948 = vmatmul.mubr.bf16.gmra.mrb[0].mxu0 %v1801
  %v1949 = vpop.f32.mrb[0].mxu0
  %v1950 = vadd.f32 0.0, %v1949
  %v1951 = vpop.f32.mrb[0].mxu0
  %v1952 = vadd.f32 0.0, %v1951
  %v1953 = vpop.f32.mrb[0].mxu0
  %v1954 = vadd.f32 0.0, %v1953
  %v1955 = vpop.f32.mrb[0].mxu0
  %v1956 = vadd.f32 0.0, %v1955
  %1957 = vdwg.mxu0
  %1958 = vmatprep.subr.bf16.mxu0 0
  %1959 = vmatpush1.bf16.msra.mxu0 %v1685
  %1960 = vmatprep.subr.bf16.mxu0 0
  %1961 = vmatpush1.bf16.msra.mxu0 %v1688
  %1962 = vmatprep.subr.bf16.mxu0 0
  %1963 = vmatpush1.bf16.msra.mxu0 0
  %1964 = vmatprep.subr.bf16.mxu0 0
  %1965 = vmatpush1.bf16.msra.mxu0 0
  %1966 = vmatprep.subr.bf16.mxu0 0
  %1967 = vmatpush1.bf16.msra.mxu0 0
  %1968 = vmatprep.subr.bf16.mxu0 0
  %1969 = vmatpush1.bf16.msra.mxu0 0
  %1970 = vmatprep.subr.bf16.mxu0 0
  %1971 = vmatpush1.bf16.msra.mxu0 0
  %1972 = vmatprep.subr.bf16.mxu0 0
  %1973 = vmatpush1.bf16.msra.mxu0 0
  %1974 = vmatprep.subr.bf16.mxu0 0
  %1975 = vmatpush1.bf16.msra.mxu0 0
  %1976 = vmatprep.subr.bf16.mxu0 0
  %1977 = vmatpush1.bf16.msra.mxu0 0
  %1978 = vmatprep.subr.bf16.mxu0 0
  %1979 = vmatpush1.bf16.msra.mxu0 0
  %1980 = vmatprep.subr.bf16.mxu0 0
  %1981 = vmatpush1.bf16.msra.mxu0 0
  %1982 = vmatprep.subr.bf16.mxu0 0
  %1983 = vmatpush1.bf16.msra.mxu0 0
  %1984 = vmatprep.subr.bf16.mxu0 0
  %1985 = vmatpush1.bf16.msra.mxu0 0
  %1986 = vmatprep.subr.bf16.mxu0 0
  %1987 = vmatpush1.bf16.msra.mxu0 0
  %1988 = vmatprep.subr.bf16.mxu0 0
  %1989 = vmatpush1.bf16.msra.mxu0 0
  %1990 = vmatprep.mubr.bf16.mxu0 0
  %1991 = vmatmul.mubr.bf16.gmra.mrb[0].mxu0 %v1798
  %v1992 = vpop.f32.mrb[0].mxu0
  %v1993 = vadd.f32 0.0, %v1992
  %v1994 = vpop.f32.mrb[0].mxu0
  %v1995 = vpop.f32.mrb[0].mxu0
  %v1996 = vadd.f32 0.0, %v1995
  %v1997 = vpop.f32.mrb[0].mxu0
  %1998 = vmatprep.mubr.bf16.mxu0 0
  %1999 = vmatmul.mubr.bf16.gmra.mrb[0].mxu0 %v1801
  %v2000 = vpop.f32.mrb[0].mxu0
  %v2001 = vadd.f32 0.0, %v2000
  %v2002 = vpop.f32.mrb[0].mxu0
  %v2003 = vpop.f32.mrb[0].mxu0
  %v2004 = vadd.f32 0.0, %v2003
  %v2005 = vpop.f32.mrb[0].mxu0
  %2006 = vdwg.mxu0
  %v2007 = vadd.f32 %v1838, %v1940
  %v2008 = vadd.f32 %v1840, %v1942
  %v2009 = vadd.f32 %v1891, %v1993
  %v2010 = vadd.f32 %v1842, %v1944
  %v2011 = vadd.f32 %v1844, %v1946
  %v2012 = vadd.f32 %v1894, %v1996
  %v2013 = vadd.f32 %v1848, %v1950
  %v2014 = vadd.f32 %v1850, %v1952
  %v2015 = vadd.f32 %v1899, %v2001
  %v2016 = vadd.f32 %v1852, %v1954
  %v2017 = vadd.f32 %v1854, %v1956
  %v2018 = vadd.f32 %v1902, %v2004
  %s2019 = scalar_lea.vmem %s4, 192
  %v2020 = vld [vmem:[%s2019] sm:$0xff]
  %v2021 = vld [vmem:[%s2019 + $0x8] sm:$0xff]
  %v2022 = vld [vmem:[%s2019 + $0x10] sm:$0xff]
  %v2023 = vld [vmem:[%s2019 + $0x18] sm:$0xff]
  %s2024 = scalar_lea.vmem %s4, 224
  %v2025 = vld [vmem:[%s2024] sm:$0xff]
  %v2026 = vld [vmem:[%s2024 + $0x8] sm:$0xff]
  %v2027 = vld [vmem:[%s2024 + $0x10] sm:$0xff]
  %v2028 = vld [vmem:[%s2024 + $0x18] sm:$0xff]
  %s2029 = scalar_lea.vmem %s4, 256
  %v2030 = vld [vmem:[%s2029] sm:$0xff]
  %v2031 = vld [vmem:[%s2029 + $0x8] sm:$0xff]
  %v2032 = vld [vmem:[%s2029 + $0x10] sm:$0xff]
  %v2033 = vld [vmem:[%s2029 + $0x18] sm:$0xff]
  %2035 = vset.pattern.permute.xlu0 0
  %2036 = vperm.xlu0 %2035, %v2020
  %v2037 = vpop.permute.xlu0 %2036
  %2040 = vset.pattern.permute.xlu0 0
  %2041 = vperm.xlu0 %2040, %v2021
  %v2042 = vpop.permute.xlu0 %2041
  %2045 = vset.pattern.permute.xlu0 0
  %2046 = vperm.xlu0 %2045, %v2022
  %v2047 = vpop.permute.xlu0 %2046
  %2050 = vset.pattern.permute.xlu0 0
  %2051 = vperm.xlu0 %2050, %v2023
  %v2052 = vpop.permute.xlu0 %2051
  %v2054 = vadd.f32 %v2007, %v2037
  %v2055 = vadd.f32 %v2008, %v2037
  %v2056 = vadd.f32 %v2009, %v2037
  %v2057 = vadd.f32 %v2010, %v2042
  %v2058 = vadd.f32 %v2011, %v2042
  %v2059 = vadd.f32 %v2012, %v2042
  %v2060 = vadd.f32 %v2013, %v2047
  %v2061 = vadd.f32 %v2014, %v2047
  %v2062 = vadd.f32 %v2015, %v2047
  %v2063 = vadd.f32 %v2016, %v2052
  %v2064 = vadd.f32 %v2017, %v2052
  %v2065 = vadd.f32 %v2018, %v2052
  %v2066 = vadd.f32 %v2054, %v2057
  %v2067 = vadd.f32 %v2066, %v2060
  %v2068 = vadd.f32 %v2067, %v2063
  %v2069 = vrot.slane %v2068, 4
  %v2070 = vadd.f32 %v2068, %v2069
  %v2071 = vrot.slane %v2070, 2
  %v2072 = vadd.f32 %v2070, %v2071
  %v2073 = vrot.slane %v2072, 1
  %v2074 = vadd.f32 %v2072, %v2073
  %v2075 = vadd.f32 %v2055, %v2058
  %v2076 = vadd.f32 %v2075, %v2061
  %v2077 = vadd.f32 %v2076, %v2064
  %v2078 = vrot.slane %v2077, 4
  %v2079 = vadd.f32 %v2077, %v2078
  %v2080 = vrot.slane %v2079, 2
  %v2081 = vadd.f32 %v2079, %v2080
  %v2082 = vrot.slane %v2081, 1
  %v2083 = vadd.f32 %v2081, %v2082
  %v2084 = vadd.f32 %v2056, %v2059
  %v2085 = vadd.f32 %v2084, %v2062
  %v2086 = vadd.f32 %v2085, %v2065
  %v2087 = vrot.slane %v2086, 4
  %v2088 = vadd.f32 %v2086, %v2087
  %v2089 = vrot.slane %v2088, 2
  %v2090 = vadd.f32 %v2088, %v2089
  %v2091 = vrot.slane %v2090, 1
  %v2092 = vadd.f32 %v2090, %v2091
  %v2093 = vmul.f32 %v2074, %v780
  %v2094 = vmul.f32 %v2083, %v780
  %v2095 = vmul.f32 %v2092, %v780
  %v2096 = vsub.f32 %v2054, %v2093
  %v2097 = vsub.f32 %v2055, %v2094
  %v2098 = vsub.f32 %v2056, %v2095
  %v2099 = vsub.f32 %v2057, %v2093
  %v2100 = vsub.f32 %v2058, %v2094
  %v2101 = vsub.f32 %v2059, %v2095
  %v2102 = vsub.f32 %v2060, %v2093
  %v2103 = vsub.f32 %v2061, %v2094
  %v2104 = vsub.f32 %v2062, %v2095
  %v2105 = vsub.f32 %v2063, %v2093
  %v2106 = vsub.f32 %v2064, %v2094
  %v2107 = vsub.f32 %v2065, %v2095
  %v2108 = vmul.f32 %v2096, %v2096
  %v2109 = vmul.f32 %v2097, %v2097
  %v2110 = vmul.f32 %v2098, %v2098
  %v2111 = vmul.f32 %v2099, %v2099
  %v2112 = vmul.f32 %v2100, %v2100
  %v2113 = vmul.f32 %v2101, %v2101
  %v2114 = vmul.f32 %v2102, %v2102
  %v2115 = vmul.f32 %v2103, %v2103
  %v2116 = vmul.f32 %v2104, %v2104
  %v2117 = vmul.f32 %v2105, %v2105
  %v2118 = vmul.f32 %v2106, %v2106
  %v2119 = vmul.f32 %v2107, %v2107
  %v2120 = vadd.f32 %v2108, %v2111
  %v2121 = vadd.f32 %v2120, %v2114
  %v2122 = vadd.f32 %v2121, %v2117
  %v2123 = vrot.slane %v2122, 4
  %v2124 = vadd.f32 %v2122, %v2123
  %v2125 = vrot.slane %v2124, 2
  %v2126 = vadd.f32 %v2124, %v2125
  %v2127 = vrot.slane %v2126, 1
  %v2128 = vadd.f32 %v2126, %v2127
  %v2129 = vadd.f32 %v2109, %v2112
  %v2130 = vadd.f32 %v2129, %v2115
  %v2131 = vadd.f32 %v2130, %v2118
  %v2132 = vrot.slane %v2131, 4
  %v2133 = vadd.f32 %v2131, %v2132
  %v2134 = vrot.slane %v2133, 2
  %v2135 = vadd.f32 %v2133, %v2134
  %v2136 = vrot.slane %v2135, 1
  %v2137 = vadd.f32 %v2135, %v2136
  %v2138 = vadd.f32 %v2110, %v2113
  %v2139 = vadd.f32 %v2138, %v2116
  %v2140 = vadd.f32 %v2139, %v2119
  %v2141 = vrot.slane %v2140, 4
  %v2142 = vadd.f32 %v2140, %v2141
  %v2143 = vrot.slane %v2142, 2
  %v2144 = vadd.f32 %v2142, %v2143
  %v2145 = vrot.slane %v2144, 1
  %v2146 = vadd.f32 %v2144, %v2145
  %v2147 = vmul.f32 %v2128, %v780
  %v2148 = vmul.f32 %v2137, %v780
  %v2149 = vmul.f32 %v2146, %v780
  %v2150 = vadd.f32 %v2147, 1e-05
  %v2151 = vadd.f32 %v2148, 1e-05
  %v2152 = vadd.f32 %v2149, 1e-05
  %v2153 = vrsqrt.pop %v2150
  %v2154 = vrsqrt.pop %v2151
  %v2155 = vrsqrt.pop %v2152
  %v2156 = vmul.f32 %v2096, %v2153
  %v2157 = vmul.f32 %v2097, %v2154
  %v2158 = vmul.f32 %v2098, %v2155
  %v2159 = vmul.f32 %v2099, %v2153
  %v2160 = vmul.f32 %v2100, %v2154
  %v2161 = vmul.f32 %v2101, %v2155
  %v2162 = vmul.f32 %v2102, %v2153
  %v2163 = vmul.f32 %v2103, %v2154
  %v2164 = vmul.f32 %v2104, %v2155
  %v2165 = vmul.f32 %v2105, %v2153
  %v2166 = vmul.f32 %v2106, %v2154
  %v2167 = vmul.f32 %v2107, %v2155
  %2169 = vset.pattern.permute.xlu0 0
  %2170 = vperm.xlu0 %2169, %v2025
  %v2171 = vpop.permute.xlu0 %2170
  %2174 = vset.pattern.permute.xlu0 0
  %2175 = vperm.xlu0 %2174, %v2026
  %v2176 = vpop.permute.xlu0 %2175
  %2179 = vset.pattern.permute.xlu0 0
  %2180 = vperm.xlu0 %2179, %v2027
  %v2181 = vpop.permute.xlu0 %2180
  %2184 = vset.pattern.permute.xlu0 0
  %2185 = vperm.xlu0 %2184, %v2028
  %v2186 = vpop.permute.xlu0 %2185
  %v2188 = vmul.f32 %v2156, %v2171
  %v2189 = vmul.f32 %v2157, %v2171
  %v2190 = vmul.f32 %v2158, %v2171
  %v2191 = vmul.f32 %v2159, %v2176
  %v2192 = vmul.f32 %v2160, %v2176
  %v2193 = vmul.f32 %v2161, %v2176
  %v2194 = vmul.f32 %v2162, %v2181
  %v2195 = vmul.f32 %v2163, %v2181
  %v2196 = vmul.f32 %v2164, %v2181
  %v2197 = vmul.f32 %v2165, %v2186
  %v2198 = vmul.f32 %v2166, %v2186
  %v2199 = vmul.f32 %v2167, %v2186
  %2201 = vset.pattern.permute.xlu0 0
  %2202 = vperm.xlu0 %2201, %v2030
  %v2203 = vpop.permute.xlu0 %2202
  %2206 = vset.pattern.permute.xlu0 0
  %2207 = vperm.xlu0 %2206, %v2031
  %v2208 = vpop.permute.xlu0 %2207
  %2211 = vset.pattern.permute.xlu0 0
  %2212 = vperm.xlu0 %2211, %v2032
  %v2213 = vpop.permute.xlu0 %2212
  %2216 = vset.pattern.permute.xlu0 0
  %2217 = vperm.xlu0 %2216, %v2033
  %v2218 = vpop.permute.xlu0 %2217
  %v2220 = vadd.f32 %v2188, %v2203
  %v2221 = vadd.f32 %v2189, %v2203
  %v2222 = vadd.f32 %v2190, %v2203
  %v2223 = vadd.f32 %v2191, %v2208
  %v2224 = vadd.f32 %v2192, %v2208
  %v2225 = vadd.f32 %v2193, %v2208
  %v2226 = vadd.f32 %v2194, %v2213
  %v2227 = vadd.f32 %v2195, %v2213
  %v2228 = vadd.f32 %v2196, %v2213
  %v2229 = vadd.f32 %v2197, %v2218
  %v2230 = vadd.f32 %v2198, %v2218
  %v2231 = vadd.f32 %v2199, %v2218
  %v2232 = vmul.f32 %v2220, 0.5
  %v2233 = vmul.f32 %v2221, 0.5
  %v2234 = vmul.f32 %v2222, 0.5
  %v2235 = vmul.f32 %v2223, 0.5
  %v2236 = vmul.f32 %v2224, 0.5
  %v2237 = vmul.f32 %v2225, 0.5
  %v2238 = vmul.f32 %v2226, 0.5
  %v2239 = vmul.f32 %v2227, 0.5
  %v2240 = vmul.f32 %v2228, 0.5
  %v2241 = vmul.f32 %v2229, 0.5
  %v2242 = vmul.f32 %v2230, 0.5
  %v2243 = vmul.f32 %v2231, 0.5
  %v2244 = vmul.f32 %v2220, 0.70710677
  %v2245 = vmul.f32 %v2221, 0.70710677
  %v2246 = vmul.f32 %v2222, 0.70710677
  %v2247 = vmul.f32 %v2223, 0.70710677
  %v2248 = vmul.f32 %v2224, 0.70710677
  %v2249 = vmul.f32 %v2225, 0.70710677
  %v2250 = vmul.f32 %v2226, 0.70710677
  %v2251 = vmul.f32 %v2227, 0.70710677
  %v2252 = vmul.f32 %v2228, 0.70710677
  %v2253 = vmul.f32 %v2229, 0.70710677
  %v2254 = vmul.f32 %v2230, 0.70710677
  %v2255 = vmul.f32 %v2231, 0.70710677
  %v2256 = verf.f32.pop %v2244
  %v2257 = verf.f32.pop %v2245
  %v2258 = verf.f32.pop %v2246
  %v2259 = verf.f32.pop %v2247
  %v2260 = verf.f32.pop %v2248
  %v2261 = verf.f32.pop %v2249
  %v2262 = verf.f32.pop %v2250
  %v2263 = verf.f32.pop %v2251
  %v2264 = verf.f32.pop %v2252
  %v2265 = verf.f32.pop %v2253
  %v2266 = verf.f32.pop %v2254
  %v2267 = verf.f32.pop %v2255
  %v2268 = vadd.f32 %v2256, 1.0
  %v2269 = vadd.f32 %v2257, 1.0
  %v2270 = vadd.f32 %v2258, 1.0
  %v2271 = vadd.f32 %v2259, 1.0
  %v2272 = vadd.f32 %v2260, 1.0
  %v2273 = vadd.f32 %v2261, 1.0
  %v2274 = vadd.f32 %v2262, 1.0
  %v2275 = vadd.f32 %v2263, 1.0
  %v2276 = vadd.f32 %v2264, 1.0
  %v2277 = vadd.f32 %v2265, 1.0
  %v2278 = vadd.f32 %v2266, 1.0
  %v2279 = vadd.f32 %v2267, 1.0
  %v2280 = vmul.f32 %v2232, %v2268
  %v2281 = vmul.f32 %v2233, %v2269
  %v2282 = vmul.f32 %v2234, %v2270
  %v2283 = vmul.f32 %v2235, %v2271
  %v2284 = vmul.f32 %v2236, %v2272
  %v2285 = vmul.f32 %v2237, %v2273
  %v2286 = vmul.f32 %v2238, %v2274
  %v2287 = vmul.f32 %v2239, %v2275
  %v2288 = vmul.f32 %v2240, %v2276
  %v2289 = vmul.f32 %v2241, %v2277
  %v2290 = vmul.f32 %v2242, %v2278
  %v2291 = vmul.f32 %v2243, %v2279
  %s2292 = scalar_lea.vmem %s2, 64
  %v2293 = vld [vmem:[%s2292] sm:$0xff]
  %v2294 = vld [vmem:[%s2292 + $0x8] sm:$0xff]
  %v2295 = vld [vmem:[%s2292 + $0x10] sm:$0xff]
  %v2296 = vld [vmem:[%s2292 + $0x18] sm:$0xff]
  %v2297 = vpack.c.bf16 %v2294, %v2293
  %v2298 = vpack.c.bf16 %v2296, %v2295
  %v2299 = vunpack.c.l.bf16 %v2297
  %v2300 = vunpack.c.h.bf16 %v2297
  %v2301 = vunpack.c.l.bf16 %v2298
  %v2302 = vunpack.c.h.bf16 %v2298
  %v2303 = vsub.f32 %v2293, %v2299
  %v2304 = vsub.f32 %v2294, %v2300
  %v2305 = vsub.f32 %v2295, %v2301
  %v2306 = vsub.f32 %v2296, %v2302
  %v2307 = vpack.c.bf16 %v2304, %v2303
  %v2308 = vpack.c.bf16 %v2306, %v2305
  %v2309 = vpack.c.bf16 %v2283, %v2280
  %v2310 = vpack.c.bf16 %v2284, %v2281
  %v2311 = vpack.c.bf16 %v2285, %v2282
  %v2312 = vpack.c.bf16 %v2289, %v2286
  %v2313 = vpack.c.bf16 %v2290, %v2287
  %v2314 = vpack.c.bf16 %v2291, %v2288
  %v2315 = vunpack.c.l.bf16 %v2309
  %v2316 = vunpack.c.l.bf16 %v2310
  %v2317 = vunpack.c.l.bf16 %v2311
  %v2318 = vunpack.c.h.bf16 %v2309
  %v2319 = vunpack.c.h.bf16 %v2310
  %v2320 = vunpack.c.h.bf16 %v2311
  %v2321 = vunpack.c.l.bf16 %v2312
  %v2322 = vunpack.c.l.bf16 %v2313
  %v2323 = vunpack.c.l.bf16 %v2314
  %v2324 = vunpack.c.h.bf16 %v2312
  %v2325 = vunpack.c.h.bf16 %v2313
  %v2326 = vunpack.c.h.bf16 %v2314
  %v2327 = vsub.f32 %v2280, %v2315
  %v2328 = vsub.f32 %v2281, %v2316
  %v2329 = vsub.f32 %v2282, %v2317
  %v2330 = vsub.f32 %v2283, %v2318
  %v2331 = vsub.f32 %v2284, %v2319
  %v2332 = vsub.f32 %v2285, %v2320
  %v2333 = vsub.f32 %v2286, %v2321
  %v2334 = vsub.f32 %v2287, %v2322
  %v2335 = vsub.f32 %v2288, %v2323
  %v2336 = vsub.f32 %v2289, %v2324
  %v2337 = vsub.f32 %v2290, %v2325
  %v2338 = vsub.f32 %v2291, %v2326
  %v2339 = vpack.c.bf16 %v2330, %v2327
  %v2340 = vpack.c.bf16 %v2331, %v2328
  %v2341 = vpack.c.bf16 %v2332, %v2329
  %v2342 = vpack.c.bf16 %v2336, %v2333
  %v2343 = vpack.c.bf16 %v2337, %v2334
  %v2344 = vpack.c.bf16 %v2338, %v2335
  %v2346 = vsel %vm1032, %v2307, 0
  %v2349 = vsel %vm1032, %v2308, 0
  %2351 = vmatprep.subr.bf16.mxu0 %v2310
  %2352 = vmatpush1.bf16.msra.mxu0 %v2309
  %2353 = vmatprep.subr.bf16.mxu0 %v2313
  %2354 = vmatpush1.bf16.msra.mxu0 %v2312
  %2355 = vmatprep.subr.bf16.mxu0 0
  %2356 = vmatpush1.bf16.msra.mxu0 0
  %2357 = vmatprep.subr.bf16.mxu0 0
  %2358 = vmatpush1.bf16.msra.mxu0 0
  %2359 = vmatprep.subr.bf16.mxu0 0
  %2360 = vmatpush1.bf16.msra.mxu0 0
  %2361 = vmatprep.subr.bf16.mxu0 0
  %2362 = vmatpush1.bf16.msra.mxu0 0
  %2363 = vmatprep.subr.bf16.mxu0 0
  %2364 = vmatpush1.bf16.msra.mxu0 0
  %2365 = vmatprep.subr.bf16.mxu0 0
  %2366 = vmatpush1.bf16.msra.mxu0 0
  %2367 = vmatprep.subr.bf16.mxu0 0
  %2368 = vmatpush1.bf16.msra.mxu0 0
  %2369 = vmatprep.subr.bf16.mxu0 0
  %2370 = vmatpush1.bf16.msra.mxu0 0
  %2371 = vmatprep.subr.bf16.mxu0 0
  %2372 = vmatpush1.bf16.msra.mxu0 0
  %2373 = vmatprep.subr.bf16.mxu0 0
  %2374 = vmatpush1.bf16.msra.mxu0 0
  %2375 = vmatprep.subr.bf16.mxu0 0
  %2376 = vmatpush1.bf16.msra.mxu0 0
  %2377 = vmatprep.subr.bf16.mxu0 0
  %2378 = vmatpush1.bf16.msra.mxu0 0
  %2379 = vmatprep.subr.bf16.mxu0 0
  %2380 = vmatpush1.bf16.msra.mxu0 0
  %2381 = vmatprep.subr.bf16.mxu0 0
  %2382 = vmatpush1.bf16.msra.mxu0 0
  %2383 = vmatprep.mubr.bf16.mxu0 0
  %2384 = vmatmul.mubr.bf16.gmra.mrb[0].mxu0 %v2346
  %v2385 = vpop.f32.mrb[0].mxu0
  %v2386 = vadd.f32 0.0, %v2385
  %v2387 = vpop.f32.mrb[0].mxu0
  %v2388 = vadd.f32 0.0, %v2387
  %v2389 = vpop.f32.mrb[0].mxu0
  %v2390 = vadd.f32 0.0, %v2389
  %v2391 = vpop.f32.mrb[0].mxu0
  %v2392 = vadd.f32 0.0, %v2391
  %2393 = vmatprep.mubr.bf16.mxu0 0
  %2394 = vmatmul.mubr.bf16.gmra.mrb[0].mxu0 %v2349
  %v2395 = vpop.f32.mrb[0].mxu0
  %v2396 = vadd.f32 0.0, %v2395
  %v2397 = vpop.f32.mrb[0].mxu0
  %v2398 = vadd.f32 0.0, %v2397
  %v2399 = vpop.f32.mrb[0].mxu0
  %v2400 = vadd.f32 0.0, %v2399
  %v2401 = vpop.f32.mrb[0].mxu0
  %v2402 = vadd.f32 0.0, %v2401
  %2403 = vdwg.mxu0
  %2404 = vmatprep.subr.bf16.mxu0 0
  %2405 = vmatpush1.bf16.msra.mxu0 %v2311
  %2406 = vmatprep.subr.bf16.mxu0 0
  %2407 = vmatpush1.bf16.msra.mxu0 %v2314
  %2408 = vmatprep.subr.bf16.mxu0 0
  %2409 = vmatpush1.bf16.msra.mxu0 0
  %2410 = vmatprep.subr.bf16.mxu0 0
  %2411 = vmatpush1.bf16.msra.mxu0 0
  %2412 = vmatprep.subr.bf16.mxu0 0
  %2413 = vmatpush1.bf16.msra.mxu0 0
  %2414 = vmatprep.subr.bf16.mxu0 0
  %2415 = vmatpush1.bf16.msra.mxu0 0
  %2416 = vmatprep.subr.bf16.mxu0 0
  %2417 = vmatpush1.bf16.msra.mxu0 0
  %2418 = vmatprep.subr.bf16.mxu0 0
  %2419 = vmatpush1.bf16.msra.mxu0 0
  %2420 = vmatprep.subr.bf16.mxu0 0
  %2421 = vmatpush1.bf16.msra.mxu0 0
  %2422 = vmatprep.subr.bf16.mxu0 0
  %2423 = vmatpush1.bf16.msra.mxu0 0
  %2424 = vmatprep.subr.bf16.mxu0 0
  %2425 = vmatpush1.bf16.msra.mxu0 0
  %2426 = vmatprep.subr.bf16.mxu0 0
  %2427 = vmatpush1.bf16.msra.mxu0 0
  %2428 = vmatprep.subr.bf16.mxu0 0
  %2429 = vmatpush1.bf16.msra.mxu0 0
  %2430 = vmatprep.subr.bf16.mxu0 0
  %2431 = vmatpush1.bf16.msra.mxu0 0
  %2432 = vmatprep.subr.bf16.mxu0 0
  %2433 = vmatpush1.bf16.msra.mxu0 0
  %2434 = vmatprep.subr.bf16.mxu0 0
  %2435 = vmatpush1.bf16.msra.mxu0 0
  %2436 = vmatprep.mubr.bf16.mxu0 0
  %2437 = vmatmul.mubr.bf16.gmra.mrb[0].mxu0 %v2346
  %v2438 = vpop.f32.mrb[0].mxu0
  %v2439 = vadd.f32 0.0, %v2438
  %v2440 = vpop.f32.mrb[0].mxu0
  %v2441 = vpop.f32.mrb[0].mxu0
  %v2442 = vadd.f32 0.0, %v2441
  %v2443 = vpop.f32.mrb[0].mxu0
  %2444 = vmatprep.mubr.bf16.mxu0 0
  %2445 = vmatmul.mubr.bf16.gmra.mrb[0].mxu0 %v2349
  %v2446 = vpop.f32.mrb[0].mxu0
  %v2447 = vadd.f32 0.0, %v2446
  %v2448 = vpop.f32.mrb[0].mxu0
  %v2449 = vpop.f32.mrb[0].mxu0
  %v2450 = vadd.f32 0.0, %v2449
  %v2451 = vpop.f32.mrb[0].mxu0
  %2452 = vdwg.mxu0
  %v2454 = vsel %vm1032, %v2297, 0
  %v2457 = vsel %vm1032, %v2298, 0
  %2459 = vmatprep.subr.bf16.mxu0 %v2310
  %2460 = vmatpush1.bf16.msra.mxu0 %v2309
  %2461 = vmatprep.subr.bf16.mxu0 %v2313
  %2462 = vmatpush1.bf16.msra.mxu0 %v2312
  %2463 = vmatprep.subr.bf16.mxu0 0
  %2464 = vmatpush1.bf16.msra.mxu0 0
  %2465 = vmatprep.subr.bf16.mxu0 0
  %2466 = vmatpush1.bf16.msra.mxu0 0
  %2467 = vmatprep.subr.bf16.mxu0 0
  %2468 = vmatpush1.bf16.msra.mxu0 0
  %2469 = vmatprep.subr.bf16.mxu0 0
  %2470 = vmatpush1.bf16.msra.mxu0 0
  %2471 = vmatprep.subr.bf16.mxu0 0
  %2472 = vmatpush1.bf16.msra.mxu0 0
  %2473 = vmatprep.subr.bf16.mxu0 0
  %2474 = vmatpush1.bf16.msra.mxu0 0
  %2475 = vmatprep.subr.bf16.mxu0 0
  %2476 = vmatpush1.bf16.msra.mxu0 0
  %2477 = vmatprep.subr.bf16.mxu0 0
  %2478 = vmatpush1.bf16.msra.mxu0 0
  %2479 = vmatprep.subr.bf16.mxu0 0
  %2480 = vmatpush1.bf16.msra.mxu0 0
  %2481 = vmatprep.subr.bf16.mxu0 0
  %2482 = vmatpush1.bf16.msra.mxu0 0
  %2483 = vmatprep.subr.bf16.mxu0 0
  %2484 = vmatpush1.bf16.msra.mxu0 0
  %2485 = vmatprep.subr.bf16.mxu0 0
  %2486 = vmatpush1.bf16.msra.mxu0 0
  %2487 = vmatprep.subr.bf16.mxu0 0
  %2488 = vmatpush1.bf16.msra.mxu0 0
  %2489 = vmatprep.subr.bf16.mxu0 0
  %2490 = vmatpush1.bf16.msra.mxu0 0
  %2491 = vmatprep.mubr.bf16.mxu0 0
  %2492 = vmatmul.mubr.bf16.gmra.mrb[0].mxu0 %v2454
  %v2493 = vpop.f32.mrb[0].mxu0
  %v2494 = vadd.f32 %v2386, %v2493
  %v2495 = vpop.f32.mrb[0].mxu0
  %v2496 = vadd.f32 %v2388, %v2495
  %v2497 = vpop.f32.mrb[0].mxu0
  %v2498 = vadd.f32 %v2390, %v2497
  %v2499 = vpop.f32.mrb[0].mxu0
  %v2500 = vadd.f32 %v2392, %v2499
  %2501 = vmatprep.mubr.bf16.mxu0 0
  %2502 = vmatmul.mubr.bf16.gmra.mrb[0].mxu0 %v2457
  %v2503 = vpop.f32.mrb[0].mxu0
  %v2504 = vadd.f32 %v2396, %v2503
  %v2505 = vpop.f32.mrb[0].mxu0
  %v2506 = vadd.f32 %v2398, %v2505
  %v2507 = vpop.f32.mrb[0].mxu0
  %v2508 = vadd.f32 %v2400, %v2507
  %v2509 = vpop.f32.mrb[0].mxu0
  %v2510 = vadd.f32 %v2402, %v2509
  %2511 = vdwg.mxu0
  %2512 = vmatprep.subr.bf16.mxu0 0
  %2513 = vmatpush1.bf16.msra.mxu0 %v2311
  %2514 = vmatprep.subr.bf16.mxu0 0
  %2515 = vmatpush1.bf16.msra.mxu0 %v2314
  %2516 = vmatprep.subr.bf16.mxu0 0
  %2517 = vmatpush1.bf16.msra.mxu0 0
  %2518 = vmatprep.subr.bf16.mxu0 0
  %2519 = vmatpush1.bf16.msra.mxu0 0
  %2520 = vmatprep.subr.bf16.mxu0 0
  %2521 = vmatpush1.bf16.msra.mxu0 0
  %2522 = vmatprep.subr.bf16.mxu0 0
  %2523 = vmatpush1.bf16.msra.mxu0 0
  %2524 = vmatprep.subr.bf16.mxu0 0
  %2525 = vmatpush1.bf16.msra.mxu0 0
  %2526 = vmatprep.subr.bf16.mxu0 0
  %2527 = vmatpush1.bf16.msra.mxu0 0
  %2528 = vmatprep.subr.bf16.mxu0 0
  %2529 = vmatpush1.bf16.msra.mxu0 0
  %2530 = vmatprep.subr.bf16.mxu0 0
  %2531 = vmatpush1.bf16.msra.mxu0 0
  %2532 = vmatprep.subr.bf16.mxu0 0
  %2533 = vmatpush1.bf16.msra.mxu0 0
  %2534 = vmatprep.subr.bf16.mxu0 0
  %2535 = vmatpush1.bf16.msra.mxu0 0
  %2536 = vmatprep.subr.bf16.mxu0 0
  %2537 = vmatpush1.bf16.msra.mxu0 0
  %2538 = vmatprep.subr.bf16.mxu0 0
  %2539 = vmatpush1.bf16.msra.mxu0 0
  %2540 = vmatprep.subr.bf16.mxu0 0
  %2541 = vmatpush1.bf16.msra.mxu0 0
  %2542 = vmatprep.subr.bf16.mxu0 0
  %2543 = vmatpush1.bf16.msra.mxu0 0
  %2544 = vmatprep.mubr.bf16.mxu0 0
  %2545 = vmatmul.mubr.bf16.gmra.mrb[0].mxu0 %v2454
  %v2546 = vpop.f32.mrb[0].mxu0
  %v2547 = vadd.f32 %v2439, %v2546
  %v2548 = vpop.f32.mrb[0].mxu0
  %v2549 = vpop.f32.mrb[0].mxu0
  %v2550 = vadd.f32 %v2442, %v2549
  %v2551 = vpop.f32.mrb[0].mxu0
  %2552 = vmatprep.mubr.bf16.mxu0 0
  %2553 = vmatmul.mubr.bf16.gmra.mrb[0].mxu0 %v2457
  %v2554 = vpop.f32.mrb[0].mxu0
  %v2555 = vadd.f32 %v2447, %v2554
  %v2556 = vpop.f32.mrb[0].mxu0
  %v2557 = vpop.f32.mrb[0].mxu0
  %v2558 = vadd.f32 %v2450, %v2557
  %v2559 = vpop.f32.mrb[0].mxu0
  %2560 = vdwg.mxu0
  %2561 = vmatprep.subr.bf16.mxu0 %v2340
  %2562 = vmatpush1.bf16.msra.mxu0 %v2339
  %2563 = vmatprep.subr.bf16.mxu0 %v2343
  %2564 = vmatpush1.bf16.msra.mxu0 %v2342
  %2565 = vmatprep.subr.bf16.mxu0 0
  %2566 = vmatpush1.bf16.msra.mxu0 0
  %2567 = vmatprep.subr.bf16.mxu0 0
  %2568 = vmatpush1.bf16.msra.mxu0 0
  %2569 = vmatprep.subr.bf16.mxu0 0
  %2570 = vmatpush1.bf16.msra.mxu0 0
  %2571 = vmatprep.subr.bf16.mxu0 0
  %2572 = vmatpush1.bf16.msra.mxu0 0
  %2573 = vmatprep.subr.bf16.mxu0 0
  %2574 = vmatpush1.bf16.msra.mxu0 0
  %2575 = vmatprep.subr.bf16.mxu0 0
  %2576 = vmatpush1.bf16.msra.mxu0 0
  %2577 = vmatprep.subr.bf16.mxu0 0
  %2578 = vmatpush1.bf16.msra.mxu0 0
  %2579 = vmatprep.subr.bf16.mxu0 0
  %2580 = vmatpush1.bf16.msra.mxu0 0
  %2581 = vmatprep.subr.bf16.mxu0 0
  %2582 = vmatpush1.bf16.msra.mxu0 0
  %2583 = vmatprep.subr.bf16.mxu0 0
  %2584 = vmatpush1.bf16.msra.mxu0 0
  %2585 = vmatprep.subr.bf16.mxu0 0
  %2586 = vmatpush1.bf16.msra.mxu0 0
  %2587 = vmatprep.subr.bf16.mxu0 0
  %2588 = vmatpush1.bf16.msra.mxu0 0
  %2589 = vmatprep.subr.bf16.mxu0 0
  %2590 = vmatpush1.bf16.msra.mxu0 0
  %2591 = vmatprep.subr.bf16.mxu0 0
  %2592 = vmatpush1.bf16.msra.mxu0 0
  %2593 = vmatprep.mubr.bf16.mxu0 0
  %2594 = vmatmul.mubr.bf16.gmra.mrb[0].mxu0 %v2454
  %v2595 = vpop.f32.mrb[0].mxu0
  %v2596 = vadd.f32 0.0, %v2595
  %v2597 = vpop.f32.mrb[0].mxu0
  %v2598 = vadd.f32 0.0, %v2597
  %v2599 = vpop.f32.mrb[0].mxu0
  %v2600 = vadd.f32 0.0, %v2599
  %v2601 = vpop.f32.mrb[0].mxu0
  %v2602 = vadd.f32 0.0, %v2601
  %2603 = vmatprep.mubr.bf16.mxu0 0
  %2604 = vmatmul.mubr.bf16.gmra.mrb[0].mxu0 %v2457
  %v2605 = vpop.f32.mrb[0].mxu0
  %v2606 = vadd.f32 0.0, %v2605
  %v2607 = vpop.f32.mrb[0].mxu0
  %v2608 = vadd.f32 0.0, %v2607
  %v2609 = vpop.f32.mrb[0].mxu0
  %v2610 = vadd.f32 0.0, %v2609
  %v2611 = vpop.f32.mrb[0].mxu0
  %v2612 = vadd.f32 0.0, %v2611
  %2613 = vdwg.mxu0
  %2614 = vmatprep.subr.bf16.mxu0 0
  %2615 = vmatpush1.bf16.msra.mxu0 %v2341
  %2616 = vmatprep.subr.bf16.mxu0 0
  %2617 = vmatpush1.bf16.msra.mxu0 %v2344
  %2618 = vmatprep.subr.bf16.mxu0 0
  %2619 = vmatpush1.bf16.msra.mxu0 0
  %2620 = vmatprep.subr.bf16.mxu0 0
  %2621 = vmatpush1.bf16.msra.mxu0 0
  %2622 = vmatprep.subr.bf16.mxu0 0
  %2623 = vmatpush1.bf16.msra.mxu0 0
  %2624 = vmatprep.subr.bf16.mxu0 0
  %2625 = vmatpush1.bf16.msra.mxu0 0
  %2626 = vmatprep.subr.bf16.mxu0 0
  %2627 = vmatpush1.bf16.msra.mxu0 0
  %2628 = vmatprep.subr.bf16.mxu0 0
  %2629 = vmatpush1.bf16.msra.mxu0 0
  %2630 = vmatprep.subr.bf16.mxu0 0
  %2631 = vmatpush1.bf16.msra.mxu0 0
  %2632 = vmatprep.subr.bf16.mxu0 0
  %2633 = vmatpush1.bf16.msra.mxu0 0
  %2634 = vmatprep.subr.bf16.mxu0 0
  %2635 = vmatpush1.bf16.msra.mxu0 0
  %2636 = vmatprep.subr.bf16.mxu0 0
  %2637 = vmatpush1.bf16.msra.mxu0 0
  %2638 = vmatprep.subr.bf16.mxu0 0
  %2639 = vmatpush1.bf16.msra.mxu0 0
  %2640 = vmatprep.subr.bf16.mxu0 0
  %2641 = vmatpush1.bf16.msra.mxu0 0
  %2642 = vmatprep.subr.bf16.mxu0 0
  %2643 = vmatpush1.bf16.msra.mxu0 0
  %2644 = vmatprep.subr.bf16.mxu0 0
  %2645 = vmatpush1.bf16.msra.mxu0 0
  %2646 = vmatprep.mubr.bf16.mxu0 0
  %2647 = vmatmul.mubr.bf16.gmra.mrb[0].mxu0 %v2454
  %v2648 = vpop.f32.mrb[0].mxu0
  %v2649 = vadd.f32 0.0, %v2648
  %v2650 = vpop.f32.mrb[0].mxu0
  %v2651 = vpop.f32.mrb[0].mxu0
  %v2652 = vadd.f32 0.0, %v2651
  %v2653 = vpop.f32.mrb[0].mxu0
  %2654 = vmatprep.mubr.bf16.mxu0 0
  %2655 = vmatmul.mubr.bf16.gmra.mrb[0].mxu0 %v2457
  %v2656 = vpop.f32.mrb[0].mxu0
  %v2657 = vadd.f32 0.0, %v2656
  %v2658 = vpop.f32.mrb[0].mxu0
  %v2659 = vpop.f32.mrb[0].mxu0
  %v2660 = vadd.f32 0.0, %v2659
  %v2661 = vpop.f32.mrb[0].mxu0
  %2662 = vdwg.mxu0
  %v2663 = vadd.f32 %v2494, %v2596
  %v2664 = vadd.f32 %v2496, %v2598
  %v2665 = vadd.f32 %v2547, %v2649
  %v2666 = vadd.f32 %v2498, %v2600
  %v2667 = vadd.f32 %v2500, %v2602
  %v2668 = vadd.f32 %v2550, %v2652
  %v2669 = vadd.f32 %v2504, %v2606
  %v2670 = vadd.f32 %v2506, %v2608
  %v2671 = vadd.f32 %v2555, %v2657
  %v2672 = vadd.f32 %v2508, %v2610
  %v2673 = vadd.f32 %v2510, %v2612
  %v2674 = vadd.f32 %v2558, %v2660
  %s2675 = scalar_lea.vmem %s4, 288
  %v2676 = vld [vmem:[%s2675] sm:$0xff]
  %v2677 = vld [vmem:[%s2675 + $0x8] sm:$0xff]
  %v2678 = vld [vmem:[%s2675 + $0x10] sm:$0xff]
  %v2679 = vld [vmem:[%s2675 + $0x18] sm:$0xff]
  %s2680 = scalar_lea.vmem %s4, 320
  %v2681 = vld [vmem:[%s2680] sm:$0xff]
  %v2682 = vld [vmem:[%s2680 + $0x8] sm:$0xff]
  %v2683 = vld [vmem:[%s2680 + $0x10] sm:$0xff]
  %v2684 = vld [vmem:[%s2680 + $0x18] sm:$0xff]
  %s2685 = scalar_lea.vmem %s4, 352
  %v2686 = vld [vmem:[%s2685] sm:$0xff]
  %v2687 = vld [vmem:[%s2685 + $0x8] sm:$0xff]
  %v2688 = vld [vmem:[%s2685 + $0x10] sm:$0xff]
  %v2689 = vld [vmem:[%s2685 + $0x18] sm:$0xff]
  %2691 = vset.pattern.permute.xlu0 0
  %2692 = vperm.xlu0 %2691, %v2676
  %v2693 = vpop.permute.xlu0 %2692
  %2696 = vset.pattern.permute.xlu0 0
  %2697 = vperm.xlu0 %2696, %v2677
  %v2698 = vpop.permute.xlu0 %2697
  %2701 = vset.pattern.permute.xlu0 0
  %2702 = vperm.xlu0 %2701, %v2678
  %v2703 = vpop.permute.xlu0 %2702
  %2706 = vset.pattern.permute.xlu0 0
  %2707 = vperm.xlu0 %2706, %v2679
  %v2708 = vpop.permute.xlu0 %2707
  %v2710 = vadd.f32 %v2663, %v2693
  %v2711 = vadd.f32 %v2664, %v2693
  %v2712 = vadd.f32 %v2665, %v2693
  %v2713 = vadd.f32 %v2666, %v2698
  %v2714 = vadd.f32 %v2667, %v2698
  %v2715 = vadd.f32 %v2668, %v2698
  %v2716 = vadd.f32 %v2669, %v2703
  %v2717 = vadd.f32 %v2670, %v2703
  %v2718 = vadd.f32 %v2671, %v2703
  %v2719 = vadd.f32 %v2672, %v2708
  %v2720 = vadd.f32 %v2673, %v2708
  %v2721 = vadd.f32 %v2674, %v2708
  %v2722 = vadd.f32 %v2710, %v2713
  %v2723 = vadd.f32 %v2722, %v2716
  %v2724 = vadd.f32 %v2723, %v2719
  %v2725 = vrot.slane %v2724, 4
  %v2726 = vadd.f32 %v2724, %v2725
  %v2727 = vrot.slane %v2726, 2
  %v2728 = vadd.f32 %v2726, %v2727
  %v2729 = vrot.slane %v2728, 1
  %v2730 = vadd.f32 %v2728, %v2729
  %v2731 = vadd.f32 %v2711, %v2714
  %v2732 = vadd.f32 %v2731, %v2717
  %v2733 = vadd.f32 %v2732, %v2720
  %v2734 = vrot.slane %v2733, 4
  %v2735 = vadd.f32 %v2733, %v2734
  %v2736 = vrot.slane %v2735, 2
  %v2737 = vadd.f32 %v2735, %v2736
  %v2738 = vrot.slane %v2737, 1
  %v2739 = vadd.f32 %v2737, %v2738
  %v2740 = vadd.f32 %v2712, %v2715
  %v2741 = vadd.f32 %v2740, %v2718
  %v2742 = vadd.f32 %v2741, %v2721
  %v2743 = vrot.slane %v2742, 4
  %v2744 = vadd.f32 %v2742, %v2743
  %v2745 = vrot.slane %v2744, 2
  %v2746 = vadd.f32 %v2744, %v2745
  %v2747 = vrot.slane %v2746, 1
  %v2748 = vadd.f32 %v2746, %v2747
  %v2749 = vmul.f32 %v2730, %v780
  %v2750 = vmul.f32 %v2739, %v780
  %v2751 = vmul.f32 %v2748, %v780
  %v2752 = vsub.f32 %v2710, %v2749
  %v2753 = vsub.f32 %v2711, %v2750
  %v2754 = vsub.f32 %v2712, %v2751
  %v2755 = vsub.f32 %v2713, %v2749
  %v2756 = vsub.f32 %v2714, %v2750
  %v2757 = vsub.f32 %v2715, %v2751
  %v2758 = vsub.f32 %v2716, %v2749
  %v2759 = vsub.f32 %v2717, %v2750
  %v2760 = vsub.f32 %v2718, %v2751
  %v2761 = vsub.f32 %v2719, %v2749
  %v2762 = vsub.f32 %v2720, %v2750
  %v2763 = vsub.f32 %v2721, %v2751
  %v2764 = vmul.f32 %v2752, %v2752
  %v2765 = vmul.f32 %v2753, %v2753
  %v2766 = vmul.f32 %v2754, %v2754
  %v2767 = vmul.f32 %v2755, %v2755
  %v2768 = vmul.f32 %v2756, %v2756
  %v2769 = vmul.f32 %v2757, %v2757
  %v2770 = vmul.f32 %v2758, %v2758
  %v2771 = vmul.f32 %v2759, %v2759
  %v2772 = vmul.f32 %v2760, %v2760
  %v2773 = vmul.f32 %v2761, %v2761
  %v2774 = vmul.f32 %v2762, %v2762
  %v2775 = vmul.f32 %v2763, %v2763
  %v2776 = vadd.f32 %v2764, %v2767
  %v2777 = vadd.f32 %v2776, %v2770
  %v2778 = vadd.f32 %v2777, %v2773
  %v2779 = vrot.slane %v2778, 4
  %v2780 = vadd.f32 %v2778, %v2779
  %v2781 = vrot.slane %v2780, 2
  %v2782 = vadd.f32 %v2780, %v2781
  %v2783 = vrot.slane %v2782, 1
  %v2784 = vadd.f32 %v2782, %v2783
  %v2785 = vadd.f32 %v2765, %v2768
  %v2786 = vadd.f32 %v2785, %v2771
  %v2787 = vadd.f32 %v2786, %v2774
  %v2788 = vrot.slane %v2787, 4
  %v2789 = vadd.f32 %v2787, %v2788
  %v2790 = vrot.slane %v2789, 2
  %v2791 = vadd.f32 %v2789, %v2790
  %v2792 = vrot.slane %v2791, 1
  %v2793 = vadd.f32 %v2791, %v2792
  %v2794 = vadd.f32 %v2766, %v2769
  %v2795 = vadd.f32 %v2794, %v2772
  %v2796 = vadd.f32 %v2795, %v2775
  %v2797 = vrot.slane %v2796, 4
  %v2798 = vadd.f32 %v2796, %v2797
  %v2799 = vrot.slane %v2798, 2
  %v2800 = vadd.f32 %v2798, %v2799
  %v2801 = vrot.slane %v2800, 1
  %v2802 = vadd.f32 %v2800, %v2801
  %v2803 = vmul.f32 %v2784, %v780
  %v2804 = vmul.f32 %v2793, %v780
  %v2805 = vmul.f32 %v2802, %v780
  %v2806 = vadd.f32 %v2803, 1e-05
  %v2807 = vadd.f32 %v2804, 1e-05
  %v2808 = vadd.f32 %v2805, 1e-05
  %v2809 = vrsqrt.pop %v2806
  %v2810 = vrsqrt.pop %v2807
  %v2811 = vrsqrt.pop %v2808
  %v2812 = vmul.f32 %v2752, %v2809
  %v2813 = vmul.f32 %v2753, %v2810
  %v2814 = vmul.f32 %v2754, %v2811
  %v2815 = vmul.f32 %v2755, %v2809
  %v2816 = vmul.f32 %v2756, %v2810
  %v2817 = vmul.f32 %v2757, %v2811
  %v2818 = vmul.f32 %v2758, %v2809
  %v2819 = vmul.f32 %v2759, %v2810
  %v2820 = vmul.f32 %v2760, %v2811
  %v2821 = vmul.f32 %v2761, %v2809
  %v2822 = vmul.f32 %v2762, %v2810
  %v2823 = vmul.f32 %v2763, %v2811
  %2825 = vset.pattern.permute.xlu0 0
  %2826 = vperm.xlu0 %2825, %v2681
  %v2827 = vpop.permute.xlu0 %2826
  %2830 = vset.pattern.permute.xlu0 0
  %2831 = vperm.xlu0 %2830, %v2682
  %v2832 = vpop.permute.xlu0 %2831
  %2835 = vset.pattern.permute.xlu0 0
  %2836 = vperm.xlu0 %2835, %v2683
  %v2837 = vpop.permute.xlu0 %2836
  %2840 = vset.pattern.permute.xlu0 0
  %2841 = vperm.xlu0 %2840, %v2684
  %v2842 = vpop.permute.xlu0 %2841
  %v2844 = vmul.f32 %v2812, %v2827
  %v2845 = vmul.f32 %v2813, %v2827
  %v2846 = vmul.f32 %v2814, %v2827
  %v2847 = vmul.f32 %v2815, %v2832
  %v2848 = vmul.f32 %v2816, %v2832
  %v2849 = vmul.f32 %v2817, %v2832
  %v2850 = vmul.f32 %v2818, %v2837
  %v2851 = vmul.f32 %v2819, %v2837
  %v2852 = vmul.f32 %v2820, %v2837
  %v2853 = vmul.f32 %v2821, %v2842
  %v2854 = vmul.f32 %v2822, %v2842
  %v2855 = vmul.f32 %v2823, %v2842
  %2857 = vset.pattern.permute.xlu0 0
  %2858 = vperm.xlu0 %2857, %v2686
  %v2859 = vpop.permute.xlu0 %2858
  %2862 = vset.pattern.permute.xlu0 0
  %2863 = vperm.xlu0 %2862, %v2687
  %v2864 = vpop.permute.xlu0 %2863
  %2867 = vset.pattern.permute.xlu0 0
  %2868 = vperm.xlu0 %2867, %v2688
  %v2869 = vpop.permute.xlu0 %2868
  %2872 = vset.pattern.permute.xlu0 0
  %2873 = vperm.xlu0 %2872, %v2689
  %v2874 = vpop.permute.xlu0 %2873
  %v2876 = vadd.f32 %v2844, %v2859
  %v2877 = vadd.f32 %v2845, %v2859
  %v2878 = vadd.f32 %v2846, %v2859
  %v2879 = vadd.f32 %v2847, %v2864
  %v2880 = vadd.f32 %v2848, %v2864
  %v2881 = vadd.f32 %v2849, %v2864
  %v2882 = vadd.f32 %v2850, %v2869
  %v2883 = vadd.f32 %v2851, %v2869
  %v2884 = vadd.f32 %v2852, %v2869
  %v2885 = vadd.f32 %v2853, %v2874
  %v2886 = vadd.f32 %v2854, %v2874
  %v2887 = vadd.f32 %v2855, %v2874
  %v2888 = vmul.f32 %v2876, 0.5
  %v2889 = vmul.f32 %v2877, 0.5
  %v2890 = vmul.f32 %v2878, 0.5
  %v2891 = vmul.f32 %v2879, 0.5
  %v2892 = vmul.f32 %v2880, 0.5
  %v2893 = vmul.f32 %v2881, 0.5
  %v2894 = vmul.f32 %v2882, 0.5
  %v2895 = vmul.f32 %v2883, 0.5
  %v2896 = vmul.f32 %v2884, 0.5
  %v2897 = vmul.f32 %v2885, 0.5
  %v2898 = vmul.f32 %v2886, 0.5
  %v2899 = vmul.f32 %v2887, 0.5
  %v2900 = vmul.f32 %v2876, 0.70710677
  %v2901 = vmul.f32 %v2877, 0.70710677
  %v2902 = vmul.f32 %v2878, 0.70710677
  %v2903 = vmul.f32 %v2879, 0.70710677
  %v2904 = vmul.f32 %v2880, 0.70710677
  %v2905 = vmul.f32 %v2881, 0.70710677
  %v2906 = vmul.f32 %v2882, 0.70710677
  %v2907 = vmul.f32 %v2883, 0.70710677
  %v2908 = vmul.f32 %v2884, 0.70710677
  %v2909 = vmul.f32 %v2885, 0.70710677
  %v2910 = vmul.f32 %v2886, 0.70710677
  %v2911 = vmul.f32 %v2887, 0.70710677
  %v2912 = verf.f32.pop %v2900
  %v2913 = verf.f32.pop %v2901
  %v2914 = verf.f32.pop %v2902
  %v2915 = verf.f32.pop %v2903
  %v2916 = verf.f32.pop %v2904
  %v2917 = verf.f32.pop %v2905
  %v2918 = verf.f32.pop %v2906
  %v2919 = verf.f32.pop %v2907
  %v2920 = verf.f32.pop %v2908
  %v2921 = verf.f32.pop %v2909
  %v2922 = verf.f32.pop %v2910
  %v2923 = verf.f32.pop %v2911
  %v2924 = vadd.f32 %v2912, 1.0
  %v2925 = vadd.f32 %v2913, 1.0
  %v2926 = vadd.f32 %v2914, 1.0
  %v2927 = vadd.f32 %v2915, 1.0
  %v2928 = vadd.f32 %v2916, 1.0
  %v2929 = vadd.f32 %v2917, 1.0
  %v2930 = vadd.f32 %v2918, 1.0
  %v2931 = vadd.f32 %v2919, 1.0
  %v2932 = vadd.f32 %v2920, 1.0
  %v2933 = vadd.f32 %v2921, 1.0
  %v2934 = vadd.f32 %v2922, 1.0
  %v2935 = vadd.f32 %v2923, 1.0
  %v2936 = vmul.f32 %v2888, %v2924
  %v2937 = vmul.f32 %v2889, %v2925
  %v2938 = vmul.f32 %v2890, %v2926
  %v2939 = vmul.f32 %v2891, %v2927
  %v2940 = vmul.f32 %v2892, %v2928
  %v2941 = vmul.f32 %v2893, %v2929
  %v2942 = vmul.f32 %v2894, %v2930
  %v2943 = vmul.f32 %v2895, %v2931
  %v2944 = vmul.f32 %v2896, %v2932
  %v2945 = vmul.f32 %v2897, %v2933
  %v2946 = vmul.f32 %v2898, %v2934
  %v2947 = vmul.f32 %v2899, %v2935
  %v2948 = vld [vmem:[%s3] sm:$0xff]
  %v2949 = vpack.c.bf16 %v2948, %v2948
  %v2950 = vunpack.c.l.bf16 %v2949
  %v2951 = vsub.f32 %v2948, %v2950
  %v2952 = vpack.c.bf16 %v2951, %v2951
  %v2953 = vpack.c.bf16 %v2939, %v2936
  %v2954 = vpack.c.bf16 %v2940, %v2937
  %v2955 = vpack.c.bf16 %v2941, %v2938
  %v2956 = vpack.c.bf16 %v2945, %v2942
  %v2957 = vpack.c.bf16 %v2946, %v2943
  %v2958 = vpack.c.bf16 %v2947, %v2944
  %v2959 = vunpack.c.l.bf16 %v2953
  %v2960 = vunpack.c.l.bf16 %v2954
  %v2961 = vunpack.c.l.bf16 %v2955
  %v2962 = vunpack.c.h.bf16 %v2953
  %v2963 = vunpack.c.h.bf16 %v2954
  %v2964 = vunpack.c.h.bf16 %v2955
  %v2965 = vunpack.c.l.bf16 %v2956
  %v2966 = vunpack.c.l.bf16 %v2957
  %v2967 = vunpack.c.l.bf16 %v2958
  %v2968 = vunpack.c.h.bf16 %v2956
  %v2969 = vunpack.c.h.bf16 %v2957
  %v2970 = vunpack.c.h.bf16 %v2958
  %v2971 = vsub.f32 %v2936, %v2959
  %v2972 = vsub.f32 %v2937, %v2960
  %v2973 = vsub.f32 %v2938, %v2961
  %v2974 = vsub.f32 %v2939, %v2962
  %v2975 = vsub.f32 %v2940, %v2963
  %v2976 = vsub.f32 %v2941, %v2964
  %v2977 = vsub.f32 %v2942, %v2965
  %v2978 = vsub.f32 %v2943, %v2966
  %v2979 = vsub.f32 %v2944, %v2967
  %v2980 = vsub.f32 %v2945, %v2968
  %v2981 = vsub.f32 %v2946, %v2969
  %v2982 = vsub.f32 %v2947, %v2970
  %v2983 = vpack.c.bf16 %v2974, %v2971
  %v2984 = vpack.c.bf16 %v2975, %v2972
  %v2985 = vpack.c.bf16 %v2976, %v2973
  %v2986 = vpack.c.bf16 %v2980, %v2977
  %v2987 = vpack.c.bf16 %v2981, %v2978
  %v2988 = vpack.c.bf16 %v2982, %v2979
  %v2990 = vsel %vm1032, %v2952, 0
  %2992 = vmatprep.subr.bf16.mxu0 %v2954
  %2993 = vmatpush1.bf16.msra.mxu0 %v2953
  %2994 = vmatprep.subr.bf16.mxu0 %v2957
  %2995 = vmatpush1.bf16.msra.mxu0 %v2956
  %2996 = vmatprep.subr.bf16.mxu0 0
  %2997 = vmatpush1.bf16.msra.mxu0 0
  %2998 = vmatprep.subr.bf16.mxu0 0
  %2999 = vmatpush1.bf16.msra.mxu0 0
  %3000 = vmatprep.subr.bf16.mxu0 0
  %3001 = vmatpush1.bf16.msra.mxu0 0
  %3002 = vmatprep.subr.bf16.mxu0 0
  %3003 = vmatpush1.bf16.msra.mxu0 0
  %3004 = vmatprep.subr.bf16.mxu0 0
  %3005 = vmatpush1.bf16.msra.mxu0 0
  %3006 = vmatprep.subr.bf16.mxu0 0
  %3007 = vmatpush1.bf16.msra.mxu0 0
  %3008 = vmatprep.subr.bf16.mxu0 0
  %3009 = vmatpush1.bf16.msra.mxu0 0
  %3010 = vmatprep.subr.bf16.mxu0 0
  %3011 = vmatpush1.bf16.msra.mxu0 0
  %3012 = vmatprep.subr.bf16.mxu0 0
  %3013 = vmatpush1.bf16.msra.mxu0 0
  %3014 = vmatprep.subr.bf16.mxu0 0
  %3015 = vmatpush1.bf16.msra.mxu0 0
  %3016 = vmatprep.subr.bf16.mxu0 0
  %3017 = vmatpush1.bf16.msra.mxu0 0
  %3018 = vmatprep.subr.bf16.mxu0 0
  %3019 = vmatpush1.bf16.msra.mxu0 0
  %3020 = vmatprep.subr.bf16.mxu0 0
  %3021 = vmatpush1.bf16.msra.mxu0 0
  %3022 = vmatprep.subr.bf16.mxu0 0
  %3023 = vmatpush1.bf16.msra.mxu0 0
  %3024 = vmatprep.mubr.bf16.mxu0 0
  %3025 = vmatmul.mubr.bf16.gmra.mrb[0].mxu0 %v2990
  %v3026 = vpop.f32.mrb[0].mxu0
  %v3027 = vadd.f32 0.0, %v3026
  %v3028 = vpop.f32.mrb[0].mxu0
  %v3029 = vadd.f32 0.0, %v3028
  %v3030 = vpop.f32.mrb[0].mxu0
  %v3031 = vpop.f32.mrb[0].mxu0
  %3032 = vdwg.mxu0
  %3033 = vmatprep.subr.bf16.mxu0 0
  %3034 = vmatpush1.bf16.msra.mxu0 %v2955
  %3035 = vmatprep.subr.bf16.mxu0 0
  %3036 = vmatpush1.bf16.msra.mxu0 %v2958
  %3037 = vmatprep.subr.bf16.mxu0 0
  %3038 = vmatpush1.bf16.msra.mxu0 0
  %3039 = vmatprep.subr.bf16.mxu0 0
  %3040 = vmatpush1.bf16.msra.mxu0 0
  %3041 = vmatprep.subr.bf16.mxu0 0
  %3042 = vmatpush1.bf16.msra.mxu0 0
  %3043 = vmatprep.subr.bf16.mxu0 0
  %3044 = vmatpush1.bf16.msra.mxu0 0
  %3045 = vmatprep.subr.bf16.mxu0 0
  %3046 = vmatpush1.bf16.msra.mxu0 0
  %3047 = vmatprep.subr.bf16.mxu0 0
  %3048 = vmatpush1.bf16.msra.mxu0 0
  %3049 = vmatprep.subr.bf16.mxu0 0
  %3050 = vmatpush1.bf16.msra.mxu0 0
  %3051 = vmatprep.subr.bf16.mxu0 0
  %3052 = vmatpush1.bf16.msra.mxu0 0
  %3053 = vmatprep.subr.bf16.mxu0 0
  %3054 = vmatpush1.bf16.msra.mxu0 0
  %3055 = vmatprep.subr.bf16.mxu0 0
  %3056 = vmatpush1.bf16.msra.mxu0 0
  %3057 = vmatprep.subr.bf16.mxu0 0
  %3058 = vmatpush1.bf16.msra.mxu0 0
  %3059 = vmatprep.subr.bf16.mxu0 0
  %3060 = vmatpush1.bf16.msra.mxu0 0
  %3061 = vmatprep.subr.bf16.mxu0 0
  %3062 = vmatpush1.bf16.msra.mxu0 0
  %3063 = vmatprep.subr.bf16.mxu0 0
  %3064 = vmatpush1.bf16.msra.mxu0 0
  %3065 = vmatprep.mubr.bf16.mxu0 0
  %3066 = vmatmul.mubr.bf16.gmra.mrb[0].mxu0 %v2990
  %v3067 = vpop.f32.mrb[0].mxu0
  %v3068 = vadd.f32 0.0, %v3067
  %v3069 = vpop.f32.mrb[0].mxu0
  %v3070 = vpop.f32.mrb[0].mxu0
  %v3071 = vpop.f32.mrb[0].mxu0
  %3072 = vdwg.mxu0
  %v3074 = vsel %vm1032, %v2949, 0
  %3076 = vmatprep.subr.bf16.mxu0 %v2954
  %3077 = vmatpush1.bf16.msra.mxu0 %v2953
  %3078 = vmatprep.subr.bf16.mxu0 %v2957
  %3079 = vmatpush1.bf16.msra.mxu0 %v2956
  %3080 = vmatprep.subr.bf16.mxu0 0
  %3081 = vmatpush1.bf16.msra.mxu0 0
  %3082 = vmatprep.subr.bf16.mxu0 0
  %3083 = vmatpush1.bf16.msra.mxu0 0
  %3084 = vmatprep.subr.bf16.mxu0 0
  %3085 = vmatpush1.bf16.msra.mxu0 0
  %3086 = vmatprep.subr.bf16.mxu0 0
  %3087 = vmatpush1.bf16.msra.mxu0 0
  %3088 = vmatprep.subr.bf16.mxu0 0
  %3089 = vmatpush1.bf16.msra.mxu0 0
  %3090 = vmatprep.subr.bf16.mxu0 0
  %3091 = vmatpush1.bf16.msra.mxu0 0
  %3092 = vmatprep.subr.bf16.mxu0 0
  %3093 = vmatpush1.bf16.msra.mxu0 0
  %3094 = vmatprep.subr.bf16.mxu0 0
  %3095 = vmatpush1.bf16.msra.mxu0 0
  %3096 = vmatprep.subr.bf16.mxu0 0
  %3097 = vmatpush1.bf16.msra.mxu0 0
  %3098 = vmatprep.subr.bf16.mxu0 0
  %3099 = vmatpush1.bf16.msra.mxu0 0
  %3100 = vmatprep.subr.bf16.mxu0 0
  %3101 = vmatpush1.bf16.msra.mxu0 0
  %3102 = vmatprep.subr.bf16.mxu0 0
  %3103 = vmatpush1.bf16.msra.mxu0 0
  %3104 = vmatprep.subr.bf16.mxu0 0
  %3105 = vmatpush1.bf16.msra.mxu0 0
  %3106 = vmatprep.subr.bf16.mxu0 0
  %3107 = vmatpush1.bf16.msra.mxu0 0
  %3108 = vmatprep.mubr.bf16.mxu0 0
  %3109 = vmatmul.mubr.bf16.gmra.mrb[0].mxu0 %v3074
  %v3110 = vpop.f32.mrb[0].mxu0
  %v3111 = vadd.f32 %v3027, %v3110
  %v3112 = vpop.f32.mrb[0].mxu0
  %v3113 = vadd.f32 %v3029, %v3112
  %v3114 = vpop.f32.mrb[0].mxu0
  %v3115 = vpop.f32.mrb[0].mxu0
  %3116 = vdwg.mxu0
  %3117 = vmatprep.subr.bf16.mxu0 0
  %3118 = vmatpush1.bf16.msra.mxu0 %v2955
  %3119 = vmatprep.subr.bf16.mxu0 0
  %3120 = vmatpush1.bf16.msra.mxu0 %v2958
  %3121 = vmatprep.subr.bf16.mxu0 0
  %3122 = vmatpush1.bf16.msra.mxu0 0
  %3123 = vmatprep.subr.bf16.mxu0 0
  %3124 = vmatpush1.bf16.msra.mxu0 0
  %3125 = vmatprep.subr.bf16.mxu0 0
  %3126 = vmatpush1.bf16.msra.mxu0 0
  %3127 = vmatprep.subr.bf16.mxu0 0
  %3128 = vmatpush1.bf16.msra.mxu0 0
  %3129 = vmatprep.subr.bf16.mxu0 0
  %3130 = vmatpush1.bf16.msra.mxu0 0
  %3131 = vmatprep.subr.bf16.mxu0 0
  %3132 = vmatpush1.bf16.msra.mxu0 0
  %3133 = vmatprep.subr.bf16.mxu0 0
  %3134 = vmatpush1.bf16.msra.mxu0 0
  %3135 = vmatprep.subr.bf16.mxu0 0
  %3136 = vmatpush1.bf16.msra.mxu0 0
  %3137 = vmatprep.subr.bf16.mxu0 0
  %3138 = vmatpush1.bf16.msra.mxu0 0
  %3139 = vmatprep.subr.bf16.mxu0 0
  %3140 = vmatpush1.bf16.msra.mxu0 0
  %3141 = vmatprep.subr.bf16.mxu0 0
  %3142 = vmatpush1.bf16.msra.mxu0 0
  %3143 = vmatprep.subr.bf16.mxu0 0
  %3144 = vmatpush1.bf16.msra.mxu0 0
  %3145 = vmatprep.subr.bf16.mxu0 0
  %3146 = vmatpush1.bf16.msra.mxu0 0
  %3147 = vmatprep.subr.bf16.mxu0 0
  %3148 = vmatpush1.bf16.msra.mxu0 0
  %3149 = vmatprep.mubr.bf16.mxu0 0
  %3150 = vmatmul.mubr.bf16.gmra.mrb[0].mxu0 %v3074
  %v3151 = vpop.f32.mrb[0].mxu0
  %v3152 = vadd.f32 %v3068, %v3151
  %v3153 = vpop.f32.mrb[0].mxu0
  %v3154 = vpop.f32.mrb[0].mxu0
  %v3155 = vpop.f32.mrb[0].mxu0
  %3156 = vdwg.mxu0
  %3157 = vmatprep.subr.bf16.mxu0 %v2984
  %3158 = vmatpush1.bf16.msra.mxu0 %v2983
  %3159 = vmatprep.subr.bf16.mxu0 %v2987
  %3160 = vmatpush1.bf16.msra.mxu0 %v2986
  %3161 = vmatprep.subr.bf16.mxu0 0
  %3162 = vmatpush1.bf16.msra.mxu0 0
  %3163 = vmatprep.subr.bf16.mxu0 0
  %3164 = vmatpush1.bf16.msra.mxu0 0
  %3165 = vmatprep.subr.bf16.mxu0 0
  %3166 = vmatpush1.bf16.msra.mxu0 0
  %3167 = vmatprep.subr.bf16.mxu0 0
  %3168 = vmatpush1.bf16.msra.mxu0 0
  %3169 = vmatprep.subr.bf16.mxu0 0
  %3170 = vmatpush1.bf16.msra.mxu0 0
  %3171 = vmatprep.subr.bf16.mxu0 0
  %3172 = vmatpush1.bf16.msra.mxu0 0
  %3173 = vmatprep.subr.bf16.mxu0 0
  %3174 = vmatpush1.bf16.msra.mxu0 0
  %3175 = vmatprep.subr.bf16.mxu0 0
  %3176 = vmatpush1.bf16.msra.mxu0 0
  %3177 = vmatprep.subr.bf16.mxu0 0
  %3178 = vmatpush1.bf16.msra.mxu0 0
  %3179 = vmatprep.subr.bf16.mxu0 0
  %3180 = vmatpush1.bf16.msra.mxu0 0
  %3181 = vmatprep.subr.bf16.mxu0 0
  %3182 = vmatpush1.bf16.msra.mxu0 0
  %3183 = vmatprep.subr.bf16.mxu0 0
  %3184 = vmatpush1.bf16.msra.mxu0 0
  %3185 = vmatprep.subr.bf16.mxu0 0
  %3186 = vmatpush1.bf16.msra.mxu0 0
  %3187 = vmatprep.subr.bf16.mxu0 0
  %3188 = vmatpush1.bf16.msra.mxu0 0
  %3189 = vmatprep.mubr.bf16.mxu0 0
  %3190 = vmatmul.mubr.bf16.gmra.mrb[0].mxu0 %v3074
  %v3191 = vpop.f32.mrb[0].mxu0
  %v3192 = vadd.f32 0.0, %v3191
  %v3193 = vpop.f32.mrb[0].mxu0
  %v3194 = vadd.f32 0.0, %v3193
  %v3195 = vpop.f32.mrb[0].mxu0
  %v3196 = vpop.f32.mrb[0].mxu0
  %3197 = vdwg.mxu0
  %3198 = vmatprep.subr.bf16.mxu0 0
  %3199 = vmatpush1.bf16.msra.mxu0 %v2985
  %3200 = vmatprep.subr.bf16.mxu0 0
  %3201 = vmatpush1.bf16.msra.mxu0 %v2988
  %3202 = vmatprep.subr.bf16.mxu0 0
  %3203 = vmatpush1.bf16.msra.mxu0 0
  %3204 = vmatprep.subr.bf16.mxu0 0
  %3205 = vmatpush1.bf16.msra.mxu0 0
  %3206 = vmatprep.subr.bf16.mxu0 0
  %3207 = vmatpush1.bf16.msra.mxu0 0
  %3208 = vmatprep.subr.bf16.mxu0 0
  %3209 = vmatpush1.bf16.msra.mxu0 0
  %3210 = vmatprep.subr.bf16.mxu0 0
  %3211 = vmatpush1.bf16.msra.mxu0 0
  %3212 = vmatprep.subr.bf16.mxu0 0
  %3213 = vmatpush1.bf16.msra.mxu0 0
  %3214 = vmatprep.subr.bf16.mxu0 0
  %3215 = vmatpush1.bf16.msra.mxu0 0
  %3216 = vmatprep.subr.bf16.mxu0 0
  %3217 = vmatpush1.bf16.msra.mxu0 0
  %3218 = vmatprep.subr.bf16.mxu0 0
  %3219 = vmatpush1.bf16.msra.mxu0 0
  %3220 = vmatprep.subr.bf16.mxu0 0
  %3221 = vmatpush1.bf16.msra.mxu0 0
  %3222 = vmatprep.subr.bf16.mxu0 0
  %3223 = vmatpush1.bf16.msra.mxu0 0
  %3224 = vmatprep.subr.bf16.mxu0 0
  %3225 = vmatpush1.bf16.msra.mxu0 0
  %3226 = vmatprep.subr.bf16.mxu0 0
  %3227 = vmatpush1.bf16.msra.mxu0 0
  %3228 = vmatprep.subr.bf16.mxu0 0
  %3229 = vmatpush1.bf16.msra.mxu0 0
  %3230 = vmatprep.mubr.bf16.mxu0 0
  %3231 = vmatmul.mubr.bf16.gmra.mrb[0].mxu0 %v3074
  %v3232 = vpop.f32.mrb[0].mxu0
  %v3233 = vadd.f32 0.0, %v3232
  %v3234 = vpop.f32.mrb[0].mxu0
  %v3235 = vpop.f32.mrb[0].mxu0
  %v3236 = vpop.f32.mrb[0].mxu0
  %3237 = vdwg.mxu0
  %v3238 = vadd.f32 %v3111, %v3192
  %v3239 = vadd.f32 %v3113, %v3194
  %v3240 = vadd.f32 %v3152, %v3233
  %v3241 = vld [vmem:[%s5] sm:$0xff]
  %3243 = vset.pattern.permute.xlu0 0
  %3244 = vperm.xlu0 %3243, %v3241
  %v3245 = vpop.permute.xlu0 %3244
  %v3247 = vadd.f32 %v3238, %v3245
  %v3248 = vadd.f32 %v3239, %v3245
  %v3249 = vadd.f32 %v3240, %v3245
  %3250 = vxpose.xlu0.b32.start [1/16] %v3247, 128
  %3251 = vxpose.xlu0.b32.cont [2/16] 0.0, 128
  %3252 = vxpose.xlu0.b32.cont [3/16] 0.0, 128
  %3253 = vxpose.xlu0.b32.cont [4/16] 0.0, 128
  %3254 = vxpose.xlu0.b32.cont [5/16] 0.0, 128
  %3255 = vxpose.xlu0.b32.cont [6/16] 0.0, 128
  %3256 = vxpose.xlu0.b32.cont [7/16] 0.0, 128
  %3257 = vxpose.xlu0.b32.cont [8/16] 0.0, 128
  %3258 = vxpose.xlu0.b32.cont [9/16] 0.0, 128
  %3259 = vxpose.xlu0.b32.cont [10/16] 0.0, 128
  %3260 = vxpose.xlu0.b32.cont [11/16] 0.0, 128
  %3261 = vxpose.xlu0.b32.cont [12/16] 0.0, 128
  %3262 = vxpose.xlu0.b32.cont [13/16] 0.0, 128
  %3263 = vxpose.xlu0.b32.cont [14/16] 0.0, 128
  %3264 = vxpose.xlu0.b32.cont [15/16] 0.0, 128
  %3265 = vxpose.xlu0.b32.end [16/16] 0.0, 128
  %v3266 = vpop.trf.xlu0
  %v3267 = vpop.trf.xlu0
  %v3268 = vpop.trf.xlu0
  %v3269 = vpop.trf.xlu0
  %v3270 = vpop.trf.xlu0
  %v3271 = vpop.trf.xlu0
  %v3272 = vpop.trf.xlu0
  %v3273 = vpop.trf.xlu0
  %v3274 = vpop.trf.xlu0
  %v3275 = vpop.trf.xlu0
  %v3276 = vpop.trf.xlu0
  %v3277 = vpop.trf.xlu0
  %v3278 = vpop.trf.xlu0
  %v3279 = vpop.trf.xlu0
  %v3280 = vpop.trf.xlu0
  %v3281 = vpop.trf.xlu0
  %3282 = vxpose.xlu0.b32.start [1/16] %v3248, 128
  %3283 = vxpose.xlu0.b32.cont [2/16] 0.0, 128
  %3284 = vxpose.xlu0.b32.cont [3/16] 0.0, 128
  %3285 = vxpose.xlu0.b32.cont [4/16] 0.0, 128
  %3286 = vxpose.xlu0.b32.cont [5/16] 0.0, 128
  %3287 = vxpose.xlu0.b32.cont [6/16] 0.0, 128
  %3288 = vxpose.xlu0.b32.cont [7/16] 0.0, 128
  %3289 = vxpose.xlu0.b32.cont [8/16] 0.0, 128
  %3290 = vxpose.xlu0.b32.cont [9/16] 0.0, 128
  %3291 = vxpose.xlu0.b32.cont [10/16] 0.0, 128
  %3292 = vxpose.xlu0.b32.cont [11/16] 0.0, 128
  %3293 = vxpose.xlu0.b32.cont [12/16] 0.0, 128
  %3294 = vxpose.xlu0.b32.cont [13/16] 0.0, 128
  %3295 = vxpose.xlu0.b32.cont [14/16] 0.0, 128
  %3296 = vxpose.xlu0.b32.cont [15/16] 0.0, 128
  %3297 = vxpose.xlu0.b32.end [16/16] 0.0, 128
  %v3298 = vpop.trf.xlu0
  %v3299 = vpop.trf.xlu0
  %v3300 = vpop.trf.xlu0
  %v3301 = vpop.trf.xlu0
  %v3302 = vpop.trf.xlu0
  %v3303 = vpop.trf.xlu0
  %v3304 = vpop.trf.xlu0
  %v3305 = vpop.trf.xlu0
  %v3306 = vpop.trf.xlu0
  %v3307 = vpop.trf.xlu0
  %v3308 = vpop.trf.xlu0
  %v3309 = vpop.trf.xlu0
  %v3310 = vpop.trf.xlu0
  %v3311 = vpop.trf.xlu0
  %v3312 = vpop.trf.xlu0
  %v3313 = vpop.trf.xlu0
  %3314 = vxpose.xlu0.b32.start [1/16] %v3249, 128
  %3315 = vxpose.xlu0.b32.cont [2/16] 0.0, 128
  %3316 = vxpose.xlu0.b32.cont [3/16] 0.0, 128
  %3317 = vxpose.xlu0.b32.cont [4/16] 0.0, 128
  %3318 = vxpose.xlu0.b32.cont [5/16] 0.0, 128
  %3319 = vxpose.xlu0.b32.cont [6/16] 0.0, 128
  %3320 = vxpose.xlu0.b32.cont [7/16] 0.0, 128
  %3321 = vxpose.xlu0.b32.cont [8/16] 0.0, 128
  %3322 = vxpose.xlu0.b32.cont [9/16] 0.0, 128
  %3323 = vxpose.xlu0.b32.cont [10/16] 0.0, 128
  %3324 = vxpose.xlu0.b32.cont [11/16] 0.0, 128
  %3325 = vxpose.xlu0.b32.cont [12/16] 0.0, 128
  %3326 = vxpose.xlu0.b32.cont [13/16] 0.0, 128
  %3327 = vxpose.xlu0.b32.cont [14/16] 0.0, 128
  %3328 = vxpose.xlu0.b32.cont [15/16] 0.0, 128
  %3329 = vxpose.xlu0.b32.end [16/16] 0.0, 128
  %v3330 = vpop.trf.xlu0
  %v3331 = vpop.trf.xlu0
  %v3332 = vpop.trf.xlu0
  %v3333 = vpop.trf.xlu0
  %v3334 = vpop.trf.xlu0
  %v3335 = vpop.trf.xlu0
  %v3336 = vpop.trf.xlu0
  %v3337 = vpop.trf.xlu0
  %v3338 = vpop.trf.xlu0
  %v3339 = vpop.trf.xlu0
  %v3340 = vpop.trf.xlu0
  %v3341 = vpop.trf.xlu0
  %v3342 = vpop.trf.xlu0
  %v3343 = vpop.trf.xlu0
  %v3344 = vpop.trf.xlu0
  %v3345 = vpop.trf.xlu0
  %vm3346 = vcmask 64512
  %3347 = vst.msk [vmem:[%s6] sm:$0xff] %vm3346, %v3266
  %3348 = vst.msk [vmem:[%s6 + $0x8] sm:$0xff] %vm3346, %v3267
  %3349 = vst.msk [vmem:[%s6 + $0x10] sm:$0xff] %vm3346, %v3268
  %3350 = vst.msk [vmem:[%s6 + $0x18] sm:$0xff] %vm3346, %v3269
  %3351 = vst.msk [vmem:[%s6 + $0x20] sm:$0xff] %vm3346, %v3270
  %3352 = vst.msk [vmem:[%s6 + $0x28] sm:$0xff] %vm3346, %v3271
  %3353 = vst.msk [vmem:[%s6 + $0x30] sm:$0xff] %vm3346, %v3272
  %3354 = vst.msk [vmem:[%s6 + $0x38] sm:$0xff] %vm3346, %v3273
  %3355 = vst.msk [vmem:[%s6 + $0x40] sm:$0xff] %vm3346, %v3274
  %3356 = vst.msk [vmem:[%s6 + $0x48] sm:$0xff] %vm3346, %v3275
  %3357 = vst.msk [vmem:[%s6 + $0x50] sm:$0xff] %vm3346, %v3276
  %3358 = vst.msk [vmem:[%s6 + $0x58] sm:$0xff] %vm3346, %v3277
  %3359 = vst.msk [vmem:[%s6 + $0x60] sm:$0xff] %vm3346, %v3278
  %3360 = vst.msk [vmem:[%s6 + $0x68] sm:$0xff] %vm3346, %v3279
  %3361 = vst.msk [vmem:[%s6 + $0x70] sm:$0xff] %vm3346, %v3280
  %3362 = vst.msk [vmem:[%s6 + $0x78] sm:$0xff] %vm3346, %v3281
  %3363 = vst.msk [vmem:[%s6 + $0x80] sm:$0xff] %vm3346, %v3298
  %3364 = vst.msk [vmem:[%s6 + $0x88] sm:$0xff] %vm3346, %v3299
  %3365 = vst.msk [vmem:[%s6 + $0x90] sm:$0xff] %vm3346, %v3300
  %3366 = vst.msk [vmem:[%s6 + $0x98] sm:$0xff] %vm3346, %v3301
  %3367 = vst.msk [vmem:[%s6 + $0xa0] sm:$0xff] %vm3346, %v3302
  %3368 = vst.msk [vmem:[%s6 + $0xa8] sm:$0xff] %vm3346, %v3303
  %3369 = vst.msk [vmem:[%s6 + $0xb0] sm:$0xff] %vm3346, %v3304
  %3370 = vst.msk [vmem:[%s6 + $0xb8] sm:$0xff] %vm3346, %v3305
  %3371 = vst.msk [vmem:[%s6 + $0xc0] sm:$0xff] %vm3346, %v3306
  %3372 = vst.msk [vmem:[%s6 + $0xc8] sm:$0xff] %vm3346, %v3307
  %3373 = vst.msk [vmem:[%s6 + $0xd0] sm:$0xff] %vm3346, %v3308
  %3374 = vst.msk [vmem:[%s6 + $0xd8] sm:$0xff] %vm3346, %v3309
  %3375 = vst.msk [vmem:[%s6 + $0xe0] sm:$0xff] %vm3346, %v3310
  %3376 = vst.msk [vmem:[%s6 + $0xe8] sm:$0xff] %vm3346, %v3311
  %3377 = vst.msk [vmem:[%s6 + $0xf0] sm:$0xff] %vm3346, %v3312
  %3378 = vst.msk [vmem:[%s6 + $0xf8] sm:$0xff] %vm3346, %v3313
  %3379 = vst.msk [vmem:[%s6 + $0x100] sm:$0xff] %vm3346, %v3330
  %3380 = vst.msk [vmem:[%s6 + $0x108] sm:$0xff] %vm3346, %v3331
  %3381 = vst.msk [vmem:[%s6 + $0x110] sm:$0xff] %vm3346, %v3332
  %3382 = vst.msk [vmem:[%s6 + $0x118] sm:$0xff] %vm3346, %v3333
  %3383 = vst.msk [vmem:[%s6 + $0x120] sm:$0xff] %vm3346, %v3334
  %3384 = vst.msk [vmem:[%s6 + $0x128] sm:$0xff] %vm3346, %v3335
  %3385 = vst.msk [vmem:[%s6 + $0x130] sm:$0xff] %vm3346, %v3336
  %3386 = vst.msk [vmem:[%s6 + $0x138] sm:$0xff] %vm3346, %v3337
  %3387 = vst.msk [vmem:[%s6 + $0x140] sm:$0xff] %vm3346, %v3338
  %3388 = vst.msk [vmem:[%s6 + $0x148] sm:$0xff] %vm3346, %v3339
  %3389 = vst.msk [vmem:[%s6 + $0x150] sm:$0xff] %vm3346, %v3340
  %3390 = vst.msk [vmem:[%s6 + $0x158] sm:$0xff] %vm3346, %v3341
  %3391 = vst.msk [vmem:[%s6 + $0x160] sm:$0xff] %vm3346, %v3342
  %3392 = vst.msk [vmem:[%s6 + $0x168] sm:$0xff] %vm3346, %v3343
  %3393 = vst.msk [vmem:[%s6 + $0x170] sm:$0xff] %vm3346, %v3344
  %3394 = vst.msk [vmem:[%s6 + $0x178] sm:$0xff] %vm3346, %v3345
  // Predicated region
  $region26: #{tpu_custom_call.1} parent=0 // pred_check
    _
  $region27: #{tpu_custom_call.1} parent=0 // pred_check_branch
    %3396 = sbr.rel (0) target = $region29
  $region28: #{tpu_custom_call.1} parent=0 // pred_region
    _
  $region29: #{tpu_custom_call.1} parent=0 // pred_fallthru
    _
  // Predicated region
  $region30: #{tpu_custom_call.1} parent=0 // pred_check
    _
  $region31: #{tpu_custom_call.1} parent=0 // pred_check_branch
    %3398 = sbr.rel (0) target = $region33
  $region32: #{tpu_custom_call.1} parent=0 // pred_region
    _
  $region33: #{tpu_custom_call.1} parent=0 // pred_fallthru
    _

</llo_original>
